<compile_context>
chip_gen: v6e
topology: v6e:2x2x1
jax: 0.10.0
libtpu: 0.0.40
codegen_flags: <defaults>
</compile_context>

<pallas_src>
import jax
import jax.numpy as jnp
from jax.experimental import pallas as pl
from jax.experimental.pallas import tpu as pltpu


# ---------------------------------------------------------------------------
# Pallas kernels
# ---------------------------------------------------------------------------
def conv_bn_relu_kernel(w_ref, p_ref, b_ref, scale_ref, shift_ref, o_ref):
    # (Cout, Cin*9) @ (Cin*9, N*H*W) -> (Cout, N*H*W); lane dim = N*H*W (dense)
    acc = jnp.dot(w_ref[...], p_ref[...], preferred_element_type=jnp.float32)
    acc = jnp.maximum(acc + b_ref[...], 0.0)            # conv bias + ReLU
    o_ref[...] = acc * scale_ref[...] + shift_ref[...]  # folded BatchNorm (eval)


def mlp_logits_kernel(x_ref, w1_ref, b1_ref, w2_ref, b2_ref, o_ref, h_ref):
    # grid axis j tiles the 4096-wide fcf output; x/w1/b1 are resident.
    @pl.when(pl.program_id(0) == 0)
    def _():
        h = jnp.dot(x_ref[...], w1_ref[...], preferred_element_type=jnp.float32)
        h = jnp.maximum(h + b1_ref[...], 0.0)            # fc1 + ReLU
        # TODO(synk): Dropout(p=0.5) is inference-mode identity here; train mode
        # would need a pltpu.prng_random_bits mask and 1/(1-p) scaling.
        h_ref[...] = h.astype(jnp.bfloat16)

    logits = jnp.dot(h_ref[...], w2_ref[...], preferred_element_type=jnp.float32)
    o_ref[...] = logits + b2_ref[...]                    # raw logits tile


def log_softmax_kernel(x_ref, o_ref):
    x = x_ref[...]
    m = jnp.max(x, axis=-1, keepdims=True)
    s = x - m
    lse = jnp.log(jnp.sum(jnp.exp(s), axis=-1, keepdims=True))
    o_ref[...] = s - lse


# ---------------------------------------------------------------------------
# pallas_call wrappers
# ---------------------------------------------------------------------------
def _full_spec(shape):
    return pl.BlockSpec(shape, lambda i: (0,) * len(shape))


def conv_bn_relu(wcT, patchesT, b_col, scale_col, shift_col):
    cout, k = wcT.shape
    np_ = patchesT.shape[1]
    return pl.pallas_call(
        conv_bn_relu_kernel,
        out_shape=jax.ShapeDtypeStruct((cout, np_), jnp.float32),
        grid=(1,),
        in_specs=[_full_spec(a.shape)
                  for a in (wcT, patchesT, b_col, scale_col, shift_col)],
        out_specs=_full_spec((cout, np_)),
        cost_estimate=pl.CostEstimate(
            flops=2 * cout * k * np_, transcendentals=0,
            bytes_accessed=4 * (cout * k + k * np_ + 3 * cout + cout * np_)),
    )(wcT, patchesT, b_col, scale_col, shift_col)


def mlp_logits(x, w1, b1, w2, b2, *, tn=1024):
    m, k1 = x.shape
    hdim, dout = w2.shape
    assert dout % tn == 0
    return pl.pallas_call(
        mlp_logits_kernel,
        out_shape=jax.ShapeDtypeStruct((m, dout), jnp.float32),
        grid=(dout // tn,),
        in_specs=[
            pl.BlockSpec((m, k1), lambda j: (0, 0)),      # feat   (resident)
            pl.BlockSpec((k1, hdim), lambda j: (0, 0)),   # fc1 W  (resident)
            pl.BlockSpec((1, hdim), lambda j: (0, 0)),    # fc1 b  (resident)
            pl.BlockSpec((hdim, tn), lambda j: (0, j)),   # fcf W  (tiled, streams)
            pl.BlockSpec((1, tn), lambda j: (0, j)),      # fcf b  (tiled)
        ],
        out_specs=pl.BlockSpec((m, tn), lambda j: (0, j)),
        scratch_shapes=[pltpu.VMEM((m, hdim), jnp.bfloat16)],
        compiler_params=pltpu.CompilerParams(
            dimension_semantics=("arbitrary",)),          # h-scratch is sequential
        cost_estimate=pl.CostEstimate(
            flops=2 * m * (k1 * hdim + hdim * dout),
            transcendentals=0,
            bytes_accessed=2 * (m * k1 + k1 * hdim + hdim * dout)
                           + 4 * (hdim + dout) + 4 * m * dout),
    )(x, w1, b1, w2, b2)


def log_softmax(logits):
    m, d = logits.shape
    return pl.pallas_call(
        log_softmax_kernel,
        out_shape=jax.ShapeDtypeStruct((m, d), jnp.float32),
        grid=(1,),
        in_specs=[_full_spec((m, d))],
        out_specs=_full_spec((m, d)),
        cost_estimate=pl.CostEstimate(
            flops=4 * m * d, transcendentals=m * d, bytes_accessed=8 * m * d),
    )(logits)


# ---------------------------------------------------------------------------
# Glue: im2col + layout plumbing (pure JAX, tiny tensors only)
# ---------------------------------------------------------------------------
def im2col_3x3_same_T(x_nchw):
    # -> (Cin*9, N*H*W), row order c*9 + kh*3 + kw (matches conv_w.reshape)
    n, c, h, w = x_nchw.shape
    xp = jnp.pad(x_nchw, ((0, 0), (0, 0), (1, 1), (1, 1)))
    cols = [xp[:, :, kh:kh + h, kw:kw + w] for kh in range(3) for kw in range(3)]
    p = jnp.stack(cols, axis=2)                 # (N, C, 9, H, W)
    p = p.transpose(1, 2, 0, 3, 4)              # (C, 9, N, H, W)
    return p.reshape(c * 9, n * h * w)


def prepare_params(p):
    """One-time (outside the traced forward): fold BN, transpose FC weights, cast."""
    cout = p["conv_w"].shape[0]
    scale = p["bn_gamma"] * jax.lax.rsqrt(p["bn_var"] + 1e-5)
    shift = p["bn_beta"] - p["bn_mean"] * scale
    return {
        "wcT": p["conv_w"].reshape(cout, -1).astype(jnp.float32),   # (Cout, Cin*9)
        "conv_b": p["conv_b"].reshape(cout, 1).astype(jnp.float32),
        "bn_scale": scale.reshape(cout, 1).astype(jnp.float32),
        "bn_shift": shift.reshape(cout, 1).astype(jnp.float32),
        "w1": p["fc1_w"].T.astype(jnp.bfloat16),                    # (256, 1024)
        "b1": p["fc1_b"].reshape(1, -1).astype(jnp.float32),
        "w2": p["fcf_w"].T.astype(jnp.bfloat16),                    # (1024, 4096)
        "b2": p["fcf_b"].reshape(1, -1).astype(jnp.float32),
    }


@jax.jit
def model_forward(x_nchw, kp):
    n, cin, h, w = x_nchw.shape
    cout = kp["wcT"].shape[0]

    patchesT = im2col_3x3_same_T(x_nchw)                          # (Cin*9, N*H*W)
    convT = conv_bn_relu(kp["wcT"], patchesT, kp["conv_b"],
                         kp["bn_scale"], kp["bn_shift"])          # (Cout, N*H*W)

    # torch NCHW flatten: feat[n, c*H*W + p] = convT[c, n*H*W + p]   (2 KiB op)
    feat = convT.reshape(cout, n, h * w).transpose(1, 0, 2).reshape(n, cout * h * w)

    m_pad = max(8, ((n + 7) // 8) * 8)                            # pad batch to sublanes
    feat = jnp.pad(feat, ((0, m_pad - n), (0, 0))).astype(jnp.bfloat16)

    logits = mlp_logits(feat, kp["w1"], kp["b1"], kp["w2"], kp["b2"])
    return log_softmax(logits)[:n]


# Pure-JAX fp32 reference (correctness check only).
def model_forward_ref(x, p):
    hi = jax.lax.Precision.HIGHEST
    n = x.shape[0]
    conv = jax.lax.conv_general_dilated(
        x, p["conv_w"], window_strides=(1, 1), padding="SAME",
        dimension_numbers=("NCHW", "OIHW", "NCHW"), precision=hi)
    conv = jnp.maximum(conv + p["conv_b"][None, :, None, None], 0.0)
    conv = ((conv - p["bn_mean"][None, :, None, None])
            * jax.lax.rsqrt(p["bn_var"][None, :, None, None] + 1e-5)
            * p["bn_gamma"][None, :, None, None] + p["bn_beta"][None, :, None, None])
    feat = conv.reshape(n, -1)
    h = jnp.maximum(jnp.dot(feat, p["fc1_w"].T, precision=hi) + p["fc1_b"], 0.0)
    logits = jnp.dot(h, p["fcf_w"].T, precision=hi) + p["fcf_b"]
    return jax.nn.log_softmax(logits, axis=1)


# ---------------------------------------------------------------------------
def init_params(key, cin, cout, conv_out_nodes, hidden, dout):
    ks = jax.random.split(key, 10)
    u = lambda k, shape, b: jax.random.uniform(k, shape, jnp.float32, -b, b)
    bconv = 1.0 / (cin * 9) ** 0.5
    b1 = 1.0 / conv_out_nodes ** 0.5
    b2 = 1.0 / hidden ** 0.5
    return {
        "conv_w": u(ks[0], (cout, cin, 3, 3), bconv),
        "conv_b": u(ks[1], (cout,), bconv),
        "bn_gamma": jax.random.uniform(ks[2], (cout,), jnp.float32, 0.5, 1.5),
        "bn_beta": u(ks[3], (cout,), 0.1),
        "bn_mean": 0.1 * jax.random.normal(ks[4], (cout,), jnp.float32),
        "bn_var": jax.random.uniform(ks[5], (cout,), jnp.float32, 0.5, 1.5),
        "fc1_w": u(ks[6], (hidden, conv_out_nodes), b1),
        "fc1_b": u(ks[7], (hidden,), b1),
        "fcf_w": u(ks[8], (dout, hidden), b2),
        "fcf_b": u(ks[9], (dout,), b2),
    }


if __name__ == "__main__":
    N, CIN, COUT, H, W = 2, 4, 4, 8, 8          # conv_out_nodes = Cout*8*8 = 256
    HIDDEN, DOUT = 1024, 64 * 64

    key = jax.random.PRNGKey(0)
    kx, kparam = jax.random.split(key)
    x = jax.random.normal(kx, (N, CIN, H, W), jnp.float32)
    params = init_params(kparam, CIN, COUT, COUT * H * W, HIDDEN, DOUT)
    kernel_params = prepare_params(params)      # one-time weight prep (no per-call .T)

    out = jax.block_until_ready(model_forward(x, kernel_params))
    ref = jax.block_until_ready(model_forward_ref(x, params))

    assert out.shape == (N, DOUT) and out.dtype == jnp.float32
    assert jnp.allclose(out, ref, atol=2e-2, rtol=2e-2), "mismatch vs reference"
    print("KERNEL_OK")
</pallas_src>

<mosaic_0001>
module attributes {stable_mosaic.version = 11 : i64} {
  func.func @conv_bn_relu_kernel(%arg0: i32, %arg1: memref<4x36xf32, #tpu.memory_space<vmem>>, %arg2: memref<36x128xf32, #tpu.memory_space<vmem>>, %arg3: memref<4x1xf32, #tpu.memory_space<vmem>>, %arg4: memref<4x1xf32, #tpu.memory_space<vmem>>, %arg5: memref<4x1xf32, #tpu.memory_space<vmem>>, %arg6: memref<4x128xf32, #tpu.memory_space<vmem>>) attributes {dimension_semantics = [#tpu.dimension_semantics<arbitrary>], iteration_bounds = array<i64: 1>, scalar_prefetch = 0 : i64, scratch_operands = 0 : i64, tpu.core_type = #tpu.core_type<tc>, window_params = [{pipeline_mode = #tpu.pipeline_mode<synchronous>, transform_indices = @transform_0, window_bounds = array<i64: 4, 36>}, {pipeline_mode = #tpu.pipeline_mode<synchronous>, transform_indices = @transform_1, window_bounds = array<i64: 36, 128>}, {pipeline_mode = #tpu.pipeline_mode<synchronous>, transform_indices = @transform_2, window_bounds = array<i64: 4, 1>}, {pipeline_mode = #tpu.pipeline_mode<synchronous>, transform_indices = @transform_3, window_bounds = array<i64: 4, 1>}, {pipeline_mode = #tpu.pipeline_mode<synchronous>, transform_indices = @transform_4, window_bounds = array<i64: 4, 1>}, {pipeline_mode = #tpu.pipeline_mode<synchronous>, transform_indices = @transform_5, window_bounds = array<i64: 4, 128>}]} {
    %c0 = arith.constant 0 : index
    %c0_0 = arith.constant 0 : index
    %0 = vector.load %arg1[%c0, %c0_0] : memref<4x36xf32, #tpu.memory_space<vmem>>, vector<4x36xf32>
    %c0_1 = arith.constant 0 : index
    %c0_2 = arith.constant 0 : index
    %1 = vector.load %arg2[%c0_1, %c0_2] : memref<36x128xf32, #tpu.memory_space<vmem>>, vector<36x128xf32>
    %cst = arith.constant dense<0.000000e+00> : vector<4x128xf32>
    %2 = tpu.matmul %0, %1, %cst {dimension_numbers = #tpu.dot_dimension_numbers<[1], [0], [0], [1], [0, 0, 1, 1], [], []>} : vector<4x36xf32>, vector<36x128xf32>, vector<4x128xf32> -> vector<4x128xf32>
    %c0_3 = arith.constant 0 : index
    %c0_4 = arith.constant 0 : index
    %3 = vector.load %arg3[%c0_3, %c0_4] : memref<4x1xf32, #tpu.memory_space<vmem>>, vector<4x1xf32>
    %4 = vector.broadcast %3 : vector<4x1xf32> to vector<4x128xf32>
    %5 = arith.addf %2, %4 : vector<4x128xf32>
    %cst_5 = arith.constant 0.000000e+00 : f32
    %6 = vector.broadcast %cst_5 : f32 to vector<4x128xf32>
    %7 = arith.maximumf %5, %6 : vector<4x128xf32>
    %c0_6 = arith.constant 0 : index
    %c0_7 = arith.constant 0 : index
    %8 = vector.load %arg4[%c0_6, %c0_7] : memref<4x1xf32, #tpu.memory_space<vmem>>, vector<4x1xf32>
    %9 = vector.broadcast %8 : vector<4x1xf32> to vector<4x128xf32>
    %10 = arith.mulf %7, %9 : vector<4x128xf32>
    %c0_8 = arith.constant 0 : index
    %c0_9 = arith.constant 0 : index
    %11 = vector.load %arg5[%c0_8, %c0_9] : memref<4x1xf32, #tpu.memory_space<vmem>>, vector<4x1xf32>
    %12 = vector.broadcast %11 : vector<4x1xf32> to vector<4x128xf32>
    %13 = arith.addf %10, %12 : vector<4x128xf32>
    %c0_10 = arith.constant 0 : index
    %c0_11 = arith.constant 0 : index
    %14 = vector.load %arg6[%c0_10, %c0_11] : memref<4x128xf32, #tpu.memory_space<vmem>>, vector<4x128xf32>
    tpu.vector_store %arg6[%c0_10, %c0_11], %13 {strides = array<i32>} : memref<4x128xf32, #tpu.memory_space<vmem>>, vector<4x128xf32>,
    return
  }
  func.func @transform_0(%arg0: i32) -> (i32, i32) {
    %c0_i32 = arith.constant 0 : i32
    %c0_i32_0 = arith.constant 0 : i32
    %c0_i32_1 = arith.constant 0 : i32
    return %c0_i32, %c0_i32_0 : i32, i32
  }
  func.func @transform_1(%arg0: i32) -> (i32, i32) {
    %c0_i32 = arith.constant 0 : i32
    %c0_i32_0 = arith.constant 0 : i32
    %c0_i32_1 = arith.constant 0 : i32
    return %c0_i32, %c0_i32_0 : i32, i32
  }
  func.func @transform_2(%arg0: i32) -> (i32, i32) {
    %c0_i32 = arith.constant 0 : i32
    %c0_i32_0 = arith.constant 0 : i32
    %c0_i32_1 = arith.constant 0 : i32
    return %c0_i32, %c0_i32_0 : i32, i32
  }
  func.func @transform_3(%arg0: i32) -> (i32, i32) {
    %c0_i32 = arith.constant 0 : i32
    %c0_i32_0 = arith.constant 0 : i32
    %c0_i32_1 = arith.constant 0 : i32
    return %c0_i32, %c0_i32_0 : i32, i32
  }
  func.func @transform_4(%arg0: i32) -> (i32, i32) {
    %c0_i32 = arith.constant 0 : i32
    %c0_i32_0 = arith.constant 0 : i32
    %c0_i32_1 = arith.constant 0 : i32
    return %c0_i32, %c0_i32_0 : i32, i32
  }
  func.func @transform_5(%arg0: i32) -> (i32, i32) {
    %c0_i32 = arith.constant 0 : i32
    %c0_i32_0 = arith.constant 0 : i32
    %c0_i32_1 = arith.constant 0 : i32
    return %c0_i32, %c0_i32_0 : i32, i32
  }
}

module attributes {stable_mosaic.version = 11 : i64} {
  func.func @mlp_logits_kernel(%arg0: i32, %arg1: memref<8x256xbf16, #tpu.memory_space<vmem>>, %arg2: memref<256x1024xbf16, #tpu.memory_space<vmem>>, %arg3: memref<1x1024xf32, #tpu.memory_space<vmem>>, %arg4: memref<1024x1024xbf16, #tpu.memory_space<vmem>>, %arg5: memref<1x1024xf32, #tpu.memory_space<vmem>>, %arg6: memref<8x1024xf32, #tpu.memory_space<vmem>>, %arg7: memref<8x1024xbf16, #tpu.memory_space<vmem>>) attributes {dimension_semantics = [#tpu.dimension_semantics<arbitrary>], iteration_bounds = array<i64: 4>, scalar_prefetch = 0 : i64, scratch_operands = 1 : i64, tpu.core_type = #tpu.core_type<tc>, window_params = [{pipeline_mode = #tpu.pipeline_mode<synchronous>, transform_indices = @transform_0, window_bounds = array<i64: 8, 256>}, {pipeline_mode = #tpu.pipeline_mode<synchronous>, transform_indices = @transform_1, window_bounds = array<i64: 256, 1024>}, {pipeline_mode = #tpu.pipeline_mode<synchronous>, transform_indices = @transform_2, window_bounds = array<i64: 1, 1024>}, {transform_indices = @transform_3, window_bounds = array<i64: 1024, 1024>}, {transform_indices = @transform_4, window_bounds = array<i64: 1, 1024>}, {transform_indices = @transform_5, window_bounds = array<i64: 8, 1024>}]} {
    %c0_i32 = arith.constant 0 : i32
    %0 = arith.cmpi eq, %arg0, %c0_i32 : i32
    %1 = arith.extui %0 : i1 to i32
    %c0_i32_0 = arith.constant 0 : i32
    %2 = arith.cmpi ne, %1, %c0_i32_0 : i32
    scf.if %2 {
      %c0_8 = arith.constant 0 : index
      %c0_9 = arith.constant 0 : index
      %10 = vector.load %arg1[%c0_8, %c0_9] : memref<8x256xbf16, #tpu.memory_space<vmem>>, vector<8x256xbf16>
      %c0_10 = arith.constant 0 : index
      %c0_11 = arith.constant 0 : index
      %11 = vector.load %arg2[%c0_10, %c0_11] : memref<256x1024xbf16, #tpu.memory_space<vmem>>, vector<256x1024xbf16>
      %cst_12 = arith.constant dense<0.000000e+00> : vector<8x1024xf32>
      %12 = tpu.matmul %10, %11, %cst_12 {dimension_numbers = #tpu.dot_dimension_numbers<[1], [0], [0], [1], [0, 0, 1, 1], [], []>} : vector<8x256xbf16>, vector<256x1024xbf16>, vector<8x1024xf32> -> vector<8x1024xf32>
      %c0_13 = arith.constant 0 : index
      %c0_14 = arith.constant 0 : index
      %13 = vector.load %arg3[%c0_13, %c0_14] : memref<1x1024xf32, #tpu.memory_space<vmem>>, vector<1x1024xf32>
      %14 = vector.broadcast %13 : vector<1x1024xf32> to vector<8x1024xf32>
      %15 = arith.addf %12, %14 : vector<8x1024xf32>
      %cst_15 = arith.constant 0.000000e+00 : f32
      %16 = vector.broadcast %cst_15 : f32 to vector<8x1024xf32>
      %17 = arith.maximumf %15, %16 : vector<8x1024xf32>
      %18 = arith.truncf %17 : vector<8x1024xf32> to vector<8x1024xbf16>
      %c0_16 = arith.constant 0 : index
      %c0_17 = arith.constant 0 : index
      %19 = vector.load %arg7[%c0_16, %c0_17] : memref<8x1024xbf16, #tpu.memory_space<vmem>>, vector<8x1024xbf16>
      tpu.vector_store %arg7[%c0_16, %c0_17], %18 {strides = array<i32>} : memref<8x1024xbf16, #tpu.memory_space<vmem>>, vector<8x1024xbf16>,
    } else {
    }
    %c0 = arith.constant 0 : index
    %c0_1 = arith.constant 0 : index
    %3 = vector.load %arg7[%c0, %c0_1] : memref<8x1024xbf16, #tpu.memory_space<vmem>>, vector<8x1024xbf16>
    %c0_2 = arith.constant 0 : index
    %c0_3 = arith.constant 0 : index
    %4 = vector.load %arg4[%c0_2, %c0_3] : memref<1024x1024xbf16, #tpu.memory_space<vmem>>, vector<1024x1024xbf16>
    %cst = arith.constant dense<0.000000e+00> : vector<8x1024xf32>
    %5 = tpu.matmul %3, %4, %cst {dimension_numbers = #tpu.dot_dimension_numbers<[1], [0], [0], [1], [0, 0, 1, 1], [], []>} : vector<8x1024xbf16>, vector<1024x1024xbf16>, vector<8x1024xf32> -> vector<8x1024xf32>
    %c0_4 = arith.constant 0 : index
    %c0_5 = arith.constant 0 : index
    %6 = vector.load %arg5[%c0_4, %c0_5] : memref<1x1024xf32, #tpu.memory_space<vmem>>, vector<1x1024xf32>
    %7 = vector.broadcast %6 : vector<1x1024xf32> to vector<8x1024xf32>
    %8 = arith.addf %5, %7 : vector<8x1024xf32>
    %c0_6 = arith.constant 0 : index
    %c0_7 = arith.constant 0 : index
    %9 = vector.load %arg6[%c0_6, %c0_7] : memref<8x1024xf32, #tpu.memory_space<vmem>>, vector<8x1024xf32>
    tpu.vector_store %arg6[%c0_6, %c0_7], %8 {strides = array<i32>} : memref<8x1024xf32, #tpu.memory_space<vmem>>, vector<8x1024xf32>,
    return
  }
  func.func @transform_0(%arg0: i32) -> (i32, i32) {
    %c0_i32 = arith.constant 0 : i32
    %c0_i32_0 = arith.constant 0 : i32
    %c0_i32_1 = arith.constant 0 : i32
    return %c0_i32, %c0_i32_0 : i32, i32
  }
  func.func @transform_1(%arg0: i32) -> (i32, i32) {
    %c0_i32 = arith.constant 0 : i32
    %c0_i32_0 = arith.constant 0 : i32
    %c0_i32_1 = arith.constant 0 : i32
    return %c0_i32, %c0_i32_0 : i32, i32
  }
  func.func @transform_2(%arg0: i32) -> (i32, i32) {
    %c0_i32 = arith.constant 0 : i32
    %c0_i32_0 = arith.constant 0 : i32
    %c0_i32_1 = arith.constant 0 : i32
    return %c0_i32, %c0_i32_0 : i32, i32
  }
  func.func @transform_3(%arg0: i32) -> (i32, i32) {
    %c0_i32 = arith.constant 0 : i32
    %c0_i32_0 = arith.constant 0 : i32
    return %c0_i32, %arg0 : i32, i32
  }
  func.func @transform_4(%arg0: i32) -> (i32, i32) {
    %c0_i32 = arith.constant 0 : i32
    %c0_i32_0 = arith.constant 0 : i32
    return %c0_i32, %arg0 : i32, i32
  }
  func.func @transform_5(%arg0: i32) -> (i32, i32) {
    %c0_i32 = arith.constant 0 : i32
    %c0_i32_0 = arith.constant 0 : i32
    return %c0_i32, %arg0 : i32, i32
  }
}

module attributes {stable_mosaic.version = 11 : i64} {
  func.func @log_softmax_kernel(%arg0: i32, %arg1: memref<8x4096xf32, #tpu.memory_space<vmem>>, %arg2: memref<8x4096xf32, #tpu.memory_space<vmem>>) attributes {dimension_semantics = [#tpu.dimension_semantics<arbitrary>], iteration_bounds = array<i64: 1>, scalar_prefetch = 0 : i64, scratch_operands = 0 : i64, tpu.core_type = #tpu.core_type<tc>, window_params = [{pipeline_mode = #tpu.pipeline_mode<synchronous>, transform_indices = @transform_0, window_bounds = array<i64: 8, 4096>}, {pipeline_mode = #tpu.pipeline_mode<synchronous>, transform_indices = @transform_1, window_bounds = array<i64: 8, 4096>}]} {
    %c0 = arith.constant 0 : index
    %c0_0 = arith.constant 0 : index
    %0 = vector.load %arg1[%c0, %c0_0] : memref<8x4096xf32, #tpu.memory_space<vmem>>, vector<8x4096xf32>
    %cst = arith.constant dense<0xFF800000> : vector<8xf32>
    %1 = vector.multi_reduction <maximumf>, %0, %cst [1] : vector<8x4096xf32> to vector<8xf32>
    %2 = vector.shape_cast %1 : vector<8xf32> to vector<8x1xf32>
    %3 = vector.broadcast %2 : vector<8x1xf32> to vector<8x4096xf32>
    %4 = arith.subf %0, %3 : vector<8x4096xf32>
    %5 = math.exp %4 : vector<8x4096xf32>
    %cst_1 = arith.constant dense<0.000000e+00> : vector<8xf32>
    %6 = vector.multi_reduction <add>, %5, %cst_1 [1] : vector<8x4096xf32> to vector<8xf32>
    %7 = vector.shape_cast %6 : vector<8xf32> to vector<8x1xf32>
    %8 = math.log %7 : vector<8x1xf32>
    %9 = vector.broadcast %8 : vector<8x1xf32> to vector<8x4096xf32>
    %10 = arith.subf %4, %9 : vector<8x4096xf32>
    %c0_2 = arith.constant 0 : index
    %c0_3 = arith.constant 0 : index
    %11 = vector.load %arg2[%c0_2, %c0_3] : memref<8x4096xf32, #tpu.memory_space<vmem>>, vector<8x4096xf32>
    tpu.vector_store %arg2[%c0_2, %c0_3], %10 {strides = array<i32>} : memref<8x4096xf32, #tpu.memory_space<vmem>>, vector<8x4096xf32>,
    return
  }
  func.func @transform_0(%arg0: i32) -> (i32, i32) {
    %c0_i32 = arith.constant 0 : i32
    %c0_i32_0 = arith.constant 0 : i32
    %c0_i32_1 = arith.constant 0 : i32
    return %c0_i32, %c0_i32_0 : i32, i32
  }
  func.func @transform_1(%arg0: i32) -> (i32, i32) {
    %c0_i32 = arith.constant 0 : i32
    %c0_i32_0 = arith.constant 0 : i32
    %c0_i32_1 = arith.constant 0 : i32
    return %c0_i32, %c0_i32_0 : i32, i32
  }
}

</mosaic_0001>

<llo_original>
// kernel: model_forward.3
$region0: #{model_forward.3}
  #allocation0 [shape = 'u32[]', space=smem, size = 0x4, offset = 0x4, fixed_abs, tag = 'smem constant byte address 0x4 - core index']
  #allocation1 [shape = 'u32[144,128]{1,0:T(1,128)}', space=vmem, size = 0x12000, scoped, tag = 'internal scratch']
  %s0 = inlined_call_operand.hbm [shape: f32[4,36], index: 0, kind: input, shape index: {}]
  %s1 = inlined_call_operand.vmem [shape: f32[36,128], index: 1, kind: input, shape index: {}]
  %s2 = inlined_call_operand.vmem [shape: f32[4,1], index: 2, kind: input, shape index: {}]
  %s3 = inlined_call_operand.vmem [shape: f32[4,1], index: 3, kind: input, shape index: {}]
  %s4 = inlined_call_operand.vmem [shape: f32[4,1], index: 4, kind: input, shape index: {}]
  %s5 = inlined_call_operand.vmem [shape: f32[4,128], index: 5, kind: output, shape index: {}]
  %s6 = sld [smem:[#allocation0]]
  $region34: #{model_forward.3} parent=0
    _
  %s8 = ssub.s32 1, %s6
  %s9 = scalar_select 0, %s8, %s6
  $region1: #{model_forward.3} parent=0
    #allocation2 [shape = 'u8[2048]{0}', space=vmem, size = 0x800, scoped, tag = 'input window, operand 0, single buffered']
    #allocation3 [shape = 's32[1]{0}', space=sflag, size = 0x4, scoped, tag = 'scoped memory for model_forward.3']
    %10 = vsyncpa [#allocation3], 0
    // Predicated region
    $region2: #{model_forward.3} parent=1 // pred_check
      _
    $region3: #{model_forward.3} parent=1 // pred_check_branch
      %12 = sbr.rel (0) target = $region5
    $region4: #{model_forward.3} parent=1 // pred_region
      %s14 = ssub.s32 64, 64
      %15 = vsyncadd [#allocation3], %s14
      %s17 = sshll.u32 [#allocation2], 4
      %s18 = int_to_ptr.vmem [resolvable:$true] %s17
      %20 = dma.hbm_to_vmem [thread:$0]  %s0, 64, %s18, [#allocation3]
    $region5: #{model_forward.3} parent=1 // pred_fallthru
      _
    // Predicated region
    $region6: #{model_forward.3} parent=1 // pred_check
      _
    $region7: #{model_forward.3} parent=1 // pred_check_branch
      %22 = sbr.rel (0) target = $region9
    $region8: #{model_forward.3} parent=1 // pred_region
      _
    $region9: #{model_forward.3} parent=1 // pred_fallthru
      _
    // Predicated region
    $region10: #{model_forward.3} parent=1 // pred_check
      _
    $region11: #{model_forward.3} parent=1 // pred_check_branch
      %24 = sbr.rel (0) target = $region13
    $region12: #{model_forward.3} parent=1 // pred_region
      _
    $region13: #{model_forward.3} parent=1 // pred_fallthru
      _
    // Predicated region
    $region14: #{model_forward.3} parent=1 // pred_check
      _
    $region15: #{model_forward.3} parent=1 // pred_check_branch
      %26 = sbr.rel (0) target = $region17
    $region16: #{model_forward.3} parent=1 // pred_region
      _
    $region17: #{model_forward.3} parent=1 // pred_fallthru
      _
    // Predicated region
    $region18: #{model_forward.3} parent=1 // pred_check
      _
    $region19: #{model_forward.3} parent=1 // pred_check_branch
      %28 = sbr.rel (0) target = $region21
    $region20: #{model_forward.3} parent=1 // pred_region
      _
    $region21: #{model_forward.3} parent=1 // pred_fallthru
      _
    // Predicated region
    $region22: #{model_forward.3} parent=1 // pred_check
      _
    $region23: #{model_forward.3} parent=1 // pred_check_branch
      %30 = sbr.rel (0) target = $region25
    $region24: #{model_forward.3} parent=1 // pred_region
      %31 = dma.done [#allocation3], 64
    $region25: #{model_forward.3} parent=1 // pred_fallthru
      _
    %v32 = vld [vmem:[#allocation2] sm:$0xf]
    %v33 = vld [vmem:[%s1] sm:$0xff]
    %v34 = vld [vmem:[%s1 + $0x8] sm:$0xff]
    %v35 = vld [vmem:[%s1 + $0x10] sm:$0xff]
    %v36 = vld [vmem:[%s1 + $0x18] sm:$0xff]
    %v37 = vld [vmem:[%s1 + $0x20] sm:$0xf]
    %v38 = vld [vmem:[%s2] sm:$0xf]
    %40 = vset.pattern.permute.xlu0 0
    %41 = vperm.xlu0 %40, %v38
    %v42 = vpop.permute.xlu0 %41
    %vm44 = vcmask 293888
    %v46 = vsel %vm44, %v32, 0
    %vm48 = vcmask 1043456
    %v50 = vsel %vm48, %v37, 0
    %52 = vmatprep.subr.mxu0 0.0
    %53 = vmatpush1.msra.mxu0 0.0
    %54 = vmatprep.subr.mxu0 0.0
    %55 = vmatpush1.msra.mxu0 0.0
    %56 = vmatprep.subr.mxu0 0.0
    %57 = vmatpush1.msra.mxu0 0.0
    %58 = vmatprep.subr.mxu0 0.0
    %59 = vmatpush1.msra.mxu0 0.0
    %60 = vmatprep.subr.mxu0 0.0
    %61 = vmatpush1.msra.mxu0 0.0
    %62 = vmatprep.subr.mxu0 0.0
    %63 = vmatpush1.msra.mxu0 0.0
    %64 = vmatprep.subr.mxu0 0.0
    %65 = vmatpush1.msra.mxu0 0.0
    %66 = vmatprep.subr.mxu0 0.0
    %67 = vmatpush1.msra.mxu0 0.0
    %68 = vmatprep.subr.mxu0 0.0
    %69 = vmatpush1.msra.mxu0 0.0
    %70 = vmatprep.subr.mxu0 0.0
    %71 = vmatpush1.msra.mxu0 0.0
    %72 = vmatprep.subr.mxu0 0.0
    %73 = vmatpush1.msra.mxu0 0.0
    %74 = vmatprep.subr.mxu0 0.0
    %75 = vmatpush1.msra.mxu0 %v50
    %76 = vmatprep.subr.mxu0 0.0
    %77 = vmatpush1.msra.mxu0 %v36
    %78 = vmatprep.subr.mxu0 0.0
    %79 = vmatpush1.msra.mxu0 %v35
    %80 = vmatprep.subr.mxu0 0.0
    %81 = vmatpush1.msra.mxu0 %v34
    %82 = vmatprep.subr.mxu0 0.0
    %83 = vmatpush1.msra.mxu0 %v33
    %84 = vmatprep.subr.mxu0 0.0
    %85 = vmatpush2.msra.mxu0 0.0
    %86 = vmatprep.subr.mxu0 0.0
    %87 = vmatpush2.msra.mxu0 0.0
    %88 = vmatprep.subr.mxu0 0.0
    %89 = vmatpush2.msra.mxu0 0.0
    %90 = vmatprep.subr.mxu0 0.0
    %91 = vmatpush2.msra.mxu0 0.0
    %92 = vmatprep.subr.mxu0 0.0
    %93 = vmatpush2.msra.mxu0 0.0
    %94 = vmatprep.subr.mxu0 0.0
    %95 = vmatpush2.msra.mxu0 0.0
    %96 = vmatprep.subr.mxu0 0.0
    %97 = vmatpush2.msra.mxu0 0.0
    %98 = vmatprep.subr.mxu0 0.0
    %99 = vmatpush2.msra.mxu0 0.0
    %100 = vmatprep.subr.mxu0 0.0
    %101 = vmatpush2.msra.mxu0 0.0
    %102 = vmatprep.subr.mxu0 0.0
    %103 = vmatpush2.msra.mxu0 0.0
    %104 = vmatprep.subr.mxu0 0.0
    %105 = vmatpush2.msra.mxu0 0.0
    %106 = vmatprep.subr.mxu0 0.0
    %107 = vmatpush2.msra.mxu0 0.0
    %108 = vmatprep.subr.mxu0 0.0
    %109 = vmatpush2.msra.mxu0 0.0
    %110 = vmatprep.subr.mxu0 0.0
    %111 = vmatpush2.msra.mxu0 0.0
    %112 = vmatprep.subr.mxu0 0.0
    %113 = vmatpush2.msra.mxu0 0.0
    %114 = vmatprep.subr.mxu0 0.0
    %115 = vmatpush2.msra.mxu0 0.0
    %116 = vmatprep.mubr.f32.mxu0 0.0
    %117 = vmatmul.mubr.f32.gmra.mxu0 %v46
    %v118 = vpop.f32.mrf.mxu0
    %v119 = vadd.f32 %v42, %v118
    %v120 = vpop.f32.mrf.mxu0
    %121 = vdwg.mxu0
    %v122 = vmax.f32 %v119, 0.0
    %v123 = vld [vmem:[%s3] sm:$0xf]
    %125 = vset.pattern.permute.xlu0 0
    %126 = vperm.xlu0 %125, %v123
    %v127 = vpop.permute.xlu0 %126
    %v129 = vmul.f32 %v122, %v127
    %v130 = vld [vmem:[%s4] sm:$0xf]
    %132 = vset.pattern.permute.xlu0 0
    %133 = vperm.xlu0 %132, %v130
    %v134 = vpop.permute.xlu0 %133
    %v136 = vadd.f32 %v129, %v134
    %137 = vst [vmem:[%s5] sm:$0xf] %v136
    // Predicated region
    $region26: #{model_forward.3} parent=1 // pred_check
      _
    $region27: #{model_forward.3} parent=1 // pred_check_branch
      %139 = sbr.rel (0) target = $region29
    $region28: #{model_forward.3} parent=1 // pred_region
      _
    $region29: #{model_forward.3} parent=1 // pred_fallthru
      _
    // Predicated region
    $region30: #{model_forward.3} parent=1 // pred_check
      _
    $region31: #{model_forward.3} parent=1 // pred_check_branch
      %141 = sbr.rel (0) target = $region33
    $region32: #{model_forward.3} parent=1 // pred_region
      _
    $region33: #{model_forward.3} parent=1 // pred_fallthru
      _
    %142 = vsyncpa [#allocation3], 1

// kernel: model_forward.5
$region0: #{model_forward.5}
  #allocation0 [shape = 'u32[]', space=smem, size = 0x4, offset = 0x4, fixed_abs, tag = 'smem constant byte address 0x4 - core index']
  #allocation1 [shape = 'u32[144,128]{1,0:T(1,128)}', space=vmem, size = 0x12000, scoped, tag = 'internal scratch']
  %s0 = inlined_call_operand.vmem [shape: f32[8,4096], index: 0, kind: input, shape index: {}]
  %s1 = inlined_call_operand.vmem [shape: f32[8,4096], index: 1, kind: output, shape index: {}]
  %s2 = sld [smem:[#allocation0]]
  $region14: #{model_forward.5} parent=0
    _
  %s4 = ssub.s32 1, %s2
  %s5 = scalar_select 0, %s4, %s2
  // Predicated region
  $region2: #{model_forward.5} parent=0 // pred_check
    _
  $region3: #{model_forward.5} parent=0 // pred_check_branch
    %7 = sbr.rel (0) target = $region5
  $region4: #{model_forward.5} parent=0 // pred_region
    _
  $region5: #{model_forward.5} parent=0 // pred_fallthru
    _
  %v8 = vld [vmem:[%s0] sm:$0xff]
  %v9 = vld [vmem:[%s0 + $0x8] sm:$0xff]
  %v10 = vld [vmem:[%s0 + $0x10] sm:$0xff]
  %v11 = vld [vmem:[%s0 + $0x18] sm:$0xff]
  %v12 = vld [vmem:[%s0 + $0x20] sm:$0xff]
  %v13 = vld [vmem:[%s0 + $0x28] sm:$0xff]
  %v14 = vld [vmem:[%s0 + $0x30] sm:$0xff]
  %v15 = vld [vmem:[%s0 + $0x38] sm:$0xff]
  %v16 = vld [vmem:[%s0 + $0x40] sm:$0xff]
  %v17 = vld [vmem:[%s0 + $0x48] sm:$0xff]
  %v18 = vld [vmem:[%s0 + $0x50] sm:$0xff]
  %v19 = vld [vmem:[%s0 + $0x58] sm:$0xff]
  %v20 = vld [vmem:[%s0 + $0x60] sm:$0xff]
  %v21 = vld [vmem:[%s0 + $0x68] sm:$0xff]
  %v22 = vld [vmem:[%s0 + $0x70] sm:$0xff]
  %v23 = vld [vmem:[%s0 + $0x78] sm:$0xff]
  %v24 = vld [vmem:[%s0 + $0x80] sm:$0xff]
  %v25 = vld [vmem:[%s0 + $0x88] sm:$0xff]
  %v26 = vld [vmem:[%s0 + $0x90] sm:$0xff]
  %v27 = vld [vmem:[%s0 + $0x98] sm:$0xff]
  %v28 = vld [vmem:[%s0 + $0xa0] sm:$0xff]
  %v29 = vld [vmem:[%s0 + $0xa8] sm:$0xff]
  %v30 = vld [vmem:[%s0 + $0xb0] sm:$0xff]
  %v31 = vld [vmem:[%s0 + $0xb8] sm:$0xff]
  %v32 = vld [vmem:[%s0 + $0xc0] sm:$0xff]
  %v33 = vld [vmem:[%s0 + $0xc8] sm:$0xff]
  %v34 = vld [vmem:[%s0 + $0xd0] sm:$0xff]
  %v35 = vld [vmem:[%s0 + $0xd8] sm:$0xff]
  %v36 = vld [vmem:[%s0 + $0xe0] sm:$0xff]
  %v37 = vld [vmem:[%s0 + $0xe8] sm:$0xff]
  %v38 = vld [vmem:[%s0 + $0xf0] sm:$0xff]
  %v39 = vld [vmem:[%s0 + $0xf8] sm:$0xff]
  %v40 = vmax.f32 %v8, %v12
  %v41 = vmax.f32 %v9, %v13
  %v42 = vmax.f32 %v10, %v14
  %v43 = vmax.f32 %v11, %v15
  %v44 = vmax.f32 %v40, %v16
  %v45 = vmax.f32 %v41, %v17
  %v46 = vmax.f32 %v42, %v18
  %v47 = vmax.f32 %v43, %v19
  %v48 = vmax.f32 %v44, %v20
  %v49 = vmax.f32 %v45, %v21
  %v50 = vmax.f32 %v46, %v22
  %v51 = vmax.f32 %v47, %v23
  %v52 = vmax.f32 %v48, %v24
  %v53 = vmax.f32 %v49, %v25
  %v54 = vmax.f32 %v50, %v26
  %v55 = vmax.f32 %v51, %v27
  %v56 = vmax.f32 %v52, %v28
  %v57 = vmax.f32 %v53, %v29
  %v58 = vmax.f32 %v54, %v30
  %v59 = vmax.f32 %v55, %v31
  %v60 = vmax.f32 %v56, %v32
  %v61 = vmax.f32 %v57, %v33
  %v62 = vmax.f32 %v58, %v34
  %v63 = vmax.f32 %v59, %v35
  %v64 = vmax.f32 %v60, %v36
  %v65 = vmax.f32 %v61, %v37
  %v66 = vmax.f32 %v62, %v38
  %v67 = vmax.f32 %v63, %v39
  %v68 = vmax.f32 %v64, %v65
  %v69 = vmax.f32 %v66, %v67
  %v70 = vmax.f32 %v68, %v69
  %71 = vmax.xlane.f32.xlu0 %v70
  %v72 = vpop.xlane.xlu0 %71
  %v73 = vsub.f32 %v8, %v72
  %v74 = vsub.f32 %v9, %v72
  %v75 = vsub.f32 %v10, %v72
  %v76 = vsub.f32 %v11, %v72
  %v77 = vsub.f32 %v12, %v72
  %v78 = vsub.f32 %v13, %v72
  %v79 = vsub.f32 %v14, %v72
  %v80 = vsub.f32 %v15, %v72
  %v81 = vsub.f32 %v16, %v72
  %v82 = vsub.f32 %v17, %v72
  %v83 = vsub.f32 %v18, %v72
  %v84 = vsub.f32 %v19, %v72
  %v85 = vsub.f32 %v20, %v72
  %v86 = vsub.f32 %v21, %v72
  %v87 = vsub.f32 %v22, %v72
  %v88 = vsub.f32 %v23, %v72
  %v89 = vsub.f32 %v24, %v72
  %v90 = vsub.f32 %v25, %v72
  %v91 = vsub.f32 %v26, %v72
  %v92 = vsub.f32 %v27, %v72
  %v93 = vsub.f32 %v28, %v72
  %v94 = vsub.f32 %v29, %v72
  %v95 = vsub.f32 %v30, %v72
  %v96 = vsub.f32 %v31, %v72
  %v97 = vsub.f32 %v32, %v72
  %v98 = vsub.f32 %v33, %v72
  %v99 = vsub.f32 %v34, %v72
  %v100 = vsub.f32 %v35, %v72
  %v101 = vsub.f32 %v36, %v72
  %v102 = vsub.f32 %v37, %v72
  %v103 = vsub.f32 %v38, %v72
  %v104 = vsub.f32 %v39, %v72
  %v105 = vmul.f32 %v73, 1.442695
  %v106 = vpow.pop %v105
  %v107 = vmul.f32 %v74, 1.442695
  %v108 = vpow.pop %v107
  %v109 = vmul.f32 %v75, 1.442695
  %v110 = vpow.pop %v109
  %v111 = vmul.f32 %v76, 1.442695
  %v112 = vpow.pop %v111
  %v113 = vmul.f32 %v77, 1.442695
  %v114 = vpow.pop %v113
  %v115 = vmul.f32 %v78, 1.442695
  %v116 = vpow.pop %v115
  %v117 = vmul.f32 %v79, 1.442695
  %v118 = vpow.pop %v117
  %v119 = vmul.f32 %v80, 1.442695
  %v120 = vpow.pop %v119
  %v121 = vmul.f32 %v81, 1.442695
  %v122 = vpow.pop %v121
  %v123 = vmul.f32 %v82, 1.442695
  %v124 = vpow.pop %v123
  %v125 = vmul.f32 %v83, 1.442695
  %v126 = vpow.pop %v125
  %v127 = vmul.f32 %v84, 1.442695
  %v128 = vpow.pop %v127
  %v129 = vmul.f32 %v85, 1.442695
  %v130 = vpow.pop %v129
  %v131 = vmul.f32 %v86, 1.442695
  %v132 = vpow.pop %v131
  %v133 = vmul.f32 %v87, 1.442695
  %v134 = vpow.pop %v133
  %v135 = vmul.f32 %v88, 1.442695
  %v136 = vpow.pop %v135
  %v137 = vmul.f32 %v89, 1.442695
  %v138 = vpow.pop %v137
  %v139 = vmul.f32 %v90, 1.442695
  %v140 = vpow.pop %v139
  %v141 = vmul.f32 %v91, 1.442695
  %v142 = vpow.pop %v141
  %v143 = vmul.f32 %v92, 1.442695
  %v144 = vpow.pop %v143
  %v145 = vmul.f32 %v93, 1.442695
  %v146 = vpow.pop %v145
  %v147 = vmul.f32 %v94, 1.442695
  %v148 = vpow.pop %v147
  %v149 = vmul.f32 %v95, 1.442695
  %v150 = vpow.pop %v149
  %v151 = vmul.f32 %v96, 1.442695
  %v152 = vpow.pop %v151
  %v153 = vmul.f32 %v97, 1.442695
  %v154 = vpow.pop %v153
  %v155 = vmul.f32 %v98, 1.442695
  %v156 = vpow.pop %v155
  %v157 = vmul.f32 %v99, 1.442695
  %v158 = vpow.pop %v157
  %v159 = vmul.f32 %v100, 1.442695
  %v160 = vpow.pop %v159
  %v161 = vmul.f32 %v101, 1.442695
  %v162 = vpow.pop %v161
  %v163 = vmul.f32 %v102, 1.442695
  %v164 = vpow.pop %v163
  %v165 = vmul.f32 %v103, 1.442695
  %v166 = vpow.pop %v165
  %v167 = vmul.f32 %v104, 1.442695
  %v168 = vpow.pop %v167
  %v169 = vadd.f32 %v106, %v108
  %v170 = vadd.f32 %v169, %v110
  %v171 = vadd.f32 %v170, %v112
  %v172 = vadd.f32 %v171, %v114
  %v173 = vadd.f32 %v172, %v116
  %v174 = vadd.f32 %v173, %v118
  %v175 = vadd.f32 %v174, %v120
  %v176 = vadd.f32 %v175, %v122
  %v177 = vadd.f32 %v176, %v124
  %v178 = vadd.f32 %v177, %v126
  %v179 = vadd.f32 %v178, %v128
  %v180 = vadd.f32 %v179, %v130
  %v181 = vadd.f32 %v180, %v132
  %v182 = vadd.f32 %v181, %v134
  %v183 = vadd.f32 %v182, %v136
  %v184 = vadd.f32 %v183, %v138
  %v185 = vadd.f32 %v184, %v140
  %v186 = vadd.f32 %v185, %v142
  %v187 = vadd.f32 %v186, %v144
  %v188 = vadd.f32 %v187, %v146
  %v189 = vadd.f32 %v188, %v148
  %v190 = vadd.f32 %v189, %v150
  %v191 = vadd.f32 %v190, %v152
  %v192 = vadd.f32 %v191, %v154
  %v193 = vadd.f32 %v192, %v156
  %v194 = vadd.f32 %v193, %v158
  %v195 = vadd.f32 %v194, %v160
  %v196 = vadd.f32 %v195, %v162
  %v197 = vadd.f32 %v196, %v164
  %v198 = vadd.f32 %v197, %v166
  %v199 = vadd.f32 %v198, %v168
  %200 = vadd.xlane.f32.xlu0 %v199
  %v201 = vpop.xlane.xlu0 %200
  %v202 = vlog2.pop %v201
  %v203 = vmul.f32 %v202, 0.6931472
  %v204 = vsub.f32 %v73, %v203
  %v205 = vsub.f32 %v74, %v203
  %v206 = vsub.f32 %v75, %v203
  %v207 = vsub.f32 %v76, %v203
  %v208 = vsub.f32 %v77, %v203
  %v209 = vsub.f32 %v78, %v203
  %v210 = vsub.f32 %v79, %v203
  %v211 = vsub.f32 %v80, %v203
  %v212 = vsub.f32 %v81, %v203
  %v213 = vsub.f32 %v82, %v203
  %v214 = vsub.f32 %v83, %v203
  %v215 = vsub.f32 %v84, %v203
  %v216 = vsub.f32 %v85, %v203
  %v217 = vsub.f32 %v86, %v203
  %v218 = vsub.f32 %v87, %v203
  %v219 = vsub.f32 %v88, %v203
  %v220 = vsub.f32 %v89, %v203
  %v221 = vsub.f32 %v90, %v203
  %v222 = vsub.f32 %v91, %v203
  %v223 = vsub.f32 %v92, %v203
  %v224 = vsub.f32 %v93, %v203
  %v225 = vsub.f32 %v94, %v203
  %v226 = vsub.f32 %v95, %v203
  %v227 = vsub.f32 %v96, %v203
  %v228 = vsub.f32 %v97, %v203
  %v229 = vsub.f32 %v98, %v203
  %v230 = vsub.f32 %v99, %v203
  %v231 = vsub.f32 %v100, %v203
  %v232 = vsub.f32 %v101, %v203
  %v233 = vsub.f32 %v102, %v203
  %v234 = vsub.f32 %v103, %v203
  %v235 = vsub.f32 %v104, %v203
  %236 = vst [vmem:[%s1] sm:$0xff] %v204
  %237 = vst [vmem:[%s1 + $0x8] sm:$0xff] %v205
  %238 = vst [vmem:[%s1 + $0x10] sm:$0xff] %v206
  %239 = vst [vmem:[%s1 + $0x18] sm:$0xff] %v207
  %240 = vst [vmem:[%s1 + $0x20] sm:$0xff] %v208
  %241 = vst [vmem:[%s1 + $0x28] sm:$0xff] %v209
  %242 = vst [vmem:[%s1 + $0x30] sm:$0xff] %v210
  %243 = vst [vmem:[%s1 + $0x38] sm:$0xff] %v211
  %244 = vst [vmem:[%s1 + $0x40] sm:$0xff] %v212
  %245 = vst [vmem:[%s1 + $0x48] sm:$0xff] %v213
  %246 = vst [vmem:[%s1 + $0x50] sm:$0xff] %v214
  %247 = vst [vmem:[%s1 + $0x58] sm:$0xff] %v215
  %248 = vst [vmem:[%s1 + $0x60] sm:$0xff] %v216
  %249 = vst [vmem:[%s1 + $0x68] sm:$0xff] %v217
  %250 = vst [vmem:[%s1 + $0x70] sm:$0xff] %v218
  %251 = vst [vmem:[%s1 + $0x78] sm:$0xff] %v219
  %252 = vst [vmem:[%s1 + $0x80] sm:$0xff] %v220
  %253 = vst [vmem:[%s1 + $0x88] sm:$0xff] %v221
  %254 = vst [vmem:[%s1 + $0x90] sm:$0xff] %v222
  %255 = vst [vmem:[%s1 + $0x98] sm:$0xff] %v223
  %256 = vst [vmem:[%s1 + $0xa0] sm:$0xff] %v224
  %257 = vst [vmem:[%s1 + $0xa8] sm:$0xff] %v225
  %258 = vst [vmem:[%s1 + $0xb0] sm:$0xff] %v226
  %259 = vst [vmem:[%s1 + $0xb8] sm:$0xff] %v227
  %260 = vst [vmem:[%s1 + $0xc0] sm:$0xff] %v228
  %261 = vst [vmem:[%s1 + $0xc8] sm:$0xff] %v229
  %262 = vst [vmem:[%s1 + $0xd0] sm:$0xff] %v230
  %263 = vst [vmem:[%s1 + $0xd8] sm:$0xff] %v231
  %264 = vst [vmem:[%s1 + $0xe0] sm:$0xff] %v232
  %265 = vst [vmem:[%s1 + $0xe8] sm:$0xff] %v233
  %266 = vst [vmem:[%s1 + $0xf0] sm:$0xff] %v234
  %267 = vst [vmem:[%s1 + $0xf8] sm:$0xff] %v235
  // Predicated region
  $region6: #{model_forward.5} parent=0 // pred_check
    _
  $region7: #{model_forward.5} parent=0 // pred_check_branch
    %269 = sbr.rel (0) target = $region9
  $region8: #{model_forward.5} parent=0 // pred_region
    _
  $region9: #{model_forward.5} parent=0 // pred_fallthru
    _
  // Predicated region
  $region10: #{model_forward.5} parent=0 // pred_check
    _
  $region11: #{model_forward.5} parent=0 // pred_check_branch
    %271 = sbr.rel (0) target = $region13
  $region12: #{model_forward.5} parent=0 // pred_region
    _
  $region13: #{model_forward.5} parent=0 // pred_fallthru
    _

// kernel: model_forward.4
$region0: #{model_forward.4}
  #allocation0 [shape = 'u32[]', space=smem, size = 0x4, offset = 0x4, fixed_abs, tag = 'smem constant byte address 0x4 - core index']
  #allocation1 [shape = 'u32[144,128]{1,0:T(1,128)}', space=vmem, size = 0x12000, scoped, tag = 'internal scratch']
  #allocation2 [shape = 'bf16[8,1024]{1,0:T(8,128)(2,1)}', space=vmem, size = 0x4000, scoped, tag = 'scratch operand']
  %s0 = inlined_call_operand.vmem [shape: bf16[8,256], index: 0, kind: input, shape index: {}]
  %s1 = inlined_call_operand.hbm [shape: bf16[256,1024], index: 1, kind: input, shape index: {}]
  %s2 = inlined_call_operand.hbm [shape: f32[1,1024], index: 2, kind: input, shape index: {}]
  %s3 = inlined_call_operand.hbm [shape: bf16[1024,4096], index: 3, kind: input, shape index: {}]
  %s4 = inlined_call_operand.hbm [shape: f32[1,4096], index: 4, kind: input, shape index: {}]
  %s5 = inlined_call_operand.vmem [shape: f32[8,4096], index: 5, kind: output, shape index: {}]
  %s6 = sld [smem:[#allocation0]]
  $region73: #{model_forward.4} parent=0
    _
  %s8 = ssub.s32 1, %s6
  %s9 = scalar_select 0, %s8, %s6
  $region1: #{model_forward.4} parent=0
    #allocation3 [shape = 'u8[524288]{0}', space=vmem, size = 0x80000, scoped, tag = 'input window, operand 1, single buffered']
    #allocation4 [shape = 's32[2]{0}', space=sflag, size = 0x8, scoped, tag = 'scoped memory for model_forward.4']
    #allocation5 [shape = 'u8[4096]{0}', space=vmem, size = 0x1000, scoped, tag = 'input window, operand 2, single buffered']
    #allocation6 [shape = 's32[1]{0}', space=sflag, size = 0x4, scoped, tag = 'scoped memory for model_forward.4']
    #allocation7 [shape = 'u8[4194304]{0}', space=vmem, size = 0x400000, scoped, tag = 'input window, operand 3']
    #allocation8 [shape = 'u8[8192]{0}', space=vmem, size = 0x2000, scoped, tag = 'input window, operand 4']
    %10 = vsyncpa [#allocation4], 0
    %11 = vsyncpa [#allocation6], 0
    loop: start=0, step=1, limit=6
    $region2: #{model_forward.4} parent=1 // loop_pre_header
      _
    $region3: #{model_forward.4} parent=1 // loop_header
      %s13 = sphi 0, %s17
      %p14 = scmp.ge.s32.totalorder %s13, 6
      %s21 = sphi 0, %s21
      %s23 = sphi 0, %s21
      %s24 = sphi 0, %s23
      %s38 = sphi 0, %s24
      %s42 = sphi 0, %s42
      %s44 = sphi 0, %s42
      %s45 = sphi 0, %s44
      %s59 = sphi 0, %s45
      %s63 = sphi 0, %s63
      %s65 = sphi 0, %s63
      %s66 = sphi 0, %s65
      %s80 = sphi 0, %s66
      %s86 = sphi 0, %s88
      %s89 = sphi 0, %s86
      %s90 = sphi 0, %s89
      %s106 = sphi 0, %s90
      %s112 = sphi 0, %s114
      %s115 = sphi 0, %s112
      %s116 = sphi 0, %s115
      %s132 = sphi 0, %s116
      %s138 = sphi 0, %s140
      %s141 = sphi 0, %s138
      %s142 = sphi 0, %s141
      %s158 = sphi 0, %s142
    $region4: #{model_forward.4} parent=1 // loop_header_branch
      %16 = sbr.rel (%p14) target = $region8
    $region5: #{model_forward.4} parent=1 // loop_body
      %s18 = ssub.s32 %s13, 1
      %s19 = ssub.s32 %s13, 2
      %s20 = sadd.s32 %s13, 1
      %s22 = sadd.s32 %s21, 1
      %p25 = scmp.eq.s32.totalorder %s13, 3
      %p26 = scmp.ne.s32.totalorder %s21, %s23
      %p27 = scmp.eq.s32.totalorder %s13, 0
      %p28 = por %p26, %p27
      %p29 = scmp.ne.s32.totalorder %s21, %s23
      %p30 = scmp.eq.s32.totalorder %s18, 3
      %p31 = por %p29, %p30
      %p32 = scmp.ne.s32.totalorder %s23, %s24
      %p33 = scmp.eq.s32.totalorder %s18, 0
      %p34 = por %p32, %p33
      %p35 = scmp.ne.s32.totalorder %s23, %s24
      %p36 = scmp.eq.s32.totalorder %s19, 3
      %p37 = por %p35, %p36
      %p39 = scmp.ne.s32.totalorder %s24, %s38
      %p40 = scmp.eq.s32.totalorder %s19, 0
      %p41 = por %p39, %p40
      %s43 = sadd.s32 %s42, 1
      %p46 = scmp.eq.s32.totalorder %s13, 3
      %p47 = scmp.ne.s32.totalorder %s42, %s44
      %p48 = scmp.eq.s32.totalorder %s13, 0
      %p49 = por %p47, %p48
      %p50 = scmp.ne.s32.totalorder %s42, %s44
      %p51 = scmp.eq.s32.totalorder %s18, 3
      %p52 = por %p50, %p51
      %p53 = scmp.ne.s32.totalorder %s44, %s45
      %p54 = scmp.eq.s32.totalorder %s18, 0
      %p55 = por %p53, %p54
      %p56 = scmp.ne.s32.totalorder %s44, %s45
      %p57 = scmp.eq.s32.totalorder %s19, 3
      %p58 = por %p56, %p57
      %p60 = scmp.ne.s32.totalorder %s45, %s59
      %p61 = scmp.eq.s32.totalorder %s19, 0
      %p62 = por %p60, %p61
      %s64 = sadd.s32 %s63, 1
      %p67 = scmp.eq.s32.totalorder %s13, 3
      %p68 = scmp.ne.s32.totalorder %s63, %s65
      %p69 = scmp.eq.s32.totalorder %s13, 0
      %p70 = por %p68, %p69
      %p71 = scmp.ne.s32.totalorder %s63, %s65
      %p72 = scmp.eq.s32.totalorder %s18, 3
      %p73 = por %p71, %p72
      %p74 = scmp.ne.s32.totalorder %s65, %s66
      %p75 = scmp.eq.s32.totalorder %s18, 0
      %p76 = por %p74, %p75
      %p77 = scmp.ne.s32.totalorder %s65, %s66
      %p78 = scmp.eq.s32.totalorder %s19, 3
      %p79 = por %p77, %p78
      %p81 = scmp.ne.s32.totalorder %s66, %s80
      %p82 = scmp.eq.s32.totalorder %s19, 0
      %p83 = por %p81, %p82
      %s84 = ssub.s32 %s13, %s20
      %p85 = scmp.eq.s32.totalorder %s84, 0
      %s87 = sadd.s32 %s86, 1
      %s88 = scalar_select %p85, %s86, %s87
      %p91 = pneg %p85
      %p92 = scmp.eq.s32.totalorder %s13, 3
      %p93 = por %p91, %p92
      %p94 = scmp.ne.s32.totalorder %s86, %s89
      %p95 = scmp.eq.s32.totalorder %s13, 0
      %p96 = por %p94, %p95
      %p97 = scmp.ne.s32.totalorder %s86, %s89
      %p98 = scmp.eq.s32.totalorder %s18, 3
      %p99 = por %p97, %p98
      %p100 = scmp.ne.s32.totalorder %s89, %s90
      %p101 = scmp.eq.s32.totalorder %s18, 0
      %p102 = por %p100, %p101
      %p103 = scmp.ne.s32.totalorder %s89, %s90
      %p104 = scmp.eq.s32.totalorder %s19, 3
      %p105 = por %p103, %p104
      %p107 = scmp.ne.s32.totalorder %s90, %s106
      %p108 = scmp.eq.s32.totalorder %s19, 0
      %p109 = por %p107, %p108
      %s110 = ssub.s32 %s13, %s20
      %p111 = scmp.eq.s32.totalorder %s110, 0
      %s113 = sadd.s32 %s112, 1
      %s114 = scalar_select %p111, %s112, %s113
      %p117 = pneg %p111
      %p118 = scmp.eq.s32.totalorder %s13, 3
      %p119 = por %p117, %p118
      %p120 = scmp.ne.s32.totalorder %s112, %s115
      %p121 = scmp.eq.s32.totalorder %s13, 0
      %p122 = por %p120, %p121
      %p123 = scmp.ne.s32.totalorder %s112, %s115
      %p124 = scmp.eq.s32.totalorder %s18, 3
      %p125 = por %p123, %p124
      %p126 = scmp.ne.s32.totalorder %s115, %s116
      %p127 = scmp.eq.s32.totalorder %s18, 0
      %p128 = por %p126, %p127
      %p129 = scmp.ne.s32.totalorder %s115, %s116
      %p130 = scmp.eq.s32.totalorder %s19, 3
      %p131 = por %p129, %p130
      %p133 = scmp.ne.s32.totalorder %s116, %s132
      %p134 = scmp.eq.s32.totalorder %s19, 0
      %p135 = por %p133, %p134
      %s136 = ssub.s32 %s13, %s20
      %p137 = scmp.eq.s32.totalorder %s136, 0
      %s139 = sadd.s32 %s138, 1
      %s140 = scalar_select %p137, %s138, %s139
      %p143 = pneg %p137
      %p144 = scmp.eq.s32.totalorder %s13, 3
      %p145 = por %p143, %p144
      %p146 = scmp.ne.s32.totalorder %s138, %s141
      %p147 = scmp.eq.s32.totalorder %s13, 0
      %p148 = por %p146, %p147
      %p149 = scmp.ne.s32.totalorder %s138, %s141
      %p150 = scmp.eq.s32.totalorder %s18, 3
      %p151 = por %p149, %p150
      %p152 = scmp.ne.s32.totalorder %s141, %s142
      %p153 = scmp.eq.s32.totalorder %s18, 0
      %p154 = por %p152, %p153
      %p155 = scmp.ne.s32.totalorder %s141, %s142
      %p156 = scmp.eq.s32.totalorder %s19, 3
      %p157 = por %p155, %p156
      %p159 = scmp.ne.s32.totalorder %s142, %s158
      %p160 = scmp.eq.s32.totalorder %s19, 0
      %p161 = por %p159, %p160
      %p162 = scmp.le.s32.totalorder 1, %s13
      %p163 = scmp.lt.s32.totalorder %s13, 5
      %p164 = pnand %p162, %p163
      %p165 = pneg %p164
      // Predicated region
      $region9: #{model_forward.4} parent=5 // pred_check
        _
      $region10: #{model_forward.4} parent=5 // pred_check_branch
        %167 = sbr.rel (%p164) target = $region12
      $region11: #{model_forward.4} parent=5 // pred_region
        %s168 = ssub.s32 %s13, 1
        // Predicated region
        $region13: #{model_forward.4} parent=11 // pred_check
          %p169 = pneg %p34
        $region14: #{model_forward.4} parent=11 // pred_check_branch
          %171 = sbr.rel (%p169) target = $region16
        $region15: #{model_forward.4} parent=11 // pred_region
          _
        $region16: #{model_forward.4} parent=11 // pred_fallthru
          _
        // Predicated region
        $region17: #{model_forward.4} parent=11 // pred_check
          %p172 = pneg %p55
        $region18: #{model_forward.4} parent=11 // pred_check_branch
          %174 = sbr.rel (%p172) target = $region20
        $region19: #{model_forward.4} parent=11 // pred_region
          %s176 = ssub.s32 16384, 16384
          %177 = vsyncadd [#allocation4], %s176
          %s178 = sshll.u32 [#allocation3], 4
          %s179 = int_to_ptr.vmem [resolvable:$true] %s178
          %184 = dma.hbm_to_vmem [thread:$0]  %s1, 16384, %s179, [#allocation4], 512, 512, 32
        $region20: #{model_forward.4} parent=11 // pred_fallthru
          _
        // Predicated region
        $region21: #{model_forward.4} parent=11 // pred_check
          %p185 = pneg %p76
        $region22: #{model_forward.4} parent=11 // pred_check_branch
          %187 = sbr.rel (%p185) target = $region24
        $region23: #{model_forward.4} parent=11 // pred_region
          %s189 = ssub.s32 128, 128
          %190 = vsyncadd [#allocation6], %s189
          %s192 = sshll.u32 [#allocation5], 4
          %s193 = int_to_ptr.vmem [resolvable:$true] %s192
          %195 = dma.hbm_to_vmem [thread:$0]  %s2, 128, %s193, [#allocation6]
        $region24: #{model_forward.4} parent=11 // pred_fallthru
          _
      $region12: #{model_forward.4} parent=5 // pred_fallthru
        _
      %p196 = scmp.lt.s32.totalorder %s13, 4
      // Predicated region
      $region25: #{model_forward.4} parent=5 // pred_check
        %p197 = pneg %p196
      $region26: #{model_forward.4} parent=5 // pred_check_branch
        %199 = sbr.rel (%p197) target = $region28
      $region27: #{model_forward.4} parent=5 // pred_region
        // Predicated region
        $region29: #{model_forward.4} parent=27 // pred_check
          %p200 = pneg %p96
        $region30: #{model_forward.4} parent=27 // pred_check_branch
          %202 = sbr.rel (%p200) target = $region32
        $region31: #{model_forward.4} parent=27 // pred_region
          %s203 = sand.u32 %s13, 1
          %s204 = scalar_lea.sflag [#allocation4], %s203
          %s205 = sand.u32 %s86, 1
          %s206 = smul.addr %s205, 4096
          %s207 = scalar_lea.vmem [#allocation7], %s206
          %s208 = smul.u32 8, %s13
          %s210 = ssub.s32 65536, 65536
          %211 = vsyncadd %s204, %s210
          %s212 = smul.addr %s208, 64
          %s213 = scalar_lea.hbm %s3, %s212
          %s214 = sshll.u32 %s207, 4
          %s215 = int_to_ptr.vmem [resolvable:$true] %s214
          %220 = dma.hbm_to_vmem [thread:$0]  %s213, 65536, %s215, %s204, 2048, 512, 32
        $region32: #{model_forward.4} parent=27 // pred_fallthru
          _
        // Predicated region
        $region33: #{model_forward.4} parent=27 // pred_check
          %p221 = pneg %p122
        $region34: #{model_forward.4} parent=27 // pred_check_branch
          %223 = sbr.rel (%p221) target = $region36
        $region35: #{model_forward.4} parent=27 // pred_region
          %s224 = sand.u32 %s13, 1
          %s225 = scalar_lea.sflag [#allocation4], %s224
          %s226 = sand.u32 %s112, 1
          %s227 = smul.addr %s226, 8
          %s228 = scalar_lea.vmem [#allocation8], %s227
          %s229 = smul.u32 8, %s13
          %s231 = ssub.s32 128, 128
          %232 = vsyncadd %s225, %s231
          %s233 = smul.addr %s229, 16
          %s234 = scalar_lea.hbm %s4, %s233
          %s236 = sshll.u32 %s228, 4
          %s237 = int_to_ptr.vmem [resolvable:$true] %s236
          %239 = dma.hbm_to_vmem [thread:$0]  %s234, 128, %s237, %s225
        $region36: #{model_forward.4} parent=27 // pred_fallthru
          _
      $region28: #{model_forward.4} parent=5 // pred_fallthru
        _
      %p240 = scmp.le.s32.totalorder 1, %s13
      %p241 = scmp.lt.s32.totalorder %s13, 5
      %p242 = pnand %p240, %p241
      %p243 = pneg %p242
      // Predicated region
      $region37: #{model_forward.4} parent=5 // pred_check
        _
      $region38: #{model_forward.4} parent=5 // pred_check_branch
        %245 = sbr.rel (%p242) target = $region40
      $region39: #{model_forward.4} parent=5 // pred_region
        %s246 = ssub.s32 %s13, 1
        // Predicated region
        $region41: #{model_forward.4} parent=39 // pred_check
          %p247 = pneg %p55
        $region42: #{model_forward.4} parent=39 // pred_check_branch
          %249 = sbr.rel (%p247) target = $region44
        $region43: #{model_forward.4} parent=39 // pred_region
          %250 = dma.done [#allocation4], 16384
        $region44: #{model_forward.4} parent=39 // pred_fallthru
          _
        // Predicated region
        $region45: #{model_forward.4} parent=39 // pred_check
          %p251 = pneg %p76
        $region46: #{model_forward.4} parent=39 // pred_check_branch
          %253 = sbr.rel (%p251) target = $region48
        $region47: #{model_forward.4} parent=39 // pred_region
          %254 = dma.done [#allocation6], 128
        $region48: #{model_forward.4} parent=39 // pred_fallthru
          _
        %s255 = sand.u32 %s18, 1
        %s256 = scalar_lea.sflag [#allocation4], %s255
        %s257 = sand.u32 %s89, 1
        %s258 = smul.addr %s257, 4096
        %s259 = scalar_lea.vmem [#allocation7], %s258
        // Predicated region
        $region49: #{model_forward.4} parent=39 // pred_check
          %p260 = pneg %p102
        $region50: #{model_forward.4} parent=39 // pred_check_branch
          %262 = sbr.rel (%p260) target = $region52
        $region51: #{model_forward.4} parent=39 // pred_region
          %263 = dma.done %s256, 65536
        $region52: #{model_forward.4} parent=39 // pred_fallthru
          _
        %s264 = sand.u32 %s18, 1
        %s265 = scalar_lea.sflag [#allocation4], %s264
        %s266 = sand.u32 %s115, 1
        %s267 = smul.addr %s266, 8
        %s268 = scalar_lea.vmem [#allocation8], %s267
        // Predicated region
        $region53: #{model_forward.4} parent=39 // pred_check
          %p269 = pneg %p128
        $region54: #{model_forward.4} parent=39 // pred_check_branch
          %271 = sbr.rel (%p269) target = $region56
        $region55: #{model_forward.4} parent=39 // pred_region
          %272 = dma.done %s265, 128
        $region56: #{model_forward.4} parent=39 // pred_fallthru
          _
        %p273 = pneg %p34
        %p274 = pneg %p31
        %p275 = pneg %p55
        %p276 = pneg %p52
        %p277 = pneg %p76
        %p278 = pneg %p73
        %s279 = sand.u32 %s18, 1
        %s280 = scalar_lea.sflag [#allocation4], %s279
        %s281 = sand.u32 %s89, 1
        %s282 = smul.addr %s281, 4096
        %s283 = scalar_lea.vmem [#allocation7], %s282
        %p284 = pneg %p102
        %p285 = pneg %p99
        %s286 = sand.u32 %s18, 1
        %s287 = scalar_lea.sflag [#allocation4], %s286
        %s288 = sand.u32 %s115, 1
        %s289 = smul.addr %s288, 8
        %s290 = scalar_lea.vmem [#allocation8], %s289
        %p291 = pneg %p128
        %p292 = pneg %p125
        %p293 = pneg %p154
        %p294 = pneg %p151
        %s295 = smul.u32 8, %s18
        %p296 = scmp.lt.s32.totalorder %s295, 31
        %s297 = scalar_select %p296, %s295, 31
        %s298 = smul.addr %s297, 8
        %s299 = scalar_lea.vmem %s5, %s298
        %s300 = smul.u32 8, %s18
        %s301 = smul.u32 8, %s18
        %s302 = smul.u32 8, %s18
        %p303 = scmp.lt.s32.totalorder %s302, 31
        %s304 = scalar_select %p303, %s302, 31
        %s305 = smul.addr %s304, 8
        %s306 = scalar_lea.vmem %s5, %s305
        %s307 = smul.u32 8, %s18
        %p308 = scmp.eq.s32.totalorder %s18, 0
        // Predicated region
        $region57: #{model_forward.4} parent=39 // pred_check
          %p309 = pneg %p308
        $region58: #{model_forward.4} parent=39 // pred_check_branch
          %311 = sbr.rel (%p309) target = $region60
        $region59: #{model_forward.4} parent=39 // pred_region
          %v312 = vld [vmem:[%s0] sm:$0xff]
          %v313 = vld [vmem:[#allocation3] sm:$0xff]
          %v314 = vld [vmem:[#allocation3 + $0x8] sm:$0xff]
          %v315 = vld [vmem:[#allocation3 + $0x10] sm:$0xff]
          %v316 = vld [vmem:[#allocation3 + $0x18] sm:$0xff]
          %v317 = vld [vmem:[#allocation3 + $0x20] sm:$0xff]
          %v318 = vld [vmem:[#allocation3 + $0x28] sm:$0xff]
          %v319 = vld [vmem:[#allocation3 + $0x30] sm:$0xff]
          %v320 = vld [vmem:[#allocation3 + $0x38] sm:$0xff]
          %v321 = vld [vmem:[#allocation3 + $0x40] sm:$0xff]
          %v322 = vld [vmem:[#allocation3 + $0x48] sm:$0xff]
          %v323 = vld [vmem:[#allocation3 + $0x50] sm:$0xff]
          %v324 = vld [vmem:[#allocation3 + $0x58] sm:$0xff]
          %v325 = vld [vmem:[#allocation3 + $0x60] sm:$0xff]
          %v326 = vld [vmem:[#allocation3 + $0x68] sm:$0xff]
          %v327 = vld [vmem:[#allocation3 + $0x70] sm:$0xff]
          %v328 = vld [vmem:[#allocation3 + $0x78] sm:$0xff]
          %v329 = vld [vmem:[#allocation3 + $0x80] sm:$0xff]
          %v330 = vld [vmem:[#allocation3 + $0x88] sm:$0xff]
          %v331 = vld [vmem:[#allocation3 + $0x90] sm:$0xff]
          %v332 = vld [vmem:[#allocation3 + $0x98] sm:$0xff]
          %v333 = vld [vmem:[#allocation3 + $0xa0] sm:$0xff]
          %v334 = vld [vmem:[#allocation3 + $0xa8] sm:$0xff]
          %v335 = vld [vmem:[#allocation3 + $0xb0] sm:$0xff]
          %v336 = vld [vmem:[#allocation3 + $0xb8] sm:$0xff]
          %v337 = vld [vmem:[#allocation3 + $0xc0] sm:$0xff]
          %v338 = vld [vmem:[#allocation3 + $0xc8] sm:$0xff]
          %v339 = vld [vmem:[#allocation3 + $0xd0] sm:$0xff]
          %v340 = vld [vmem:[#allocation3 + $0xd8] sm:$0xff]
          %v341 = vld [vmem:[#allocation3 + $0xe0] sm:$0xff]
          %v342 = vld [vmem:[#allocation3 + $0xe8] sm:$0xff]
          %v343 = vld [vmem:[#allocation3 + $0xf0] sm:$0xff]
          %v344 = vld [vmem:[#allocation3 + $0xf8] sm:$0xff]
          %v345 = vld [vmem:[#allocation3 + $0x100] sm:$0xff]
          %v346 = vld [vmem:[#allocation3 + $0x108] sm:$0xff]
          %v347 = vld [vmem:[#allocation3 + $0x110] sm:$0xff]
          %v348 = vld [vmem:[#allocation3 + $0x118] sm:$0xff]
          %v349 = vld [vmem:[#allocation3 + $0x120] sm:$0xff]
          %v350 = vld [vmem:[#allocation3 + $0x128] sm:$0xff]
          %v351 = vld [vmem:[#allocation3 + $0x130] sm:$0xff]
          %v352 = vld [vmem:[#allocation3 + $0x138] sm:$0xff]
          %v353 = vld [vmem:[#allocation3 + $0x140] sm:$0xff]
          %v354 = vld [vmem:[#allocation3 + $0x148] sm:$0xff]
          %v355 = vld [vmem:[#allocation3 + $0x150] sm:$0xff]
          %v356 = vld [vmem:[#allocation3 + $0x158] sm:$0xff]
          %v357 = vld [vmem:[#allocation3 + $0x160] sm:$0xff]
          %v358 = vld [vmem:[#allocation3 + $0x168] sm:$0xff]
          %v359 = vld [vmem:[#allocation3 + $0x170] sm:$0xff]
          %v360 = vld [vmem:[#allocation3 + $0x178] sm:$0xff]
          %v361 = vld [vmem:[#allocation3 + $0x180] sm:$0xff]
          %v362 = vld [vmem:[#allocation3 + $0x188] sm:$0xff]
          %v363 = vld [vmem:[#allocation3 + $0x190] sm:$0xff]
          %v364 = vld [vmem:[#allocation3 + $0x198] sm:$0xff]
          %v365 = vld [vmem:[#allocation3 + $0x1a0] sm:$0xff]
          %v366 = vld [vmem:[#allocation3 + $0x1a8] sm:$0xff]
          %v367 = vld [vmem:[#allocation3 + $0x1b0] sm:$0xff]
          %v368 = vld [vmem:[#allocation3 + $0x1b8] sm:$0xff]
          %v369 = vld [vmem:[#allocation3 + $0x1c0] sm:$0xff]
          %v370 = vld [vmem:[#allocation3 + $0x1c8] sm:$0xff]
          %v371 = vld [vmem:[#allocation3 + $0x1d0] sm:$0xff]
          %v372 = vld [vmem:[#allocation3 + $0x1d8] sm:$0xff]
          %v373 = vld [vmem:[#allocation3 + $0x1e0] sm:$0xff]
          %v374 = vld [vmem:[#allocation3 + $0x1e8] sm:$0xff]
          %v375 = vld [vmem:[#allocation3 + $0x1f0] sm:$0xff]
          %v376 = vld [vmem:[#allocation3 + $0x1f8] sm:$0xff]
          %v377 = vld [vmem:[#allocation3 + $0x200] sm:$0xff]
          %v378 = vld [vmem:[#allocation3 + $0x208] sm:$0xff]
          %v379 = vld [vmem:[#allocation3 + $0x210] sm:$0xff]
          %v380 = vld [vmem:[#allocation3 + $0x218] sm:$0xff]
          %v381 = vld [vmem:[#allocation3 + $0x220] sm:$0xff]
          %v382 = vld [vmem:[#allocation3 + $0x228] sm:$0xff]
          %v383 = vld [vmem:[#allocation3 + $0x230] sm:$0xff]
          %v384 = vld [vmem:[#allocation3 + $0x238] sm:$0xff]
          %v385 = vld [vmem:[#allocation3 + $0x240] sm:$0xff]
          %v386 = vld [vmem:[#allocation3 + $0x248] sm:$0xff]
          %v387 = vld [vmem:[#allocation3 + $0x250] sm:$0xff]
          %v388 = vld [vmem:[#allocation3 + $0x258] sm:$0xff]
          %v389 = vld [vmem:[#allocation3 + $0x260] sm:$0xff]
          %v390 = vld [vmem:[#allocation3 + $0x268] sm:$0xff]
          %v391 = vld [vmem:[#allocation3 + $0x270] sm:$0xff]
          %v392 = vld [vmem:[#allocation3 + $0x278] sm:$0xff]
          %v393 = vld [vmem:[#allocation3 + $0x280] sm:$0xff]
          %v394 = vld [vmem:[#allocation3 + $0x288] sm:$0xff]
          %v395 = vld [vmem:[#allocation3 + $0x290] sm:$0xff]
          %v396 = vld [vmem:[#allocation3 + $0x298] sm:$0xff]
          %v397 = vld [vmem:[#allocation3 + $0x2a0] sm:$0xff]
          %v398 = vld [vmem:[#allocation3 + $0x2a8] sm:$0xff]
          %v399 = vld [vmem:[#allocation3 + $0x2b0] sm:$0xff]
          %v400 = vld [vmem:[#allocation3 + $0x2b8] sm:$0xff]
          %v401 = vld [vmem:[#allocation3 + $0x2c0] sm:$0xff]
          %v402 = vld [vmem:[#allocation3 + $0x2c8] sm:$0xff]
          %v403 = vld [vmem:[#allocation3 + $0x2d0] sm:$0xff]
          %v404 = vld [vmem:[#allocation3 + $0x2d8] sm:$0xff]
          %v405 = vld [vmem:[#allocation3 + $0x2e0] sm:$0xff]
          %v406 = vld [vmem:[#allocation3 + $0x2e8] sm:$0xff]
          %v407 = vld [vmem:[#allocation3 + $0x2f0] sm:$0xff]
          %v408 = vld [vmem:[#allocation3 + $0x2f8] sm:$0xff]
          %v409 = vld [vmem:[#allocation3 + $0x300] sm:$0xff]
          %v410 = vld [vmem:[#allocation3 + $0x308] sm:$0xff]
          %v411 = vld [vmem:[#allocation3 + $0x310] sm:$0xff]
          %v412 = vld [vmem:[#allocation3 + $0x318] sm:$0xff]
          %v413 = vld [vmem:[#allocation3 + $0x320] sm:$0xff]
          %v414 = vld [vmem:[#allocation3 + $0x328] sm:$0xff]
          %v415 = vld [vmem:[#allocation3 + $0x330] sm:$0xff]
          %v416 = vld [vmem:[#allocation3 + $0x338] sm:$0xff]
          %v417 = vld [vmem:[#allocation3 + $0x340] sm:$0xff]
          %v418 = vld [vmem:[#allocation3 + $0x348] sm:$0xff]
          %v419 = vld [vmem:[#allocation3 + $0x350] sm:$0xff]
          %v420 = vld [vmem:[#allocation3 + $0x358] sm:$0xff]
          %v421 = vld [vmem:[#allocation3 + $0x360] sm:$0xff]
          %v422 = vld [vmem:[#allocation3 + $0x368] sm:$0xff]
          %v423 = vld [vmem:[#allocation3 + $0x370] sm:$0xff]
          %v424 = vld [vmem:[#allocation3 + $0x378] sm:$0xff]
          %v425 = vld [vmem:[#allocation3 + $0x380] sm:$0xff]
          %v426 = vld [vmem:[#allocation3 + $0x388] sm:$0xff]
          %v427 = vld [vmem:[#allocation3 + $0x390] sm:$0xff]
          %v428 = vld [vmem:[#allocation3 + $0x398] sm:$0xff]
          %v429 = vld [vmem:[#allocation3 + $0x3a0] sm:$0xff]
          %v430 = vld [vmem:[#allocation3 + $0x3a8] sm:$0xff]
          %v431 = vld [vmem:[#allocation3 + $0x3b0] sm:$0xff]
          %v432 = vld [vmem:[#allocation3 + $0x3b8] sm:$0xff]
          %v433 = vld [vmem:[#allocation3 + $0x3c0] sm:$0xff]
          %v434 = vld [vmem:[#allocation3 + $0x3c8] sm:$0xff]
          %v435 = vld [vmem:[#allocation3 + $0x3d0] sm:$0xff]
          %v436 = vld [vmem:[#allocation3 + $0x3d8] sm:$0xff]
          %v437 = vld [vmem:[#allocation3 + $0x3e0] sm:$0xff]
          %v438 = vld [vmem:[#allocation3 + $0x3e8] sm:$0xff]
          %v439 = vld [vmem:[#allocation3 + $0x3f0] sm:$0xff]
          %v440 = vld [vmem:[#allocation3 + $0x3f8] sm:$0xff]
          %v441 = vld [vmem:[#allocation5] sm:$0xff]
          %v443 = vlaneseq
          %v444 = vshrl.u32 %v443, 7
          %v445 = vsub.s32 0, %v444
          %v446 = vrot.slane %v441, %v445
          %v447 = vlaneseq
          %v448 = vshrl.u32 %v447, 7
          %v449 = vsub.s32 1, %v448
          %v450 = vrot.slane %v441, %v449
          %v451 = vlaneseq
          %v452 = vshrl.u32 %v451, 7
          %v453 = vsub.s32 2, %v452
          %v454 = vrot.slane %v441, %v453
          %v455 = vlaneseq
          %v456 = vshrl.u32 %v455, 7
          %v457 = vsub.s32 3, %v456
          %v458 = vrot.slane %v441, %v457
          %v459 = vlaneseq
          %v460 = vshrl.u32 %v459, 7
          %v461 = vsub.s32 4, %v460
          %v462 = vrot.slane %v441, %v461
          %v463 = vlaneseq
          %v464 = vshrl.u32 %v463, 7
          %v465 = vsub.s32 5, %v464
          %v466 = vrot.slane %v441, %v465
          %v467 = vlaneseq
          %v468 = vshrl.u32 %v467, 7
          %v469 = vsub.s32 6, %v468
          %v470 = vrot.slane %v441, %v469
          %v471 = vlaneseq
          %v472 = vshrl.u32 %v471, 7
          %v473 = vsub.s32 7, %v472
          %v474 = vrot.slane %v441, %v473
          %v484 = vunpack.c.l.b16 %v312
          %v485 = vunpack.c.h.b16 %v312
          %v486 = vpack.c.b16 %v484, %v484
          %v487 = vpack.c.b16 %v485, %v485
          %v618 = vunpack.c.l.b16 %v313
          %v619 = vunpack.c.h.b16 %v313
          %v620 = vunpack.c.l.b16 %v314
          %v621 = vunpack.c.h.b16 %v314
          %v622 = vunpack.c.l.b16 %v315
          %v623 = vunpack.c.h.b16 %v315
          %v624 = vunpack.c.l.b16 %v316
          %v625 = vunpack.c.h.b16 %v316
          %v626 = vunpack.c.l.b16 %v317
          %v627 = vunpack.c.h.b16 %v317
          %v628 = vunpack.c.l.b16 %v318
          %v629 = vunpack.c.h.b16 %v318
          %v630 = vunpack.c.l.b16 %v319
          %v631 = vunpack.c.h.b16 %v319
          %v632 = vunpack.c.l.b16 %v320
          %v633 = vunpack.c.h.b16 %v320
          %v634 = vunpack.c.l.b16 %v321
          %v635 = vunpack.c.h.b16 %v321
          %v636 = vunpack.c.l.b16 %v322
          %v637 = vunpack.c.h.b16 %v322
          %v638 = vunpack.c.l.b16 %v323
          %v639 = vunpack.c.h.b16 %v323
          %v640 = vunpack.c.l.b16 %v324
          %v641 = vunpack.c.h.b16 %v324
          %v642 = vunpack.c.l.b16 %v325
          %v643 = vunpack.c.h.b16 %v325
          %v644 = vunpack.c.l.b16 %v326
          %v645 = vunpack.c.h.b16 %v326
          %v646 = vunpack.c.l.b16 %v327
          %v647 = vunpack.c.h.b16 %v327
          %v648 = vunpack.c.l.b16 %v328
          %v649 = vunpack.c.h.b16 %v328
          %v650 = vunpack.c.l.b16 %v329
          %v651 = vunpack.c.h.b16 %v329
          %v652 = vunpack.c.l.b16 %v330
          %v653 = vunpack.c.h.b16 %v330
          %v654 = vunpack.c.l.b16 %v331
          %v655 = vunpack.c.h.b16 %v331
          %v656 = vunpack.c.l.b16 %v332
          %v657 = vunpack.c.h.b16 %v332
          %v658 = vunpack.c.l.b16 %v333
          %v659 = vunpack.c.h.b16 %v333
          %v660 = vunpack.c.l.b16 %v334
          %v661 = vunpack.c.h.b16 %v334
          %v662 = vunpack.c.l.b16 %v335
          %v663 = vunpack.c.h.b16 %v335
          %v664 = vunpack.c.l.b16 %v336
          %v665 = vunpack.c.h.b16 %v336
          %v666 = vunpack.c.l.b16 %v337
          %v667 = vunpack.c.h.b16 %v337
          %v668 = vunpack.c.l.b16 %v338
          %v669 = vunpack.c.h.b16 %v338
          %v670 = vunpack.c.l.b16 %v339
          %v671 = vunpack.c.h.b16 %v339
          %v672 = vunpack.c.l.b16 %v340
          %v673 = vunpack.c.h.b16 %v340
          %v674 = vunpack.c.l.b16 %v341
          %v675 = vunpack.c.h.b16 %v341
          %v676 = vunpack.c.l.b16 %v342
          %v677 = vunpack.c.h.b16 %v342
          %v678 = vunpack.c.l.b16 %v343
          %v679 = vunpack.c.h.b16 %v343
          %v680 = vunpack.c.l.b16 %v344
          %v681 = vunpack.c.h.b16 %v344
          %v682 = vunpack.c.l.b16 %v345
          %v683 = vunpack.c.h.b16 %v345
          %v684 = vunpack.c.l.b16 %v346
          %v685 = vunpack.c.h.b16 %v346
          %v686 = vunpack.c.l.b16 %v347
          %v687 = vunpack.c.h.b16 %v347
          %v688 = vunpack.c.l.b16 %v348
          %v689 = vunpack.c.h.b16 %v348
          %v690 = vunpack.c.l.b16 %v349
          %v691 = vunpack.c.h.b16 %v349
          %v692 = vunpack.c.l.b16 %v350
          %v693 = vunpack.c.h.b16 %v350
          %v694 = vunpack.c.l.b16 %v351
          %v695 = vunpack.c.h.b16 %v351
          %v696 = vunpack.c.l.b16 %v352
          %v697 = vunpack.c.h.b16 %v352
          %v698 = vunpack.c.l.b16 %v353
          %v699 = vunpack.c.h.b16 %v353
          %v700 = vunpack.c.l.b16 %v354
          %v701 = vunpack.c.h.b16 %v354
          %v702 = vunpack.c.l.b16 %v355
          %v703 = vunpack.c.h.b16 %v355
          %v704 = vunpack.c.l.b16 %v356
          %v705 = vunpack.c.h.b16 %v356
          %v706 = vunpack.c.l.b16 %v357
          %v707 = vunpack.c.h.b16 %v357
          %v708 = vunpack.c.l.b16 %v358
          %v709 = vunpack.c.h.b16 %v358
          %v710 = vunpack.c.l.b16 %v359
          %v711 = vunpack.c.h.b16 %v359
          %v712 = vunpack.c.l.b16 %v360
          %v713 = vunpack.c.h.b16 %v360
          %v714 = vunpack.c.l.b16 %v361
          %v715 = vunpack.c.h.b16 %v361
          %v716 = vunpack.c.l.b16 %v362
          %v717 = vunpack.c.h.b16 %v362
          %v718 = vunpack.c.l.b16 %v363
          %v719 = vunpack.c.h.b16 %v363
          %v720 = vunpack.c.l.b16 %v364
          %v721 = vunpack.c.h.b16 %v364
          %v722 = vunpack.c.l.b16 %v365
          %v723 = vunpack.c.h.b16 %v365
          %v724 = vunpack.c.l.b16 %v366
          %v725 = vunpack.c.h.b16 %v366
          %v726 = vunpack.c.l.b16 %v367
          %v727 = vunpack.c.h.b16 %v367
          %v728 = vunpack.c.l.b16 %v368
          %v729 = vunpack.c.h.b16 %v368
          %v730 = vunpack.c.l.b16 %v369
          %v731 = vunpack.c.h.b16 %v369
          %v732 = vunpack.c.l.b16 %v370
          %v733 = vunpack.c.h.b16 %v370
          %v734 = vunpack.c.l.b16 %v371
          %v735 = vunpack.c.h.b16 %v371
          %v736 = vunpack.c.l.b16 %v372
          %v737 = vunpack.c.h.b16 %v372
          %v738 = vunpack.c.l.b16 %v373
          %v739 = vunpack.c.h.b16 %v373
          %v740 = vunpack.c.l.b16 %v374
          %v741 = vunpack.c.h.b16 %v374
          %v742 = vunpack.c.l.b16 %v375
          %v743 = vunpack.c.h.b16 %v375
          %v744 = vunpack.c.l.b16 %v376
          %v745 = vunpack.c.h.b16 %v376
          %v746 = vunpack.c.l.b16 %v377
          %v747 = vunpack.c.h.b16 %v377
          %v748 = vunpack.c.l.b16 %v378
          %v749 = vunpack.c.h.b16 %v378
          %v750 = vunpack.c.l.b16 %v379
          %v751 = vunpack.c.h.b16 %v379
          %v752 = vunpack.c.l.b16 %v380
          %v753 = vunpack.c.h.b16 %v380
          %v754 = vunpack.c.l.b16 %v381
          %v755 = vunpack.c.h.b16 %v381
          %v756 = vunpack.c.l.b16 %v382
          %v757 = vunpack.c.h.b16 %v382
          %v758 = vunpack.c.l.b16 %v383
          %v759 = vunpack.c.h.b16 %v383
          %v760 = vunpack.c.l.b16 %v384
          %v761 = vunpack.c.h.b16 %v384
          %v762 = vunpack.c.l.b16 %v385
          %v763 = vunpack.c.h.b16 %v385
          %v764 = vunpack.c.l.b16 %v386
          %v765 = vunpack.c.h.b16 %v386
          %v766 = vunpack.c.l.b16 %v387
          %v767 = vunpack.c.h.b16 %v387
          %v768 = vunpack.c.l.b16 %v388
          %v769 = vunpack.c.h.b16 %v388
          %v770 = vunpack.c.l.b16 %v389
          %v771 = vunpack.c.h.b16 %v389
          %v772 = vunpack.c.l.b16 %v390
          %v773 = vunpack.c.h.b16 %v390
          %v774 = vunpack.c.l.b16 %v391
          %v775 = vunpack.c.h.b16 %v391
          %v776 = vunpack.c.l.b16 %v392
          %v777 = vunpack.c.h.b16 %v392
          %v778 = vunpack.c.l.b16 %v393
          %v779 = vunpack.c.h.b16 %v393
          %v780 = vunpack.c.l.b16 %v394
          %v781 = vunpack.c.h.b16 %v394
          %v782 = vunpack.c.l.b16 %v395
          %v783 = vunpack.c.h.b16 %v395
          %v784 = vunpack.c.l.b16 %v396
          %v785 = vunpack.c.h.b16 %v396
          %v786 = vunpack.c.l.b16 %v397
          %v787 = vunpack.c.h.b16 %v397
          %v788 = vunpack.c.l.b16 %v398
          %v789 = vunpack.c.h.b16 %v398
          %v790 = vunpack.c.l.b16 %v399
          %v791 = vunpack.c.h.b16 %v399
          %v792 = vunpack.c.l.b16 %v400
          %v793 = vunpack.c.h.b16 %v400
          %v794 = vunpack.c.l.b16 %v401
          %v795 = vunpack.c.h.b16 %v401
          %v796 = vunpack.c.l.b16 %v402
          %v797 = vunpack.c.h.b16 %v402
          %v798 = vunpack.c.l.b16 %v403
          %v799 = vunpack.c.h.b16 %v403
          %v800 = vunpack.c.l.b16 %v404
          %v801 = vunpack.c.h.b16 %v404
          %v802 = vunpack.c.l.b16 %v405
          %v803 = vunpack.c.h.b16 %v405
          %v804 = vunpack.c.l.b16 %v406
          %v805 = vunpack.c.h.b16 %v406
          %v806 = vunpack.c.l.b16 %v407
          %v807 = vunpack.c.h.b16 %v407
          %v808 = vunpack.c.l.b16 %v408
          %v809 = vunpack.c.h.b16 %v408
          %v810 = vunpack.c.l.b16 %v409
          %v811 = vunpack.c.h.b16 %v409
          %v812 = vunpack.c.l.b16 %v410
          %v813 = vunpack.c.h.b16 %v410
          %v814 = vunpack.c.l.b16 %v411
          %v815 = vunpack.c.h.b16 %v411
          %v816 = vunpack.c.l.b16 %v412
          %v817 = vunpack.c.h.b16 %v412
          %v818 = vunpack.c.l.b16 %v413
          %v819 = vunpack.c.h.b16 %v413
          %v820 = vunpack.c.l.b16 %v414
          %v821 = vunpack.c.h.b16 %v414
          %v822 = vunpack.c.l.b16 %v415
          %v823 = vunpack.c.h.b16 %v415
          %v824 = vunpack.c.l.b16 %v416
          %v825 = vunpack.c.h.b16 %v416
          %v826 = vunpack.c.l.b16 %v417
          %v827 = vunpack.c.h.b16 %v417
          %v828 = vunpack.c.l.b16 %v418
          %v829 = vunpack.c.h.b16 %v418
          %v830 = vunpack.c.l.b16 %v419
          %v831 = vunpack.c.h.b16 %v419
          %v832 = vunpack.c.l.b16 %v420
          %v833 = vunpack.c.h.b16 %v420
          %v834 = vunpack.c.l.b16 %v421
          %v835 = vunpack.c.h.b16 %v421
          %v836 = vunpack.c.l.b16 %v422
          %v837 = vunpack.c.h.b16 %v422
          %v838 = vunpack.c.l.b16 %v423
          %v839 = vunpack.c.h.b16 %v423
          %v840 = vunpack.c.l.b16 %v424
          %v841 = vunpack.c.h.b16 %v424
          %v842 = vunpack.c.l.b16 %v425
          %v843 = vunpack.c.h.b16 %v425
          %v844 = vunpack.c.l.b16 %v426
          %v845 = vunpack.c.h.b16 %v426
          %v846 = vunpack.c.l.b16 %v427
          %v847 = vunpack.c.h.b16 %v427
          %v848 = vunpack.c.l.b16 %v428
          %v849 = vunpack.c.h.b16 %v428
          %v850 = vunpack.c.l.b16 %v429
          %v851 = vunpack.c.h.b16 %v429
          %v852 = vunpack.c.l.b16 %v430
          %v853 = vunpack.c.h.b16 %v430
          %v854 = vunpack.c.l.b16 %v431
          %v855 = vunpack.c.h.b16 %v431
          %v856 = vunpack.c.l.b16 %v432
          %v857 = vunpack.c.h.b16 %v432
          %v858 = vunpack.c.l.b16 %v433
          %v859 = vunpack.c.h.b16 %v433
          %v860 = vunpack.c.l.b16 %v434
          %v861 = vunpack.c.h.b16 %v434
          %v862 = vunpack.c.l.b16 %v435
          %v863 = vunpack.c.h.b16 %v435
          %v864 = vunpack.c.l.b16 %v436
          %v865 = vunpack.c.h.b16 %v436
          %v866 = vunpack.c.l.b16 %v437
          %v867 = vunpack.c.h.b16 %v437
          %v868 = vunpack.c.l.b16 %v438
          %v869 = vunpack.c.h.b16 %v438
          %v870 = vunpack.c.l.b16 %v439
          %v871 = vunpack.c.h.b16 %v439
          %v872 = vunpack.c.l.b16 %v440
          %v873 = vunpack.c.h.b16 %v440
          %v874 = vpack.c.b16 %v626, %v618
          %v875 = vpack.c.b16 %v627, %v619
          %v876 = vpack.c.b16 %v628, %v620
          %v877 = vpack.c.b16 %v629, %v621
          %v878 = vpack.c.b16 %v630, %v622
          %v879 = vpack.c.b16 %v631, %v623
          %v880 = vpack.c.b16 %v632, %v624
          %v881 = vpack.c.b16 %v633, %v625
          %v882 = vpack.c.b16 %v642, %v634
          %v883 = vpack.c.b16 %v643, %v635
          %v884 = vpack.c.b16 %v644, %v636
          %v885 = vpack.c.b16 %v645, %v637
          %v886 = vpack.c.b16 %v646, %v638
          %v887 = vpack.c.b16 %v647, %v639
          %v888 = vpack.c.b16 %v648, %v640
          %v889 = vpack.c.b16 %v649, %v641
          %v890 = vpack.c.b16 %v658, %v650
          %v891 = vpack.c.b16 %v659, %v651
          %v892 = vpack.c.b16 %v660, %v652
          %v893 = vpack.c.b16 %v661, %v653
          %v894 = vpack.c.b16 %v662, %v654
          %v895 = vpack.c.b16 %v663, %v655
          %v896 = vpack.c.b16 %v664, %v656
          %v897 = vpack.c.b16 %v665, %v657
          %v898 = vpack.c.b16 %v674, %v666
          %v899 = vpack.c.b16 %v675, %v667
          %v900 = vpack.c.b16 %v676, %v668
          %v901 = vpack.c.b16 %v677, %v669
          %v902 = vpack.c.b16 %v678, %v670
          %v903 = vpack.c.b16 %v679, %v671
          %v904 = vpack.c.b16 %v680, %v672
          %v905 = vpack.c.b16 %v681, %v673
          %v906 = vpack.c.b16 %v690, %v682
          %v907 = vpack.c.b16 %v691, %v683
          %v908 = vpack.c.b16 %v692, %v684
          %v909 = vpack.c.b16 %v693, %v685
          %v910 = vpack.c.b16 %v694, %v686
          %v911 = vpack.c.b16 %v695, %v687
          %v912 = vpack.c.b16 %v696, %v688
          %v913 = vpack.c.b16 %v697, %v689
          %v914 = vpack.c.b16 %v706, %v698
          %v915 = vpack.c.b16 %v707, %v699
          %v916 = vpack.c.b16 %v708, %v700
          %v917 = vpack.c.b16 %v709, %v701
          %v918 = vpack.c.b16 %v710, %v702
          %v919 = vpack.c.b16 %v711, %v703
          %v920 = vpack.c.b16 %v712, %v704
          %v921 = vpack.c.b16 %v713, %v705
          %v922 = vpack.c.b16 %v722, %v714
          %v923 = vpack.c.b16 %v723, %v715
          %v924 = vpack.c.b16 %v724, %v716
          %v925 = vpack.c.b16 %v725, %v717
          %v926 = vpack.c.b16 %v726, %v718
          %v927 = vpack.c.b16 %v727, %v719
          %v928 = vpack.c.b16 %v728, %v720
          %v929 = vpack.c.b16 %v729, %v721
          %v930 = vpack.c.b16 %v738, %v730
          %v931 = vpack.c.b16 %v739, %v731
          %v932 = vpack.c.b16 %v740, %v732
          %v933 = vpack.c.b16 %v741, %v733
          %v934 = vpack.c.b16 %v742, %v734
          %v935 = vpack.c.b16 %v743, %v735
          %v936 = vpack.c.b16 %v744, %v736
          %v937 = vpack.c.b16 %v745, %v737
          %v938 = vpack.c.b16 %v754, %v746
          %v939 = vpack.c.b16 %v755, %v747
          %v940 = vpack.c.b16 %v756, %v748
          %v941 = vpack.c.b16 %v757, %v749
          %v942 = vpack.c.b16 %v758, %v750
          %v943 = vpack.c.b16 %v759, %v751
          %v944 = vpack.c.b16 %v760, %v752
          %v945 = vpack.c.b16 %v761, %v753
          %v946 = vpack.c.b16 %v770, %v762
          %v947 = vpack.c.b16 %v771, %v763
          %v948 = vpack.c.b16 %v772, %v764
          %v949 = vpack.c.b16 %v773, %v765
          %v950 = vpack.c.b16 %v774, %v766
          %v951 = vpack.c.b16 %v775, %v767
          %v952 = vpack.c.b16 %v776, %v768
          %v953 = vpack.c.b16 %v777, %v769
          %v954 = vpack.c.b16 %v786, %v778
          %v955 = vpack.c.b16 %v787, %v779
          %v956 = vpack.c.b16 %v788, %v780
          %v957 = vpack.c.b16 %v789, %v781
          %v958 = vpack.c.b16 %v790, %v782
          %v959 = vpack.c.b16 %v791, %v783
          %v960 = vpack.c.b16 %v792, %v784
          %v961 = vpack.c.b16 %v793, %v785
          %v962 = vpack.c.b16 %v802, %v794
          %v963 = vpack.c.b16 %v803, %v795
          %v964 = vpack.c.b16 %v804, %v796
          %v965 = vpack.c.b16 %v805, %v797
          %v966 = vpack.c.b16 %v806, %v798
          %v967 = vpack.c.b16 %v807, %v799
          %v968 = vpack.c.b16 %v808, %v800
          %v969 = vpack.c.b16 %v809, %v801
          %v970 = vpack.c.b16 %v818, %v810
          %v971 = vpack.c.b16 %v819, %v811
          %v972 = vpack.c.b16 %v820, %v812
          %v973 = vpack.c.b16 %v821, %v813
          %v974 = vpack.c.b16 %v822, %v814
          %v975 = vpack.c.b16 %v823, %v815
          %v976 = vpack.c.b16 %v824, %v816
          %v977 = vpack.c.b16 %v825, %v817
          %v978 = vpack.c.b16 %v834, %v826
          %v979 = vpack.c.b16 %v835, %v827
          %v980 = vpack.c.b16 %v836, %v828
          %v981 = vpack.c.b16 %v837, %v829
          %v982 = vpack.c.b16 %v838, %v830
          %v983 = vpack.c.b16 %v839, %v831
          %v984 = vpack.c.b16 %v840, %v832
          %v985 = vpack.c.b16 %v841, %v833
          %v986 = vpack.c.b16 %v850, %v842
          %v987 = vpack.c.b16 %v851, %v843
          %v988 = vpack.c.b16 %v852, %v844
          %v989 = vpack.c.b16 %v853, %v845
          %v990 = vpack.c.b16 %v854, %v846
          %v991 = vpack.c.b16 %v855, %v847
          %v992 = vpack.c.b16 %v856, %v848
          %v993 = vpack.c.b16 %v857, %v849
          %v994 = vpack.c.b16 %v866, %v858
          %v995 = vpack.c.b16 %v867, %v859
          %v996 = vpack.c.b16 %v868, %v860
          %v997 = vpack.c.b16 %v869, %v861
          %v998 = vpack.c.b16 %v870, %v862
          %v999 = vpack.c.b16 %v871, %v863
          %v1000 = vpack.c.b16 %v872, %v864
          %v1001 = vpack.c.b16 %v873, %v865
          %1130 = vmatprep.subr.bf16.mxu0 %v931
          %1131 = vmatpush1.bf16.msra.mxu0 %v930
          %1132 = vmatprep.subr.bf16.mxu0 %v923
          %1133 = vmatpush1.bf16.msra.mxu0 %v922
          %1134 = vmatprep.subr.bf16.mxu0 %v915
          %1135 = vmatpush1.bf16.msra.mxu0 %v914
          %1136 = vmatprep.subr.bf16.mxu0 %v907
          %1137 = vmatpush1.bf16.msra.mxu0 %v906
          %1138 = vmatprep.subr.bf16.mxu0 %v899
          %1139 = vmatpush1.bf16.msra.mxu0 %v898
          %1140 = vmatprep.subr.bf16.mxu0 %v891
          %1141 = vmatpush1.bf16.msra.mxu0 %v890
          %1142 = vmatprep.subr.bf16.mxu0 %v883
          %1143 = vmatpush1.bf16.msra.mxu0 %v882
          %1144 = vmatprep.subr.bf16.mxu0 %v875
          %1145 = vmatpush1.bf16.msra.mxu0 %v874
          %1146 = vmatprep.subr.bf16.mxu0 %v995
          %1147 = vmatpush2.bf16.msra.mxu0 %v994
          %1148 = vmatprep.subr.bf16.mxu0 %v987
          %1149 = vmatpush2.bf16.msra.mxu0 %v986
          %1150 = vmatprep.subr.bf16.mxu0 %v979
          %1151 = vmatpush2.bf16.msra.mxu0 %v978
          %1152 = vmatprep.subr.bf16.mxu0 %v971
          %1153 = vmatpush2.bf16.msra.mxu0 %v970
          %1154 = vmatprep.subr.bf16.mxu0 %v963
          %1155 = vmatpush2.bf16.msra.mxu0 %v962
          %1156 = vmatprep.subr.bf16.mxu0 %v955
          %1157 = vmatpush2.bf16.msra.mxu0 %v954
          %1158 = vmatprep.subr.bf16.mxu0 %v947
          %1159 = vmatpush2.bf16.msra.mxu0 %v946
          %1160 = vmatprep.subr.bf16.mxu0 %v939
          %1161 = vmatpush2.bf16.msra.mxu0 %v938
          %1162 = vmatprep.mubr.bf16.mxu0 %v487
          %1163 = vmatmul.mubr.bf16.gmra.mxu0 %v486
          %v1164 = vpop.f32.mrf.mxu0
          %v1165 = vadd.f32 %v446, %v1164
          %v1166 = vpop.f32.mrf.mxu0
          %v1167 = vadd.f32 %v450, %v1166
          %v1168 = vpop.f32.mrf.mxu0
          %v1169 = vpop.f32.mrf.mxu0
          %1170 = vdwg.mxu0
          %1171 = vmatprep.subr.bf16.mxu0 %v933
          %1172 = vmatpush1.bf16.msra.mxu0 %v932
          %1173 = vmatprep.subr.bf16.mxu0 %v925
          %1174 = vmatpush1.bf16.msra.mxu0 %v924
          %1175 = vmatprep.subr.bf16.mxu0 %v917
          %1176 = vmatpush1.bf16.msra.mxu0 %v916
          %1177 = vmatprep.subr.bf16.mxu0 %v909
          %1178 = vmatpush1.bf16.msra.mxu0 %v908
          %1179 = vmatprep.subr.bf16.mxu0 %v901
          %1180 = vmatpush1.bf16.msra.mxu0 %v900
          %1181 = vmatprep.subr.bf16.mxu0 %v893
          %1182 = vmatpush1.bf16.msra.mxu0 %v892
          %1183 = vmatprep.subr.bf16.mxu0 %v885
          %1184 = vmatpush1.bf16.msra.mxu0 %v884
          %1185 = vmatprep.subr.bf16.mxu0 %v877
          %1186 = vmatpush1.bf16.msra.mxu0 %v876
          %1187 = vmatprep.subr.bf16.mxu0 %v997
          %1188 = vmatpush2.bf16.msra.mxu0 %v996
          %1189 = vmatprep.subr.bf16.mxu0 %v989
          %1190 = vmatpush2.bf16.msra.mxu0 %v988
          %1191 = vmatprep.subr.bf16.mxu0 %v981
          %1192 = vmatpush2.bf16.msra.mxu0 %v980
          %1193 = vmatprep.subr.bf16.mxu0 %v973
          %1194 = vmatpush2.bf16.msra.mxu0 %v972
          %1195 = vmatprep.subr.bf16.mxu0 %v965
          %1196 = vmatpush2.bf16.msra.mxu0 %v964
          %1197 = vmatprep.subr.bf16.mxu0 %v957
          %1198 = vmatpush2.bf16.msra.mxu0 %v956
          %1199 = vmatprep.subr.bf16.mxu0 %v949
          %1200 = vmatpush2.bf16.msra.mxu0 %v948
          %1201 = vmatprep.subr.bf16.mxu0 %v941
          %1202 = vmatpush2.bf16.msra.mxu0 %v940
          %1203 = vmatprep.mubr.bf16.mxu0 %v487
          %1204 = vmatmul.mubr.bf16.gmra.mxu0 %v486
          %v1205 = vpop.f32.mrf.mxu0
          %v1206 = vadd.f32 %v454, %v1205
          %v1207 = vpop.f32.mrf.mxu0
          %v1208 = vadd.f32 %v458, %v1207
          %v1209 = vpop.f32.mrf.mxu0
          %v1210 = vpop.f32.mrf.mxu0
          %1211 = vdwg.mxu0
          %1212 = vmatprep.subr.bf16.mxu0 %v935
          %1213 = vmatpush1.bf16.msra.mxu0 %v934
          %1214 = vmatprep.subr.bf16.mxu0 %v927
          %1215 = vmatpush1.bf16.msra.mxu0 %v926
          %1216 = vmatprep.subr.bf16.mxu0 %v919
          %1217 = vmatpush1.bf16.msra.mxu0 %v918
          %1218 = vmatprep.subr.bf16.mxu0 %v911
          %1219 = vmatpush1.bf16.msra.mxu0 %v910
          %1220 = vmatprep.subr.bf16.mxu0 %v903
          %1221 = vmatpush1.bf16.msra.mxu0 %v902
          %1222 = vmatprep.subr.bf16.mxu0 %v895
          %1223 = vmatpush1.bf16.msra.mxu0 %v894
          %1224 = vmatprep.subr.bf16.mxu0 %v887
          %1225 = vmatpush1.bf16.msra.mxu0 %v886
          %1226 = vmatprep.subr.bf16.mxu0 %v879
          %1227 = vmatpush1.bf16.msra.mxu0 %v878
          %1228 = vmatprep.subr.bf16.mxu0 %v999
          %1229 = vmatpush2.bf16.msra.mxu0 %v998
          %1230 = vmatprep.subr.bf16.mxu0 %v991
          %1231 = vmatpush2.bf16.msra.mxu0 %v990
          %1232 = vmatprep.subr.bf16.mxu0 %v983
          %1233 = vmatpush2.bf16.msra.mxu0 %v982
          %1234 = vmatprep.subr.bf16.mxu0 %v975
          %1235 = vmatpush2.bf16.msra.mxu0 %v974
          %1236 = vmatprep.subr.bf16.mxu0 %v967
          %1237 = vmatpush2.bf16.msra.mxu0 %v966
          %1238 = vmatprep.subr.bf16.mxu0 %v959
          %1239 = vmatpush2.bf16.msra.mxu0 %v958
          %1240 = vmatprep.subr.bf16.mxu0 %v951
          %1241 = vmatpush2.bf16.msra.mxu0 %v950
          %1242 = vmatprep.subr.bf16.mxu0 %v943
          %1243 = vmatpush2.bf16.msra.mxu0 %v942
          %1244 = vmatprep.mubr.bf16.mxu0 %v487
          %1245 = vmatmul.mubr.bf16.gmra.mxu0 %v486
          %v1246 = vpop.f32.mrf.mxu0
          %v1247 = vadd.f32 %v462, %v1246
          %v1248 = vpop.f32.mrf.mxu0
          %v1249 = vadd.f32 %v466, %v1248
          %v1250 = vpop.f32.mrf.mxu0
          %v1251 = vpop.f32.mrf.mxu0
          %1252 = vdwg.mxu0
          %1253 = vmatprep.subr.bf16.mxu0 %v937
          %1254 = vmatpush1.bf16.msra.mxu0 %v936
          %1255 = vmatprep.subr.bf16.mxu0 %v929
          %1256 = vmatpush1.bf16.msra.mxu0 %v928
          %1257 = vmatprep.subr.bf16.mxu0 %v921
          %1258 = vmatpush1.bf16.msra.mxu0 %v920
          %1259 = vmatprep.subr.bf16.mxu0 %v913
          %1260 = vmatpush1.bf16.msra.mxu0 %v912
          %1261 = vmatprep.subr.bf16.mxu0 %v905
          %1262 = vmatpush1.bf16.msra.mxu0 %v904
          %1263 = vmatprep.subr.bf16.mxu0 %v897
          %1264 = vmatpush1.bf16.msra.mxu0 %v896
          %1265 = vmatprep.subr.bf16.mxu0 %v889
          %1266 = vmatpush1.bf16.msra.mxu0 %v888
          %1267 = vmatprep.subr.bf16.mxu0 %v881
          %1268 = vmatpush1.bf16.msra.mxu0 %v880
          %1269 = vmatprep.subr.bf16.mxu0 %v1001
          %1270 = vmatpush2.bf16.msra.mxu0 %v1000
          %1271 = vmatprep.subr.bf16.mxu0 %v993
          %1272 = vmatpush2.bf16.msra.mxu0 %v992
          %1273 = vmatprep.subr.bf16.mxu0 %v985
          %1274 = vmatpush2.bf16.msra.mxu0 %v984
          %1275 = vmatprep.subr.bf16.mxu0 %v977
          %1276 = vmatpush2.bf16.msra.mxu0 %v976
          %1277 = vmatprep.subr.bf16.mxu0 %v969
          %1278 = vmatpush2.bf16.msra.mxu0 %v968
          %1279 = vmatprep.subr.bf16.mxu0 %v961
          %1280 = vmatpush2.bf16.msra.mxu0 %v960
          %1281 = vmatprep.subr.bf16.mxu0 %v953
          %1282 = vmatpush2.bf16.msra.mxu0 %v952
          %1283 = vmatprep.subr.bf16.mxu0 %v945
          %1284 = vmatpush2.bf16.msra.mxu0 %v944
          %1285 = vmatprep.mubr.bf16.mxu0 %v487
          %1286 = vmatmul.mubr.bf16.gmra.mxu0 %v486
          %v1287 = vpop.f32.mrf.mxu0
          %v1288 = vadd.f32 %v470, %v1287
          %v1289 = vpop.f32.mrf.mxu0
          %v1290 = vadd.f32 %v474, %v1289
          %v1291 = vpop.f32.mrf.mxu0
          %v1292 = vpop.f32.mrf.mxu0
          %1293 = vdwg.mxu0
          %v1294 = vmax.f32 %v1165, 0.0
          %v1295 = vmax.f32 %v1167, 0.0
          %v1296 = vmax.f32 %v1206, 0.0
          %v1297 = vmax.f32 %v1208, 0.0
          %v1298 = vmax.f32 %v1247, 0.0
          %v1299 = vmax.f32 %v1249, 0.0
          %v1300 = vmax.f32 %v1288, 0.0
          %v1301 = vmax.f32 %v1290, 0.0
          %v1302 = vpack.c.bf16 %v1294, %v1294
          %v1303 = vpack.c.bf16 %v1295, %v1295
          %v1304 = vpack.c.bf16 %v1296, %v1296
          %v1305 = vpack.c.bf16 %v1297, %v1297
          %v1306 = vpack.c.bf16 %v1298, %v1298
          %v1307 = vpack.c.bf16 %v1299, %v1299
          %v1308 = vpack.c.bf16 %v1300, %v1300
          %v1309 = vpack.c.bf16 %v1301, %v1301
          %v1318 = vunpack.c.l.b16 %v1302
          %v1319 = vunpack.c.l.b16 %v1303
          %v1320 = vunpack.c.l.b16 %v1304
          %v1321 = vunpack.c.l.b16 %v1305
          %v1322 = vunpack.c.l.b16 %v1306
          %v1323 = vunpack.c.l.b16 %v1307
          %v1324 = vunpack.c.l.b16 %v1308
          %v1325 = vunpack.c.l.b16 %v1309
          %v1326 = vpack.c.b16 %v1319, %v1318
          %v1327 = vpack.c.b16 %v1321, %v1320
          %v1328 = vpack.c.b16 %v1323, %v1322
          %v1329 = vpack.c.b16 %v1325, %v1324
          %1334 = vst [vmem:[#allocation2] sm:$0xff] %v1326
          %1335 = vst [vmem:[#allocation2 + $0x8] sm:$0xff] %v1327
          %1336 = vst [vmem:[#allocation2 + $0x10] sm:$0xff] %v1328
          %1337 = vst [vmem:[#allocation2 + $0x18] sm:$0xff] %v1329
        $region60: #{model_forward.4} parent=39 // pred_fallthru
          _
        %v1338 = vld [vmem:[#allocation2] sm:$0xff]
        %v1339 = vld [vmem:[#allocation2 + $0x8] sm:$0xff]
        %v1340 = vld [vmem:[#allocation2 + $0x10] sm:$0xff]
        %v1341 = vld [vmem:[#allocation2 + $0x18] sm:$0xff]
        %v1342 = vld [vmem:[%s259] sm:$0xff]
        %v1343 = vld [vmem:[%s259 + $0x8] sm:$0xff]
        %v1344 = vld [vmem:[%s259 + $0x10] sm:$0xff]
        %v1345 = vld [vmem:[%s259 + $0x18] sm:$0xff]
        %v1346 = vld [vmem:[%s259 + $0x20] sm:$0xff]
        %v1347 = vld [vmem:[%s259 + $0x28] sm:$0xff]
        %v1348 = vld [vmem:[%s259 + $0x30] sm:$0xff]
        %v1349 = vld [vmem:[%s259 + $0x38] sm:$0xff]
        %v1350 = vld [vmem:[%s259 + $0x40] sm:$0xff]
        %v1351 = vld [vmem:[%s259 + $0x48] sm:$0xff]
        %v1352 = vld [vmem:[%s259 + $0x50] sm:$0xff]
        %v1353 = vld [vmem:[%s259 + $0x58] sm:$0xff]
        %v1354 = vld [vmem:[%s259 + $0x60] sm:$0xff]
        %v1355 = vld [vmem:[%s259 + $0x68] sm:$0xff]
        %v1356 = vld [vmem:[%s259 + $0x70] sm:$0xff]
        %v1357 = vld [vmem:[%s259 + $0x78] sm:$0xff]
        %v1358 = vld [vmem:[%s259 + $0x80] sm:$0xff]
        %v1359 = vld [vmem:[%s259 + $0x88] sm:$0xff]
        %v1360 = vld [vmem:[%s259 + $0x90] sm:$0xff]
        %v1361 = vld [vmem:[%s259 + $0x98] sm:$0xff]
        %v1362 = vld [vmem:[%s259 + $0xa0] sm:$0xff]
        %v1363 = vld [vmem:[%s259 + $0xa8] sm:$0xff]
        %v1364 = vld [vmem:[%s259 + $0xb0] sm:$0xff]
        %v1365 = vld [vmem:[%s259 + $0xb8] sm:$0xff]
        %v1366 = vld [vmem:[%s259 + $0xc0] sm:$0xff]
        %v1367 = vld [vmem:[%s259 + $0xc8] sm:$0xff]
        %v1368 = vld [vmem:[%s259 + $0xd0] sm:$0xff]
        %v1369 = vld [vmem:[%s259 + $0xd8] sm:$0xff]
        %v1370 = vld [vmem:[%s259 + $0xe0] sm:$0xff]
        %v1371 = vld [vmem:[%s259 + $0xe8] sm:$0xff]
        %v1372 = vld [vmem:[%s259 + $0xf0] sm:$0xff]
        %v1373 = vld [vmem:[%s259 + $0xf8] sm:$0xff]
        %v1374 = vld [vmem:[%s259 + $0x100] sm:$0xff]
        %v1375 = vld [vmem:[%s259 + $0x108] sm:$0xff]
        %v1376 = vld [vmem:[%s259 + $0x110] sm:$0xff]
        %v1377 = vld [vmem:[%s259 + $0x118] sm:$0xff]
        %v1378 = vld [vmem:[%s259 + $0x120] sm:$0xff]
        %v1379 = vld [vmem:[%s259 + $0x128] sm:$0xff]
        %v1380 = vld [vmem:[%s259 + $0x130] sm:$0xff]
        %v1381 = vld [vmem:[%s259 + $0x138] sm:$0xff]
        %v1382 = vld [vmem:[%s259 + $0x140] sm:$0xff]
        %v1383 = vld [vmem:[%s259 + $0x148] sm:$0xff]
        %v1384 = vld [vmem:[%s259 + $0x150] sm:$0xff]
        %v1385 = vld [vmem:[%s259 + $0x158] sm:$0xff]
        %v1386 = vld [vmem:[%s259 + $0x160] sm:$0xff]
        %v1387 = vld [vmem:[%s259 + $0x168] sm:$0xff]
        %v1388 = vld [vmem:[%s259 + $0x170] sm:$0xff]
        %v1389 = vld [vmem:[%s259 + $0x178] sm:$0xff]
        %v1390 = vld [vmem:[%s259 + $0x180] sm:$0xff]
        %v1391 = vld [vmem:[%s259 + $0x188] sm:$0xff]
        %v1392 = vld [vmem:[%s259 + $0x190] sm:$0xff]
        %v1393 = vld [vmem:[%s259 + $0x198] sm:$0xff]
        %v1394 = vld [vmem:[%s259 + $0x1a0] sm:$0xff]
        %v1395 = vld [vmem:[%s259 + $0x1a8] sm:$0xff]
        %v1396 = vld [vmem:[%s259 + $0x1b0] sm:$0xff]
        %v1397 = vld [vmem:[%s259 + $0x1b8] sm:$0xff]
        %v1398 = vld [vmem:[%s259 + $0x1c0] sm:$0xff]
        %v1399 = vld [vmem:[%s259 + $0x1c8] sm:$0xff]
        %v1400 = vld [vmem:[%s259 + $0x1d0] sm:$0xff]
        %v1401 = vld [vmem:[%s259 + $0x1d8] sm:$0xff]
        %v1402 = vld [vmem:[%s259 + $0x1e0] sm:$0xff]
        %v1403 = vld [vmem:[%s259 + $0x1e8] sm:$0xff]
        %v1404 = vld [vmem:[%s259 + $0x1f0] sm:$0xff]
        %v1405 = vld [vmem:[%s259 + $0x1f8] sm:$0xff]
        %v1406 = vld [vmem:[%s259 + $0x200] sm:$0xff]
        %v1407 = vld [vmem:[%s259 + $0x208] sm:$0xff]
        %v1408 = vld [vmem:[%s259 + $0x210] sm:$0xff]
        %v1409 = vld [vmem:[%s259 + $0x218] sm:$0xff]
        %v1410 = vld [vmem:[%s259 + $0x220] sm:$0xff]
        %v1411 = vld [vmem:[%s259 + $0x228] sm:$0xff]
        %v1412 = vld [vmem:[%s259 + $0x230] sm:$0xff]
        %v1413 = vld [vmem:[%s259 + $0x238] sm:$0xff]
        %v1414 = vld [vmem:[%s259 + $0x240] sm:$0xff]
        %v1415 = vld [vmem:[%s259 + $0x248] sm:$0xff]
        %v1416 = vld [vmem:[%s259 + $0x250] sm:$0xff]
        %v1417 = vld [vmem:[%s259 + $0x258] sm:$0xff]
        %v1418 = vld [vmem:[%s259 + $0x260] sm:$0xff]
        %v1419 = vld [vmem:[%s259 + $0x268] sm:$0xff]
        %v1420 = vld [vmem:[%s259 + $0x270] sm:$0xff]
        %v1421 = vld [vmem:[%s259 + $0x278] sm:$0xff]
        %v1422 = vld [vmem:[%s259 + $0x280] sm:$0xff]
        %v1423 = vld [vmem:[%s259 + $0x288] sm:$0xff]
        %v1424 = vld [vmem:[%s259 + $0x290] sm:$0xff]
        %v1425 = vld [vmem:[%s259 + $0x298] sm:$0xff]
        %v1426 = vld [vmem:[%s259 + $0x2a0] sm:$0xff]
        %v1427 = vld [vmem:[%s259 + $0x2a8] sm:$0xff]
        %v1428 = vld [vmem:[%s259 + $0x2b0] sm:$0xff]
        %v1429 = vld [vmem:[%s259 + $0x2b8] sm:$0xff]
        %v1430 = vld [vmem:[%s259 + $0x2c0] sm:$0xff]
        %v1431 = vld [vmem:[%s259 + $0x2c8] sm:$0xff]
        %v1432 = vld [vmem:[%s259 + $0x2d0] sm:$0xff]
        %v1433 = vld [vmem:[%s259 + $0x2d8] sm:$0xff]
        %v1434 = vld [vmem:[%s259 + $0x2e0] sm:$0xff]
        %v1435 = vld [vmem:[%s259 + $0x2e8] sm:$0xff]
        %v1436 = vld [vmem:[%s259 + $0x2f0] sm:$0xff]
        %v1437 = vld [vmem:[%s259 + $0x2f8] sm:$0xff]
        %v1438 = vld [vmem:[%s259 + $0x300] sm:$0xff]
        %v1439 = vld [vmem:[%s259 + $0x308] sm:$0xff]
        %v1440 = vld [vmem:[%s259 + $0x310] sm:$0xff]
        %v1441 = vld [vmem:[%s259 + $0x318] sm:$0xff]
        %v1442 = vld [vmem:[%s259 + $0x320] sm:$0xff]
        %v1443 = vld [vmem:[%s259 + $0x328] sm:$0xff]
        %v1444 = vld [vmem:[%s259 + $0x330] sm:$0xff]
        %v1445 = vld [vmem:[%s259 + $0x338] sm:$0xff]
        %v1446 = vld [vmem:[%s259 + $0x340] sm:$0xff]
        %v1447 = vld [vmem:[%s259 + $0x348] sm:$0xff]
        %v1448 = vld [vmem:[%s259 + $0x350] sm:$0xff]
        %v1449 = vld [vmem:[%s259 + $0x358] sm:$0xff]
        %v1450 = vld [vmem:[%s259 + $0x360] sm:$0xff]
        %v1451 = vld [vmem:[%s259 + $0x368] sm:$0xff]
        %v1452 = vld [vmem:[%s259 + $0x370] sm:$0xff]
        %v1453 = vld [vmem:[%s259 + $0x378] sm:$0xff]
        %v1454 = vld [vmem:[%s259 + $0x380] sm:$0xff]
        %v1455 = vld [vmem:[%s259 + $0x388] sm:$0xff]
        %v1456 = vld [vmem:[%s259 + $0x390] sm:$0xff]
        %v1457 = vld [vmem:[%s259 + $0x398] sm:$0xff]
        %v1458 = vld [vmem:[%s259 + $0x3a0] sm:$0xff]
        %v1459 = vld [vmem:[%s259 + $0x3a8] sm:$0xff]
        %v1460 = vld [vmem:[%s259 + $0x3b0] sm:$0xff]
        %v1461 = vld [vmem:[%s259 + $0x3b8] sm:$0xff]
        %v1462 = vld [vmem:[%s259 + $0x3c0] sm:$0xff]
        %v1463 = vld [vmem:[%s259 + $0x3c8] sm:$0xff]
        %v1464 = vld [vmem:[%s259 + $0x3d0] sm:$0xff]
        %v1465 = vld [vmem:[%s259 + $0x3d8] sm:$0xff]
        %v1466 = vld [vmem:[%s259 + $0x3e0] sm:$0xff]
        %v1467 = vld [vmem:[%s259 + $0x3e8] sm:$0xff]
        %v1468 = vld [vmem:[%s259 + $0x3f0] sm:$0xff]
        %v1469 = vld [vmem:[%s259 + $0x3f8] sm:$0xff]
        %v1470 = vld [vmem:[%s259 + $0x400] sm:$0xff]
        %v1471 = vld [vmem:[%s259 + $0x408] sm:$0xff]
        %v1472 = vld [vmem:[%s259 + $0x410] sm:$0xff]
        %v1473 = vld [vmem:[%s259 + $0x418] sm:$0xff]
        %v1474 = vld [vmem:[%s259 + $0x420] sm:$0xff]
        %v1475 = vld [vmem:[%s259 + $0x428] sm:$0xff]
        %v1476 = vld [vmem:[%s259 + $0x430] sm:$0xff]
        %v1477 = vld [vmem:[%s259 + $0x438] sm:$0xff]
        %v1478 = vld [vmem:[%s259 + $0x440] sm:$0xff]
        %v1479 = vld [vmem:[%s259 + $0x448] sm:$0xff]
        %v1480 = vld [vmem:[%s259 + $0x450] sm:$0xff]
        %v1481 = vld [vmem:[%s259 + $0x458] sm:$0xff]
        %v1482 = vld [vmem:[%s259 + $0x460] sm:$0xff]
        %v1483 = vld [vmem:[%s259 + $0x468] sm:$0xff]
        %v1484 = vld [vmem:[%s259 + $0x470] sm:$0xff]
        %v1485 = vld [vmem:[%s259 + $0x478] sm:$0xff]
        %v1486 = vld [vmem:[%s259 + $0x480] sm:$0xff]
        %v1487 = vld [vmem:[%s259 + $0x488] sm:$0xff]
        %v1488 = vld [vmem:[%s259 + $0x490] sm:$0xff]
        %v1489 = vld [vmem:[%s259 + $0x498] sm:$0xff]
        %v1490 = vld [vmem:[%s259 + $0x4a0] sm:$0xff]
        %v1491 = vld [vmem:[%s259 + $0x4a8] sm:$0xff]
        %v1492 = vld [vmem:[%s259 + $0x4b0] sm:$0xff]
        %v1493 = vld [vmem:[%s259 + $0x4b8] sm:$0xff]
        %v1494 = vld [vmem:[%s259 + $0x4c0] sm:$0xff]
        %v1495 = vld [vmem:[%s259 + $0x4c8] sm:$0xff]
        %v1496 = vld [vmem:[%s259 + $0x4d0] sm:$0xff]
        %v1497 = vld [vmem:[%s259 + $0x4d8] sm:$0xff]
        %v1498 = vld [vmem:[%s259 + $0x4e0] sm:$0xff]
        %v1499 = vld [vmem:[%s259 + $0x4e8] sm:$0xff]
        %v1500 = vld [vmem:[%s259 + $0x4f0] sm:$0xff]
        %v1501 = vld [vmem:[%s259 + $0x4f8] sm:$0xff]
        %v1502 = vld [vmem:[%s259 + $0x500] sm:$0xff]
        %v1503 = vld [vmem:[%s259 + $0x508] sm:$0xff]
        %v1504 = vld [vmem:[%s259 + $0x510] sm:$0xff]
        %v1505 = vld [vmem:[%s259 + $0x518] sm:$0xff]
        %v1506 = vld [vmem:[%s259 + $0x520] sm:$0xff]
        %v1507 = vld [vmem:[%s259 + $0x528] sm:$0xff]
        %v1508 = vld [vmem:[%s259 + $0x530] sm:$0xff]
        %v1509 = vld [vmem:[%s259 + $0x538] sm:$0xff]
        %v1510 = vld [vmem:[%s259 + $0x540] sm:$0xff]
        %v1511 = vld [vmem:[%s259 + $0x548] sm:$0xff]
        %v1512 = vld [vmem:[%s259 + $0x550] sm:$0xff]
        %v1513 = vld [vmem:[%s259 + $0x558] sm:$0xff]
        %v1514 = vld [vmem:[%s259 + $0x560] sm:$0xff]
        %v1515 = vld [vmem:[%s259 + $0x568] sm:$0xff]
        %v1516 = vld [vmem:[%s259 + $0x570] sm:$0xff]
        %v1517 = vld [vmem:[%s259 + $0x578] sm:$0xff]
        %v1518 = vld [vmem:[%s259 + $0x580] sm:$0xff]
        %v1519 = vld [vmem:[%s259 + $0x588] sm:$0xff]
        %v1520 = vld [vmem:[%s259 + $0x590] sm:$0xff]
        %v1521 = vld [vmem:[%s259 + $0x598] sm:$0xff]
        %v1522 = vld [vmem:[%s259 + $0x5a0] sm:$0xff]
        %v1523 = vld [vmem:[%s259 + $0x5a8] sm:$0xff]
        %v1524 = vld [vmem:[%s259 + $0x5b0] sm:$0xff]
        %v1525 = vld [vmem:[%s259 + $0x5b8] sm:$0xff]
        %v1526 = vld [vmem:[%s259 + $0x5c0] sm:$0xff]
        %v1527 = vld [vmem:[%s259 + $0x5c8] sm:$0xff]
        %v1528 = vld [vmem:[%s259 + $0x5d0] sm:$0xff]
        %v1529 = vld [vmem:[%s259 + $0x5d8] sm:$0xff]
        %v1530 = vld [vmem:[%s259 + $0x5e0] sm:$0xff]
        %v1531 = vld [vmem:[%s259 + $0x5e8] sm:$0xff]
        %v1532 = vld [vmem:[%s259 + $0x5f0] sm:$0xff]
        %v1533 = vld [vmem:[%s259 + $0x5f8] sm:$0xff]
        %v1534 = vld [vmem:[%s259 + $0x600] sm:$0xff]
        %v1535 = vld [vmem:[%s259 + $0x608] sm:$0xff]
        %v1536 = vld [vmem:[%s259 + $0x610] sm:$0xff]
        %v1537 = vld [vmem:[%s259 + $0x618] sm:$0xff]
        %v1538 = vld [vmem:[%s259 + $0x620] sm:$0xff]
        %v1539 = vld [vmem:[%s259 + $0x628] sm:$0xff]
        %v1540 = vld [vmem:[%s259 + $0x630] sm:$0xff]
        %v1541 = vld [vmem:[%s259 + $0x638] sm:$0xff]
        %v1542 = vld [vmem:[%s259 + $0x640] sm:$0xff]
        %v1543 = vld [vmem:[%s259 + $0x648] sm:$0xff]
        %v1544 = vld [vmem:[%s259 + $0x650] sm:$0xff]
        %v1545 = vld [vmem:[%s259 + $0x658] sm:$0xff]
        %v1546 = vld [vmem:[%s259 + $0x660] sm:$0xff]
        %v1547 = vld [vmem:[%s259 + $0x668] sm:$0xff]
        %v1548 = vld [vmem:[%s259 + $0x670] sm:$0xff]
        %v1549 = vld [vmem:[%s259 + $0x678] sm:$0xff]
        %v1550 = vld [vmem:[%s259 + $0x680] sm:$0xff]
        %v1551 = vld [vmem:[%s259 + $0x688] sm:$0xff]
        %v1552 = vld [vmem:[%s259 + $0x690] sm:$0xff]
        %v1553 = vld [vmem:[%s259 + $0x698] sm:$0xff]
        %v1554 = vld [vmem:[%s259 + $0x6a0] sm:$0xff]
        %v1555 = vld [vmem:[%s259 + $0x6a8] sm:$0xff]
        %v1556 = vld [vmem:[%s259 + $0x6b0] sm:$0xff]
        %v1557 = vld [vmem:[%s259 + $0x6b8] sm:$0xff]
        %v1558 = vld [vmem:[%s259 + $0x6c0] sm:$0xff]
        %v1559 = vld [vmem:[%s259 + $0x6c8] sm:$0xff]
        %v1560 = vld [vmem:[%s259 + $0x6d0] sm:$0xff]
        %v1561 = vld [vmem:[%s259 + $0x6d8] sm:$0xff]
        %v1562 = vld [vmem:[%s259 + $0x6e0] sm:$0xff]
        %v1563 = vld [vmem:[%s259 + $0x6e8] sm:$0xff]
        %v1564 = vld [vmem:[%s259 + $0x6f0] sm:$0xff]
        %v1565 = vld [vmem:[%s259 + $0x6f8] sm:$0xff]
        %v1566 = vld [vmem:[%s259 + $0x700] sm:$0xff]
        %v1567 = vld [vmem:[%s259 + $0x708] sm:$0xff]
        %v1568 = vld [vmem:[%s259 + $0x710] sm:$0xff]
        %v1569 = vld [vmem:[%s259 + $0x718] sm:$0xff]
        %v1570 = vld [vmem:[%s259 + $0x720] sm:$0xff]
        %v1571 = vld [vmem:[%s259 + $0x728] sm:$0xff]
        %v1572 = vld [vmem:[%s259 + $0x730] sm:$0xff]
        %v1573 = vld [vmem:[%s259 + $0x738] sm:$0xff]
        %v1574 = vld [vmem:[%s259 + $0x740] sm:$0xff]
        %v1575 = vld [vmem:[%s259 + $0x748] sm:$0xff]
        %v1576 = vld [vmem:[%s259 + $0x750] sm:$0xff]
        %v1577 = vld [vmem:[%s259 + $0x758] sm:$0xff]
        %v1578 = vld [vmem:[%s259 + $0x760] sm:$0xff]
        %v1579 = vld [vmem:[%s259 + $0x768] sm:$0xff]
        %v1580 = vld [vmem:[%s259 + $0x770] sm:$0xff]
        %v1581 = vld [vmem:[%s259 + $0x778] sm:$0xff]
        %v1582 = vld [vmem:[%s259 + $0x780] sm:$0xff]
        %v1583 = vld [vmem:[%s259 + $0x788] sm:$0xff]
        %v1584 = vld [vmem:[%s259 + $0x790] sm:$0xff]
        %v1585 = vld [vmem:[%s259 + $0x798] sm:$0xff]
        %v1586 = vld [vmem:[%s259 + $0x7a0] sm:$0xff]
        %v1587 = vld [vmem:[%s259 + $0x7a8] sm:$0xff]
        %v1588 = vld [vmem:[%s259 + $0x7b0] sm:$0xff]
        %v1589 = vld [vmem:[%s259 + $0x7b8] sm:$0xff]
        %v1590 = vld [vmem:[%s259 + $0x7c0] sm:$0xff]
        %v1591 = vld [vmem:[%s259 + $0x7c8] sm:$0xff]
        %v1592 = vld [vmem:[%s259 + $0x7d0] sm:$0xff]
        %v1593 = vld [vmem:[%s259 + $0x7d8] sm:$0xff]
        %v1594 = vld [vmem:[%s259 + $0x7e0] sm:$0xff]
        %v1595 = vld [vmem:[%s259 + $0x7e8] sm:$0xff]
        %v1596 = vld [vmem:[%s259 + $0x7f0] sm:$0xff]
        %v1597 = vld [vmem:[%s259 + $0x7f8] sm:$0xff]
        %v1598 = vld [vmem:[%s259 + $0x800] sm:$0xff]
        %v1599 = vld [vmem:[%s259 + $0x808] sm:$0xff]
        %v1600 = vld [vmem:[%s259 + $0x810] sm:$0xff]
        %v1601 = vld [vmem:[%s259 + $0x818] sm:$0xff]
        %v1602 = vld [vmem:[%s259 + $0x820] sm:$0xff]
        %v1603 = vld [vmem:[%s259 + $0x828] sm:$0xff]
        %v1604 = vld [vmem:[%s259 + $0x830] sm:$0xff]
        %v1605 = vld [vmem:[%s259 + $0x838] sm:$0xff]
        %v1606 = vld [vmem:[%s259 + $0x840] sm:$0xff]
        %v1607 = vld [vmem:[%s259 + $0x848] sm:$0xff]
        %v1608 = vld [vmem:[%s259 + $0x850] sm:$0xff]
        %v1609 = vld [vmem:[%s259 + $0x858] sm:$0xff]
        %v1610 = vld [vmem:[%s259 + $0x860] sm:$0xff]
        %v1611 = vld [vmem:[%s259 + $0x868] sm:$0xff]
        %v1612 = vld [vmem:[%s259 + $0x870] sm:$0xff]
        %v1613 = vld [vmem:[%s259 + $0x878] sm:$0xff]
        %v1614 = vld [vmem:[%s259 + $0x880] sm:$0xff]
        %v1615 = vld [vmem:[%s259 + $0x888] sm:$0xff]
        %v1616 = vld [vmem:[%s259 + $0x890] sm:$0xff]
        %v1617 = vld [vmem:[%s259 + $0x898] sm:$0xff]
        %v1618 = vld [vmem:[%s259 + $0x8a0] sm:$0xff]
        %v1619 = vld [vmem:[%s259 + $0x8a8] sm:$0xff]
        %v1620 = vld [vmem:[%s259 + $0x8b0] sm:$0xff]
        %v1621 = vld [vmem:[%s259 + $0x8b8] sm:$0xff]
        %v1622 = vld [vmem:[%s259 + $0x8c0] sm:$0xff]
        %v1623 = vld [vmem:[%s259 + $0x8c8] sm:$0xff]
        %v1624 = vld [vmem:[%s259 + $0x8d0] sm:$0xff]
        %v1625 = vld [vmem:[%s259 + $0x8d8] sm:$0xff]
        %v1626 = vld [vmem:[%s259 + $0x8e0] sm:$0xff]
        %v1627 = vld [vmem:[%s259 + $0x8e8] sm:$0xff]
        %v1628 = vld [vmem:[%s259 + $0x8f0] sm:$0xff]
        %v1629 = vld [vmem:[%s259 + $0x8f8] sm:$0xff]
        %v1630 = vld [vmem:[%s259 + $0x900] sm:$0xff]
        %v1631 = vld [vmem:[%s259 + $0x908] sm:$0xff]
        %v1632 = vld [vmem:[%s259 + $0x910] sm:$0xff]
        %v1633 = vld [vmem:[%s259 + $0x918] sm:$0xff]
        %v1634 = vld [vmem:[%s259 + $0x920] sm:$0xff]
        %v1635 = vld [vmem:[%s259 + $0x928] sm:$0xff]
        %v1636 = vld [vmem:[%s259 + $0x930] sm:$0xff]
        %v1637 = vld [vmem:[%s259 + $0x938] sm:$0xff]
        %v1638 = vld [vmem:[%s259 + $0x940] sm:$0xff]
        %v1639 = vld [vmem:[%s259 + $0x948] sm:$0xff]
        %v1640 = vld [vmem:[%s259 + $0x950] sm:$0xff]
        %v1641 = vld [vmem:[%s259 + $0x958] sm:$0xff]
        %v1642 = vld [vmem:[%s259 + $0x960] sm:$0xff]
        %v1643 = vld [vmem:[%s259 + $0x968] sm:$0xff]
        %v1644 = vld [vmem:[%s259 + $0x970] sm:$0xff]
        %v1645 = vld [vmem:[%s259 + $0x978] sm:$0xff]
        %v1646 = vld [vmem:[%s259 + $0x980] sm:$0xff]
        %v1647 = vld [vmem:[%s259 + $0x988] sm:$0xff]
        %v1648 = vld [vmem:[%s259 + $0x990] sm:$0xff]
        %v1649 = vld [vmem:[%s259 + $0x998] sm:$0xff]
        %v1650 = vld [vmem:[%s259 + $0x9a0] sm:$0xff]
        %v1651 = vld [vmem:[%s259 + $0x9a8] sm:$0xff]
        %v1652 = vld [vmem:[%s259 + $0x9b0] sm:$0xff]
        %v1653 = vld [vmem:[%s259 + $0x9b8] sm:$0xff]
        %v1654 = vld [vmem:[%s259 + $0x9c0] sm:$0xff]
        %v1655 = vld [vmem:[%s259 + $0x9c8] sm:$0xff]
        %v1656 = vld [vmem:[%s259 + $0x9d0] sm:$0xff]
        %v1657 = vld [vmem:[%s259 + $0x9d8] sm:$0xff]
        %v1658 = vld [vmem:[%s259 + $0x9e0] sm:$0xff]
        %v1659 = vld [vmem:[%s259 + $0x9e8] sm:$0xff]
        %v1660 = vld [vmem:[%s259 + $0x9f0] sm:$0xff]
        %v1661 = vld [vmem:[%s259 + $0x9f8] sm:$0xff]
        %v1662 = vld [vmem:[%s259 + $0xa00] sm:$0xff]
        %v1663 = vld [vmem:[%s259 + $0xa08] sm:$0xff]
        %v1664 = vld [vmem:[%s259 + $0xa10] sm:$0xff]
        %v1665 = vld [vmem:[%s259 + $0xa18] sm:$0xff]
        %v1666 = vld [vmem:[%s259 + $0xa20] sm:$0xff]
        %v1667 = vld [vmem:[%s259 + $0xa28] sm:$0xff]
        %v1668 = vld [vmem:[%s259 + $0xa30] sm:$0xff]
        %v1669 = vld [vmem:[%s259 + $0xa38] sm:$0xff]
        %v1670 = vld [vmem:[%s259 + $0xa40] sm:$0xff]
        %v1671 = vld [vmem:[%s259 + $0xa48] sm:$0xff]
        %v1672 = vld [vmem:[%s259 + $0xa50] sm:$0xff]
        %v1673 = vld [vmem:[%s259 + $0xa58] sm:$0xff]
        %v1674 = vld [vmem:[%s259 + $0xa60] sm:$0xff]
        %v1675 = vld [vmem:[%s259 + $0xa68] sm:$0xff]
        %v1676 = vld [vmem:[%s259 + $0xa70] sm:$0xff]
        %v1677 = vld [vmem:[%s259 + $0xa78] sm:$0xff]
        %v1678 = vld [vmem:[%s259 + $0xa80] sm:$0xff]
        %v1679 = vld [vmem:[%s259 + $0xa88] sm:$0xff]
        %v1680 = vld [vmem:[%s259 + $0xa90] sm:$0xff]
        %v1681 = vld [vmem:[%s259 + $0xa98] sm:$0xff]
        %v1682 = vld [vmem:[%s259 + $0xaa0] sm:$0xff]
        %v1683 = vld [vmem:[%s259 + $0xaa8] sm:$0xff]
        %v1684 = vld [vmem:[%s259 + $0xab0] sm:$0xff]
        %v1685 = vld [vmem:[%s259 + $0xab8] sm:$0xff]
        %v1686 = vld [vmem:[%s259 + $0xac0] sm:$0xff]
        %v1687 = vld [vmem:[%s259 + $0xac8] sm:$0xff]
        %v1688 = vld [vmem:[%s259 + $0xad0] sm:$0xff]
        %v1689 = vld [vmem:[%s259 + $0xad8] sm:$0xff]
        %v1690 = vld [vmem:[%s259 + $0xae0] sm:$0xff]
        %v1691 = vld [vmem:[%s259 + $0xae8] sm:$0xff]
        %v1692 = vld [vmem:[%s259 + $0xaf0] sm:$0xff]
        %v1693 = vld [vmem:[%s259 + $0xaf8] sm:$0xff]
        %v1694 = vld [vmem:[%s259 + $0xb00] sm:$0xff]
        %v1695 = vld [vmem:[%s259 + $0xb08] sm:$0xff]
        %v1696 = vld [vmem:[%s259 + $0xb10] sm:$0xff]
        %v1697 = vld [vmem:[%s259 + $0xb18] sm:$0xff]
        %v1698 = vld [vmem:[%s259 + $0xb20] sm:$0xff]
        %v1699 = vld [vmem:[%s259 + $0xb28] sm:$0xff]
        %v1700 = vld [vmem:[%s259 + $0xb30] sm:$0xff]
        %v1701 = vld [vmem:[%s259 + $0xb38] sm:$0xff]
        %v1702 = vld [vmem:[%s259 + $0xb40] sm:$0xff]
        %v1703 = vld [vmem:[%s259 + $0xb48] sm:$0xff]
        %v1704 = vld [vmem:[%s259 + $0xb50] sm:$0xff]
        %v1705 = vld [vmem:[%s259 + $0xb58] sm:$0xff]
        %v1706 = vld [vmem:[%s259 + $0xb60] sm:$0xff]
        %v1707 = vld [vmem:[%s259 + $0xb68] sm:$0xff]
        %v1708 = vld [vmem:[%s259 + $0xb70] sm:$0xff]
        %v1709 = vld [vmem:[%s259 + $0xb78] sm:$0xff]
        %v1710 = vld [vmem:[%s259 + $0xb80] sm:$0xff]
        %v1711 = vld [vmem:[%s259 + $0xb88] sm:$0xff]
        %v1712 = vld [vmem:[%s259 + $0xb90] sm:$0xff]
        %v1713 = vld [vmem:[%s259 + $0xb98] sm:$0xff]
        %v1714 = vld [vmem:[%s259 + $0xba0] sm:$0xff]
        %v1715 = vld [vmem:[%s259 + $0xba8] sm:$0xff]
        %v1716 = vld [vmem:[%s259 + $0xbb0] sm:$0xff]
        %v1717 = vld [vmem:[%s259 + $0xbb8] sm:$0xff]
        %v1718 = vld [vmem:[%s259 + $0xbc0] sm:$0xff]
        %v1719 = vld [vmem:[%s259 + $0xbc8] sm:$0xff]
        %v1720 = vld [vmem:[%s259 + $0xbd0] sm:$0xff]
        %v1721 = vld [vmem:[%s259 + $0xbd8] sm:$0xff]
        %v1722 = vld [vmem:[%s259 + $0xbe0] sm:$0xff]
        %v1723 = vld [vmem:[%s259 + $0xbe8] sm:$0xff]
        %v1724 = vld [vmem:[%s259 + $0xbf0] sm:$0xff]
        %v1725 = vld [vmem:[%s259 + $0xbf8] sm:$0xff]
        %v1726 = vld [vmem:[%s259 + $0xc00] sm:$0xff]
        %v1727 = vld [vmem:[%s259 + $0xc08] sm:$0xff]
        %v1728 = vld [vmem:[%s259 + $0xc10] sm:$0xff]
        %v1729 = vld [vmem:[%s259 + $0xc18] sm:$0xff]
        %v1730 = vld [vmem:[%s259 + $0xc20] sm:$0xff]
        %v1731 = vld [vmem:[%s259 + $0xc28] sm:$0xff]
        %v1732 = vld [vmem:[%s259 + $0xc30] sm:$0xff]
        %v1733 = vld [vmem:[%s259 + $0xc38] sm:$0xff]
        %v1734 = vld [vmem:[%s259 + $0xc40] sm:$0xff]
        %v1735 = vld [vmem:[%s259 + $0xc48] sm:$0xff]
        %v1736 = vld [vmem:[%s259 + $0xc50] sm:$0xff]
        %v1737 = vld [vmem:[%s259 + $0xc58] sm:$0xff]
        %v1738 = vld [vmem:[%s259 + $0xc60] sm:$0xff]
        %v1739 = vld [vmem:[%s259 + $0xc68] sm:$0xff]
        %v1740 = vld [vmem:[%s259 + $0xc70] sm:$0xff]
        %v1741 = vld [vmem:[%s259 + $0xc78] sm:$0xff]
        %v1742 = vld [vmem:[%s259 + $0xc80] sm:$0xff]
        %v1743 = vld [vmem:[%s259 + $0xc88] sm:$0xff]
        %v1744 = vld [vmem:[%s259 + $0xc90] sm:$0xff]
        %v1745 = vld [vmem:[%s259 + $0xc98] sm:$0xff]
        %v1746 = vld [vmem:[%s259 + $0xca0] sm:$0xff]
        %v1747 = vld [vmem:[%s259 + $0xca8] sm:$0xff]
        %v1748 = vld [vmem:[%s259 + $0xcb0] sm:$0xff]
        %v1749 = vld [vmem:[%s259 + $0xcb8] sm:$0xff]
        %v1750 = vld [vmem:[%s259 + $0xcc0] sm:$0xff]
        %v1751 = vld [vmem:[%s259 + $0xcc8] sm:$0xff]
        %v1752 = vld [vmem:[%s259 + $0xcd0] sm:$0xff]
        %v1753 = vld [vmem:[%s259 + $0xcd8] sm:$0xff]
        %v1754 = vld [vmem:[%s259 + $0xce0] sm:$0xff]
        %v1755 = vld [vmem:[%s259 + $0xce8] sm:$0xff]
        %v1756 = vld [vmem:[%s259 + $0xcf0] sm:$0xff]
        %v1757 = vld [vmem:[%s259 + $0xcf8] sm:$0xff]
        %v1758 = vld [vmem:[%s259 + $0xd00] sm:$0xff]
        %v1759 = vld [vmem:[%s259 + $0xd08] sm:$0xff]
        %v1760 = vld [vmem:[%s259 + $0xd10] sm:$0xff]
        %v1761 = vld [vmem:[%s259 + $0xd18] sm:$0xff]
        %v1762 = vld [vmem:[%s259 + $0xd20] sm:$0xff]
        %v1763 = vld [vmem:[%s259 + $0xd28] sm:$0xff]
        %v1764 = vld [vmem:[%s259 + $0xd30] sm:$0xff]
        %v1765 = vld [vmem:[%s259 + $0xd38] sm:$0xff]
        %v1766 = vld [vmem:[%s259 + $0xd40] sm:$0xff]
        %v1767 = vld [vmem:[%s259 + $0xd48] sm:$0xff]
        %v1768 = vld [vmem:[%s259 + $0xd50] sm:$0xff]
        %v1769 = vld [vmem:[%s259 + $0xd58] sm:$0xff]
        %v1770 = vld [vmem:[%s259 + $0xd60] sm:$0xff]
        %v1771 = vld [vmem:[%s259 + $0xd68] sm:$0xff]
        %v1772 = vld [vmem:[%s259 + $0xd70] sm:$0xff]
        %v1773 = vld [vmem:[%s259 + $0xd78] sm:$0xff]
        %v1774 = vld [vmem:[%s259 + $0xd80] sm:$0xff]
        %v1775 = vld [vmem:[%s259 + $0xd88] sm:$0xff]
        %v1776 = vld [vmem:[%s259 + $0xd90] sm:$0xff]
        %v1777 = vld [vmem:[%s259 + $0xd98] sm:$0xff]
        %v1778 = vld [vmem:[%s259 + $0xda0] sm:$0xff]
        %v1779 = vld [vmem:[%s259 + $0xda8] sm:$0xff]
        %v1780 = vld [vmem:[%s259 + $0xdb0] sm:$0xff]
        %v1781 = vld [vmem:[%s259 + $0xdb8] sm:$0xff]
        %v1782 = vld [vmem:[%s259 + $0xdc0] sm:$0xff]
        %v1783 = vld [vmem:[%s259 + $0xdc8] sm:$0xff]
        %v1784 = vld [vmem:[%s259 + $0xdd0] sm:$0xff]
        %v1785 = vld [vmem:[%s259 + $0xdd8] sm:$0xff]
        %v1786 = vld [vmem:[%s259 + $0xde0] sm:$0xff]
        %v1787 = vld [vmem:[%s259 + $0xde8] sm:$0xff]
        %v1788 = vld [vmem:[%s259 + $0xdf0] sm:$0xff]
        %v1789 = vld [vmem:[%s259 + $0xdf8] sm:$0xff]
        %v1790 = vld [vmem:[%s259 + $0xe00] sm:$0xff]
        %v1791 = vld [vmem:[%s259 + $0xe08] sm:$0xff]
        %v1792 = vld [vmem:[%s259 + $0xe10] sm:$0xff]
        %v1793 = vld [vmem:[%s259 + $0xe18] sm:$0xff]
        %v1794 = vld [vmem:[%s259 + $0xe20] sm:$0xff]
        %v1795 = vld [vmem:[%s259 + $0xe28] sm:$0xff]
        %v1796 = vld [vmem:[%s259 + $0xe30] sm:$0xff]
        %v1797 = vld [vmem:[%s259 + $0xe38] sm:$0xff]
        %v1798 = vld [vmem:[%s259 + $0xe40] sm:$0xff]
        %v1799 = vld [vmem:[%s259 + $0xe48] sm:$0xff]
        %v1800 = vld [vmem:[%s259 + $0xe50] sm:$0xff]
        %v1801 = vld [vmem:[%s259 + $0xe58] sm:$0xff]
        %v1802 = vld [vmem:[%s259 + $0xe60] sm:$0xff]
        %v1803 = vld [vmem:[%s259 + $0xe68] sm:$0xff]
        %v1804 = vld [vmem:[%s259 + $0xe70] sm:$0xff]
        %v1805 = vld [vmem:[%s259 + $0xe78] sm:$0xff]
        %v1806 = vld [vmem:[%s259 + $0xe80] sm:$0xff]
        %v1807 = vld [vmem:[%s259 + $0xe88] sm:$0xff]
        %v1808 = vld [vmem:[%s259 + $0xe90] sm:$0xff]
        %v1809 = vld [vmem:[%s259 + $0xe98] sm:$0xff]
        %v1810 = vld [vmem:[%s259 + $0xea0] sm:$0xff]
        %v1811 = vld [vmem:[%s259 + $0xea8] sm:$0xff]
        %v1812 = vld [vmem:[%s259 + $0xeb0] sm:$0xff]
        %v1813 = vld [vmem:[%s259 + $0xeb8] sm:$0xff]
        %v1814 = vld [vmem:[%s259 + $0xec0] sm:$0xff]
        %v1815 = vld [vmem:[%s259 + $0xec8] sm:$0xff]
        %v1816 = vld [vmem:[%s259 + $0xed0] sm:$0xff]
        %v1817 = vld [vmem:[%s259 + $0xed8] sm:$0xff]
        %v1818 = vld [vmem:[%s259 + $0xee0] sm:$0xff]
        %v1819 = vld [vmem:[%s259 + $0xee8] sm:$0xff]
        %v1820 = vld [vmem:[%s259 + $0xef0] sm:$0xff]
        %v1821 = vld [vmem:[%s259 + $0xef8] sm:$0xff]
        %v1822 = vld [vmem:[%s259 + $0xf00] sm:$0xff]
        %v1823 = vld [vmem:[%s259 + $0xf08] sm:$0xff]
        %v1824 = vld [vmem:[%s259 + $0xf10] sm:$0xff]
        %v1825 = vld [vmem:[%s259 + $0xf18] sm:$0xff]
        %v1826 = vld [vmem:[%s259 + $0xf20] sm:$0xff]
        %v1827 = vld [vmem:[%s259 + $0xf28] sm:$0xff]
        %v1828 = vld [vmem:[%s259 + $0xf30] sm:$0xff]
        %v1829 = vld [vmem:[%s259 + $0xf38] sm:$0xff]
        %v1830 = vld [vmem:[%s259 + $0xf40] sm:$0xff]
        %v1831 = vld [vmem:[%s259 + $0xf48] sm:$0xff]
        %v1832 = vld [vmem:[%s259 + $0xf50] sm:$0xff]
        %v1833 = vld [vmem:[%s259 + $0xf58] sm:$0xff]
        %v1834 = vld [vmem:[%s259 + $0xf60] sm:$0xff]
        %v1835 = vld [vmem:[%s259 + $0xf68] sm:$0xff]
        %v1836 = vld [vmem:[%s259 + $0xf70] sm:$0xff]
        %v1837 = vld [vmem:[%s259 + $0xf78] sm:$0xff]
        %v1838 = vld [vmem:[%s259 + $0xf80] sm:$0xff]
        %v1839 = vld [vmem:[%s259 + $0xf88] sm:$0xff]
        %v1840 = vld [vmem:[%s259 + $0xf90] sm:$0xff]
        %v1841 = vld [vmem:[%s259 + $0xf98] sm:$0xff]
        %v1842 = vld [vmem:[%s259 + $0xfa0] sm:$0xff]
        %v1843 = vld [vmem:[%s259 + $0xfa8] sm:$0xff]
        %v1844 = vld [vmem:[%s259 + $0xfb0] sm:$0xff]
        %v1845 = vld [vmem:[%s259 + $0xfb8] sm:$0xff]
        %v1846 = vld [vmem:[%s259 + $0xfc0] sm:$0xff]
        %v1847 = vld [vmem:[%s259 + $0xfc8] sm:$0xff]
        %v1848 = vld [vmem:[%s259 + $0xfd0] sm:$0xff]
        %v1849 = vld [vmem:[%s259 + $0xfd8] sm:$0xff]
        %v1850 = vld [vmem:[%s259 + $0xfe0] sm:$0xff]
        %v1851 = vld [vmem:[%s259 + $0xfe8] sm:$0xff]
        %v1852 = vld [vmem:[%s259 + $0xff0] sm:$0xff]
        %v1853 = vld [vmem:[%s259 + $0xff8] sm:$0xff]
        %v1854 = vld [vmem:[%s268] sm:$0xff]
        %v1856 = vlaneseq
        %v1857 = vshrl.u32 %v1856, 7
        %v1858 = vsub.s32 0, %v1857
        %v1859 = vrot.slane %v1854, %v1858
        %v1860 = vlaneseq
        %v1861 = vshrl.u32 %v1860, 7
        %v1862 = vsub.s32 1, %v1861
        %v1863 = vrot.slane %v1854, %v1862
        %v1864 = vlaneseq
        %v1865 = vshrl.u32 %v1864, 7
        %v1866 = vsub.s32 2, %v1865
        %v1867 = vrot.slane %v1854, %v1866
        %v1868 = vlaneseq
        %v1869 = vshrl.u32 %v1868, 7
        %v1870 = vsub.s32 3, %v1869
        %v1871 = vrot.slane %v1854, %v1870
        %v1872 = vlaneseq
        %v1873 = vshrl.u32 %v1872, 7
        %v1874 = vsub.s32 4, %v1873
        %v1875 = vrot.slane %v1854, %v1874
        %v1876 = vlaneseq
        %v1877 = vshrl.u32 %v1876, 7
        %v1878 = vsub.s32 5, %v1877
        %v1879 = vrot.slane %v1854, %v1878
        %v1880 = vlaneseq
        %v1881 = vshrl.u32 %v1880, 7
        %v1882 = vsub.s32 6, %v1881
        %v1883 = vrot.slane %v1854, %v1882
        %v1884 = vlaneseq
        %v1885 = vshrl.u32 %v1884, 7
        %v1886 = vsub.s32 7, %v1885
        %v1887 = vrot.slane %v1854, %v1886
        %v1900 = vunpack.c.l.b16 %v1338
        %v1901 = vunpack.c.h.b16 %v1338
        %v1902 = vunpack.c.l.b16 %v1339
        %v1903 = vunpack.c.h.b16 %v1339
        %v1904 = vunpack.c.l.b16 %v1340
        %v1905 = vunpack.c.h.b16 %v1340
        %v1906 = vunpack.c.l.b16 %v1341
        %v1907 = vunpack.c.h.b16 %v1341
        %v1908 = vpack.c.b16 %v1900, %v1900
        %v1909 = vpack.c.b16 %v1901, %v1901
        %v1910 = vpack.c.b16 %v1902, %v1902
        %v1911 = vpack.c.b16 %v1903, %v1903
        %v1912 = vpack.c.b16 %v1904, %v1904
        %v1913 = vpack.c.b16 %v1905, %v1905
        %v1914 = vpack.c.b16 %v1906, %v1906
        %v1915 = vpack.c.b16 %v1907, %v1907
        %v2436 = vunpack.c.l.b16 %v1342
        %v2437 = vunpack.c.h.b16 %v1342
        %v2438 = vunpack.c.l.b16 %v1343
        %v2439 = vunpack.c.h.b16 %v1343
        %v2440 = vunpack.c.l.b16 %v1344
        %v2441 = vunpack.c.h.b16 %v1344
        %v2442 = vunpack.c.l.b16 %v1345
        %v2443 = vunpack.c.h.b16 %v1345
        %v2444 = vunpack.c.l.b16 %v1346
        %v2445 = vunpack.c.h.b16 %v1346
        %v2446 = vunpack.c.l.b16 %v1347
        %v2447 = vunpack.c.h.b16 %v1347
        %v2448 = vunpack.c.l.b16 %v1348
        %v2449 = vunpack.c.h.b16 %v1348
        %v2450 = vunpack.c.l.b16 %v1349
        %v2451 = vunpack.c.h.b16 %v1349
        %v2452 = vunpack.c.l.b16 %v1350
        %v2453 = vunpack.c.h.b16 %v1350
        %v2454 = vunpack.c.l.b16 %v1351
        %v2455 = vunpack.c.h.b16 %v1351
        %v2456 = vunpack.c.l.b16 %v1352
        %v2457 = vunpack.c.h.b16 %v1352
        %v2458 = vunpack.c.l.b16 %v1353
        %v2459 = vunpack.c.h.b16 %v1353
        %v2460 = vunpack.c.l.b16 %v1354
        %v2461 = vunpack.c.h.b16 %v1354
        %v2462 = vunpack.c.l.b16 %v1355
        %v2463 = vunpack.c.h.b16 %v1355
        %v2464 = vunpack.c.l.b16 %v1356
        %v2465 = vunpack.c.h.b16 %v1356
        %v2466 = vunpack.c.l.b16 %v1357
        %v2467 = vunpack.c.h.b16 %v1357
        %v2468 = vunpack.c.l.b16 %v1358
        %v2469 = vunpack.c.h.b16 %v1358
        %v2470 = vunpack.c.l.b16 %v1359
        %v2471 = vunpack.c.h.b16 %v1359
        %v2472 = vunpack.c.l.b16 %v1360
        %v2473 = vunpack.c.h.b16 %v1360
        %v2474 = vunpack.c.l.b16 %v1361
        %v2475 = vunpack.c.h.b16 %v1361
        %v2476 = vunpack.c.l.b16 %v1362
        %v2477 = vunpack.c.h.b16 %v1362
        %v2478 = vunpack.c.l.b16 %v1363
        %v2479 = vunpack.c.h.b16 %v1363
        %v2480 = vunpack.c.l.b16 %v1364
        %v2481 = vunpack.c.h.b16 %v1364
        %v2482 = vunpack.c.l.b16 %v1365
        %v2483 = vunpack.c.h.b16 %v1365
        %v2484 = vunpack.c.l.b16 %v1366
        %v2485 = vunpack.c.h.b16 %v1366
        %v2486 = vunpack.c.l.b16 %v1367
        %v2487 = vunpack.c.h.b16 %v1367
        %v2488 = vunpack.c.l.b16 %v1368
        %v2489 = vunpack.c.h.b16 %v1368
        %v2490 = vunpack.c.l.b16 %v1369
        %v2491 = vunpack.c.h.b16 %v1369
        %v2492 = vunpack.c.l.b16 %v1370
        %v2493 = vunpack.c.h.b16 %v1370
        %v2494 = vunpack.c.l.b16 %v1371
        %v2495 = vunpack.c.h.b16 %v1371
        %v2496 = vunpack.c.l.b16 %v1372
        %v2497 = vunpack.c.h.b16 %v1372
        %v2498 = vunpack.c.l.b16 %v1373
        %v2499 = vunpack.c.h.b16 %v1373
        %v2500 = vunpack.c.l.b16 %v1374
        %v2501 = vunpack.c.h.b16 %v1374
        %v2502 = vunpack.c.l.b16 %v1375
        %v2503 = vunpack.c.h.b16 %v1375
        %v2504 = vunpack.c.l.b16 %v1376
        %v2505 = vunpack.c.h.b16 %v1376
        %v2506 = vunpack.c.l.b16 %v1377
        %v2507 = vunpack.c.h.b16 %v1377
        %v2508 = vunpack.c.l.b16 %v1378
        %v2509 = vunpack.c.h.b16 %v1378
        %v2510 = vunpack.c.l.b16 %v1379
        %v2511 = vunpack.c.h.b16 %v1379
        %v2512 = vunpack.c.l.b16 %v1380
        %v2513 = vunpack.c.h.b16 %v1380
        %v2514 = vunpack.c.l.b16 %v1381
        %v2515 = vunpack.c.h.b16 %v1381
        %v2516 = vunpack.c.l.b16 %v1382
        %v2517 = vunpack.c.h.b16 %v1382
        %v2518 = vunpack.c.l.b16 %v1383
        %v2519 = vunpack.c.h.b16 %v1383
        %v2520 = vunpack.c.l.b16 %v1384
        %v2521 = vunpack.c.h.b16 %v1384
        %v2522 = vunpack.c.l.b16 %v1385
        %v2523 = vunpack.c.h.b16 %v1385
        %v2524 = vunpack.c.l.b16 %v1386
        %v2525 = vunpack.c.h.b16 %v1386
        %v2526 = vunpack.c.l.b16 %v1387
        %v2527 = vunpack.c.h.b16 %v1387
        %v2528 = vunpack.c.l.b16 %v1388
        %v2529 = vunpack.c.h.b16 %v1388
        %v2530 = vunpack.c.l.b16 %v1389
        %v2531 = vunpack.c.h.b16 %v1389
        %v2532 = vunpack.c.l.b16 %v1390
        %v2533 = vunpack.c.h.b16 %v1390
        %v2534 = vunpack.c.l.b16 %v1391
        %v2535 = vunpack.c.h.b16 %v1391
        %v2536 = vunpack.c.l.b16 %v1392
        %v2537 = vunpack.c.h.b16 %v1392
        %v2538 = vunpack.c.l.b16 %v1393
        %v2539 = vunpack.c.h.b16 %v1393
        %v2540 = vunpack.c.l.b16 %v1394
        %v2541 = vunpack.c.h.b16 %v1394
        %v2542 = vunpack.c.l.b16 %v1395
        %v2543 = vunpack.c.h.b16 %v1395
        %v2544 = vunpack.c.l.b16 %v1396
        %v2545 = vunpack.c.h.b16 %v1396
        %v2546 = vunpack.c.l.b16 %v1397
        %v2547 = vunpack.c.h.b16 %v1397
        %v2548 = vunpack.c.l.b16 %v1398
        %v2549 = vunpack.c.h.b16 %v1398
        %v2550 = vunpack.c.l.b16 %v1399
        %v2551 = vunpack.c.h.b16 %v1399
        %v2552 = vunpack.c.l.b16 %v1400
        %v2553 = vunpack.c.h.b16 %v1400
        %v2554 = vunpack.c.l.b16 %v1401
        %v2555 = vunpack.c.h.b16 %v1401
        %v2556 = vunpack.c.l.b16 %v1402
        %v2557 = vunpack.c.h.b16 %v1402
        %v2558 = vunpack.c.l.b16 %v1403
        %v2559 = vunpack.c.h.b16 %v1403
        %v2560 = vunpack.c.l.b16 %v1404
        %v2561 = vunpack.c.h.b16 %v1404
        %v2562 = vunpack.c.l.b16 %v1405
        %v2563 = vunpack.c.h.b16 %v1405
        %v2564 = vunpack.c.l.b16 %v1406
        %v2565 = vunpack.c.h.b16 %v1406
        %v2566 = vunpack.c.l.b16 %v1407
        %v2567 = vunpack.c.h.b16 %v1407
        %v2568 = vunpack.c.l.b16 %v1408
        %v2569 = vunpack.c.h.b16 %v1408
        %v2570 = vunpack.c.l.b16 %v1409
        %v2571 = vunpack.c.h.b16 %v1409
        %v2572 = vunpack.c.l.b16 %v1410
        %v2573 = vunpack.c.h.b16 %v1410
        %v2574 = vunpack.c.l.b16 %v1411
        %v2575 = vunpack.c.h.b16 %v1411
        %v2576 = vunpack.c.l.b16 %v1412
        %v2577 = vunpack.c.h.b16 %v1412
        %v2578 = vunpack.c.l.b16 %v1413
        %v2579 = vunpack.c.h.b16 %v1413
        %v2580 = vunpack.c.l.b16 %v1414
        %v2581 = vunpack.c.h.b16 %v1414
        %v2582 = vunpack.c.l.b16 %v1415
        %v2583 = vunpack.c.h.b16 %v1415
        %v2584 = vunpack.c.l.b16 %v1416
        %v2585 = vunpack.c.h.b16 %v1416
        %v2586 = vunpack.c.l.b16 %v1417
        %v2587 = vunpack.c.h.b16 %v1417
        %v2588 = vunpack.c.l.b16 %v1418
        %v2589 = vunpack.c.h.b16 %v1418
        %v2590 = vunpack.c.l.b16 %v1419
        %v2591 = vunpack.c.h.b16 %v1419
        %v2592 = vunpack.c.l.b16 %v1420
        %v2593 = vunpack.c.h.b16 %v1420
        %v2594 = vunpack.c.l.b16 %v1421
        %v2595 = vunpack.c.h.b16 %v1421
        %v2596 = vunpack.c.l.b16 %v1422
        %v2597 = vunpack.c.h.b16 %v1422
        %v2598 = vunpack.c.l.b16 %v1423
        %v2599 = vunpack.c.h.b16 %v1423
        %v2600 = vunpack.c.l.b16 %v1424
        %v2601 = vunpack.c.h.b16 %v1424
        %v2602 = vunpack.c.l.b16 %v1425
        %v2603 = vunpack.c.h.b16 %v1425
        %v2604 = vunpack.c.l.b16 %v1426
        %v2605 = vunpack.c.h.b16 %v1426
        %v2606 = vunpack.c.l.b16 %v1427
        %v2607 = vunpack.c.h.b16 %v1427
        %v2608 = vunpack.c.l.b16 %v1428
        %v2609 = vunpack.c.h.b16 %v1428
        %v2610 = vunpack.c.l.b16 %v1429
        %v2611 = vunpack.c.h.b16 %v1429
        %v2612 = vunpack.c.l.b16 %v1430
        %v2613 = vunpack.c.h.b16 %v1430
        %v2614 = vunpack.c.l.b16 %v1431
        %v2615 = vunpack.c.h.b16 %v1431
        %v2616 = vunpack.c.l.b16 %v1432
        %v2617 = vunpack.c.h.b16 %v1432
        %v2618 = vunpack.c.l.b16 %v1433
        %v2619 = vunpack.c.h.b16 %v1433
        %v2620 = vunpack.c.l.b16 %v1434
        %v2621 = vunpack.c.h.b16 %v1434
        %v2622 = vunpack.c.l.b16 %v1435
        %v2623 = vunpack.c.h.b16 %v1435
        %v2624 = vunpack.c.l.b16 %v1436
        %v2625 = vunpack.c.h.b16 %v1436
        %v2626 = vunpack.c.l.b16 %v1437
        %v2627 = vunpack.c.h.b16 %v1437
        %v2628 = vunpack.c.l.b16 %v1438
        %v2629 = vunpack.c.h.b16 %v1438
        %v2630 = vunpack.c.l.b16 %v1439
        %v2631 = vunpack.c.h.b16 %v1439
        %v2632 = vunpack.c.l.b16 %v1440
        %v2633 = vunpack.c.h.b16 %v1440
        %v2634 = vunpack.c.l.b16 %v1441
        %v2635 = vunpack.c.h.b16 %v1441
        %v2636 = vunpack.c.l.b16 %v1442
        %v2637 = vunpack.c.h.b16 %v1442
        %v2638 = vunpack.c.l.b16 %v1443
        %v2639 = vunpack.c.h.b16 %v1443
        %v2640 = vunpack.c.l.b16 %v1444
        %v2641 = vunpack.c.h.b16 %v1444
        %v2642 = vunpack.c.l.b16 %v1445
        %v2643 = vunpack.c.h.b16 %v1445
        %v2644 = vunpack.c.l.b16 %v1446
        %v2645 = vunpack.c.h.b16 %v1446
        %v2646 = vunpack.c.l.b16 %v1447
        %v2647 = vunpack.c.h.b16 %v1447
        %v2648 = vunpack.c.l.b16 %v1448
        %v2649 = vunpack.c.h.b16 %v1448
        %v2650 = vunpack.c.l.b16 %v1449
        %v2651 = vunpack.c.h.b16 %v1449
        %v2652 = vunpack.c.l.b16 %v1450
        %v2653 = vunpack.c.h.b16 %v1450
        %v2654 = vunpack.c.l.b16 %v1451
        %v2655 = vunpack.c.h.b16 %v1451
        %v2656 = vunpack.c.l.b16 %v1452
        %v2657 = vunpack.c.h.b16 %v1452
        %v2658 = vunpack.c.l.b16 %v1453
        %v2659 = vunpack.c.h.b16 %v1453
        %v2660 = vunpack.c.l.b16 %v1454
        %v2661 = vunpack.c.h.b16 %v1454
        %v2662 = vunpack.c.l.b16 %v1455
        %v2663 = vunpack.c.h.b16 %v1455
        %v2664 = vunpack.c.l.b16 %v1456
        %v2665 = vunpack.c.h.b16 %v1456
        %v2666 = vunpack.c.l.b16 %v1457
        %v2667 = vunpack.c.h.b16 %v1457
        %v2668 = vunpack.c.l.b16 %v1458
        %v2669 = vunpack.c.h.b16 %v1458
        %v2670 = vunpack.c.l.b16 %v1459
        %v2671 = vunpack.c.h.b16 %v1459
        %v2672 = vunpack.c.l.b16 %v1460
        %v2673 = vunpack.c.h.b16 %v1460
        %v2674 = vunpack.c.l.b16 %v1461
        %v2675 = vunpack.c.h.b16 %v1461
        %v2676 = vunpack.c.l.b16 %v1462
        %v2677 = vunpack.c.h.b16 %v1462
        %v2678 = vunpack.c.l.b16 %v1463
        %v2679 = vunpack.c.h.b16 %v1463
        %v2680 = vunpack.c.l.b16 %v1464
        %v2681 = vunpack.c.h.b16 %v1464
        %v2682 = vunpack.c.l.b16 %v1465
        %v2683 = vunpack.c.h.b16 %v1465
        %v2684 = vunpack.c.l.b16 %v1466
        %v2685 = vunpack.c.h.b16 %v1466
        %v2686 = vunpack.c.l.b16 %v1467
        %v2687 = vunpack.c.h.b16 %v1467
        %v2688 = vunpack.c.l.b16 %v1468
        %v2689 = vunpack.c.h.b16 %v1468
        %v2690 = vunpack.c.l.b16 %v1469
        %v2691 = vunpack.c.h.b16 %v1469
        %v2692 = vunpack.c.l.b16 %v1470
        %v2693 = vunpack.c.h.b16 %v1470
        %v2694 = vunpack.c.l.b16 %v1471
        %v2695 = vunpack.c.h.b16 %v1471
        %v2696 = vunpack.c.l.b16 %v1472
        %v2697 = vunpack.c.h.b16 %v1472
        %v2698 = vunpack.c.l.b16 %v1473
        %v2699 = vunpack.c.h.b16 %v1473
        %v2700 = vunpack.c.l.b16 %v1474
        %v2701 = vunpack.c.h.b16 %v1474
        %v2702 = vunpack.c.l.b16 %v1475
        %v2703 = vunpack.c.h.b16 %v1475
        %v2704 = vunpack.c.l.b16 %v1476
        %v2705 = vunpack.c.h.b16 %v1476
        %v2706 = vunpack.c.l.b16 %v1477
        %v2707 = vunpack.c.h.b16 %v1477
        %v2708 = vunpack.c.l.b16 %v1478
        %v2709 = vunpack.c.h.b16 %v1478
        %v2710 = vunpack.c.l.b16 %v1479
        %v2711 = vunpack.c.h.b16 %v1479
        %v2712 = vunpack.c.l.b16 %v1480
        %v2713 = vunpack.c.h.b16 %v1480
        %v2714 = vunpack.c.l.b16 %v1481
        %v2715 = vunpack.c.h.b16 %v1481
        %v2716 = vunpack.c.l.b16 %v1482
        %v2717 = vunpack.c.h.b16 %v1482
        %v2718 = vunpack.c.l.b16 %v1483
        %v2719 = vunpack.c.h.b16 %v1483
        %v2720 = vunpack.c.l.b16 %v1484
        %v2721 = vunpack.c.h.b16 %v1484
        %v2722 = vunpack.c.l.b16 %v1485
        %v2723 = vunpack.c.h.b16 %v1485
        %v2724 = vunpack.c.l.b16 %v1486
        %v2725 = vunpack.c.h.b16 %v1486
        %v2726 = vunpack.c.l.b16 %v1487
        %v2727 = vunpack.c.h.b16 %v1487
        %v2728 = vunpack.c.l.b16 %v1488
        %v2729 = vunpack.c.h.b16 %v1488
        %v2730 = vunpack.c.l.b16 %v1489
        %v2731 = vunpack.c.h.b16 %v1489
        %v2732 = vunpack.c.l.b16 %v1490
        %v2733 = vunpack.c.h.b16 %v1490
        %v2734 = vunpack.c.l.b16 %v1491
        %v2735 = vunpack.c.h.b16 %v1491
        %v2736 = vunpack.c.l.b16 %v1492
        %v2737 = vunpack.c.h.b16 %v1492
        %v2738 = vunpack.c.l.b16 %v1493
        %v2739 = vunpack.c.h.b16 %v1493
        %v2740 = vunpack.c.l.b16 %v1494
        %v2741 = vunpack.c.h.b16 %v1494
        %v2742 = vunpack.c.l.b16 %v1495
        %v2743 = vunpack.c.h.b16 %v1495
        %v2744 = vunpack.c.l.b16 %v1496
        %v2745 = vunpack.c.h.b16 %v1496
        %v2746 = vunpack.c.l.b16 %v1497
        %v2747 = vunpack.c.h.b16 %v1497
        %v2748 = vunpack.c.l.b16 %v1498
        %v2749 = vunpack.c.h.b16 %v1498
        %v2750 = vunpack.c.l.b16 %v1499
        %v2751 = vunpack.c.h.b16 %v1499
        %v2752 = vunpack.c.l.b16 %v1500
        %v2753 = vunpack.c.h.b16 %v1500
        %v2754 = vunpack.c.l.b16 %v1501
        %v2755 = vunpack.c.h.b16 %v1501
        %v2756 = vunpack.c.l.b16 %v1502
        %v2757 = vunpack.c.h.b16 %v1502
        %v2758 = vunpack.c.l.b16 %v1503
        %v2759 = vunpack.c.h.b16 %v1503
        %v2760 = vunpack.c.l.b16 %v1504
        %v2761 = vunpack.c.h.b16 %v1504
        %v2762 = vunpack.c.l.b16 %v1505
        %v2763 = vunpack.c.h.b16 %v1505
        %v2764 = vunpack.c.l.b16 %v1506
        %v2765 = vunpack.c.h.b16 %v1506
        %v2766 = vunpack.c.l.b16 %v1507
        %v2767 = vunpack.c.h.b16 %v1507
        %v2768 = vunpack.c.l.b16 %v1508
        %v2769 = vunpack.c.h.b16 %v1508
        %v2770 = vunpack.c.l.b16 %v1509
        %v2771 = vunpack.c.h.b16 %v1509
        %v2772 = vunpack.c.l.b16 %v1510
        %v2773 = vunpack.c.h.b16 %v1510
        %v2774 = vunpack.c.l.b16 %v1511
        %v2775 = vunpack.c.h.b16 %v1511
        %v2776 = vunpack.c.l.b16 %v1512
        %v2777 = vunpack.c.h.b16 %v1512
        %v2778 = vunpack.c.l.b16 %v1513
        %v2779 = vunpack.c.h.b16 %v1513
        %v2780 = vunpack.c.l.b16 %v1514
        %v2781 = vunpack.c.h.b16 %v1514
        %v2782 = vunpack.c.l.b16 %v1515
        %v2783 = vunpack.c.h.b16 %v1515
        %v2784 = vunpack.c.l.b16 %v1516
        %v2785 = vunpack.c.h.b16 %v1516
        %v2786 = vunpack.c.l.b16 %v1517
        %v2787 = vunpack.c.h.b16 %v1517
        %v2788 = vunpack.c.l.b16 %v1518
        %v2789 = vunpack.c.h.b16 %v1518
        %v2790 = vunpack.c.l.b16 %v1519
        %v2791 = vunpack.c.h.b16 %v1519
        %v2792 = vunpack.c.l.b16 %v1520
        %v2793 = vunpack.c.h.b16 %v1520
        %v2794 = vunpack.c.l.b16 %v1521
        %v2795 = vunpack.c.h.b16 %v1521
        %v2796 = vunpack.c.l.b16 %v1522
        %v2797 = vunpack.c.h.b16 %v1522
        %v2798 = vunpack.c.l.b16 %v1523
        %v2799 = vunpack.c.h.b16 %v1523
        %v2800 = vunpack.c.l.b16 %v1524
        %v2801 = vunpack.c.h.b16 %v1524
        %v2802 = vunpack.c.l.b16 %v1525
        %v2803 = vunpack.c.h.b16 %v1525
        %v2804 = vunpack.c.l.b16 %v1526
        %v2805 = vunpack.c.h.b16 %v1526
        %v2806 = vunpack.c.l.b16 %v1527
        %v2807 = vunpack.c.h.b16 %v1527
        %v2808 = vunpack.c.l.b16 %v1528
        %v2809 = vunpack.c.h.b16 %v1528
        %v2810 = vunpack.c.l.b16 %v1529
        %v2811 = vunpack.c.h.b16 %v1529
        %v2812 = vunpack.c.l.b16 %v1530
        %v2813 = vunpack.c.h.b16 %v1530
        %v2814 = vunpack.c.l.b16 %v1531
        %v2815 = vunpack.c.h.b16 %v1531
        %v2816 = vunpack.c.l.b16 %v1532
        %v2817 = vunpack.c.h.b16 %v1532
        %v2818 = vunpack.c.l.b16 %v1533
        %v2819 = vunpack.c.h.b16 %v1533
        %v2820 = vunpack.c.l.b16 %v1534
        %v2821 = vunpack.c.h.b16 %v1534
        %v2822 = vunpack.c.l.b16 %v1535
        %v2823 = vunpack.c.h.b16 %v1535
        %v2824 = vunpack.c.l.b16 %v1536
        %v2825 = vunpack.c.h.b16 %v1536
        %v2826 = vunpack.c.l.b16 %v1537
        %v2827 = vunpack.c.h.b16 %v1537
        %v2828 = vunpack.c.l.b16 %v1538
        %v2829 = vunpack.c.h.b16 %v1538
        %v2830 = vunpack.c.l.b16 %v1539
        %v2831 = vunpack.c.h.b16 %v1539
        %v2832 = vunpack.c.l.b16 %v1540
        %v2833 = vunpack.c.h.b16 %v1540
        %v2834 = vunpack.c.l.b16 %v1541
        %v2835 = vunpack.c.h.b16 %v1541
        %v2836 = vunpack.c.l.b16 %v1542
        %v2837 = vunpack.c.h.b16 %v1542
        %v2838 = vunpack.c.l.b16 %v1543
        %v2839 = vunpack.c.h.b16 %v1543
        %v2840 = vunpack.c.l.b16 %v1544
        %v2841 = vunpack.c.h.b16 %v1544
        %v2842 = vunpack.c.l.b16 %v1545
        %v2843 = vunpack.c.h.b16 %v1545
        %v2844 = vunpack.c.l.b16 %v1546
        %v2845 = vunpack.c.h.b16 %v1546
        %v2846 = vunpack.c.l.b16 %v1547
        %v2847 = vunpack.c.h.b16 %v1547
        %v2848 = vunpack.c.l.b16 %v1548
        %v2849 = vunpack.c.h.b16 %v1548
        %v2850 = vunpack.c.l.b16 %v1549
        %v2851 = vunpack.c.h.b16 %v1549
        %v2852 = vunpack.c.l.b16 %v1550
        %v2853 = vunpack.c.h.b16 %v1550
        %v2854 = vunpack.c.l.b16 %v1551
        %v2855 = vunpack.c.h.b16 %v1551
        %v2856 = vunpack.c.l.b16 %v1552
        %v2857 = vunpack.c.h.b16 %v1552
        %v2858 = vunpack.c.l.b16 %v1553
        %v2859 = vunpack.c.h.b16 %v1553
        %v2860 = vunpack.c.l.b16 %v1554
        %v2861 = vunpack.c.h.b16 %v1554
        %v2862 = vunpack.c.l.b16 %v1555
        %v2863 = vunpack.c.h.b16 %v1555
        %v2864 = vunpack.c.l.b16 %v1556
        %v2865 = vunpack.c.h.b16 %v1556
        %v2866 = vunpack.c.l.b16 %v1557
        %v2867 = vunpack.c.h.b16 %v1557
        %v2868 = vunpack.c.l.b16 %v1558
        %v2869 = vunpack.c.h.b16 %v1558
        %v2870 = vunpack.c.l.b16 %v1559
        %v2871 = vunpack.c.h.b16 %v1559
        %v2872 = vunpack.c.l.b16 %v1560
        %v2873 = vunpack.c.h.b16 %v1560
        %v2874 = vunpack.c.l.b16 %v1561
        %v2875 = vunpack.c.h.b16 %v1561
        %v2876 = vunpack.c.l.b16 %v1562
        %v2877 = vunpack.c.h.b16 %v1562
        %v2878 = vunpack.c.l.b16 %v1563
        %v2879 = vunpack.c.h.b16 %v1563
        %v2880 = vunpack.c.l.b16 %v1564
        %v2881 = vunpack.c.h.b16 %v1564
        %v2882 = vunpack.c.l.b16 %v1565
        %v2883 = vunpack.c.h.b16 %v1565
        %v2884 = vunpack.c.l.b16 %v1566
        %v2885 = vunpack.c.h.b16 %v1566
        %v2886 = vunpack.c.l.b16 %v1567
        %v2887 = vunpack.c.h.b16 %v1567
        %v2888 = vunpack.c.l.b16 %v1568
        %v2889 = vunpack.c.h.b16 %v1568
        %v2890 = vunpack.c.l.b16 %v1569
        %v2891 = vunpack.c.h.b16 %v1569
        %v2892 = vunpack.c.l.b16 %v1570
        %v2893 = vunpack.c.h.b16 %v1570
        %v2894 = vunpack.c.l.b16 %v1571
        %v2895 = vunpack.c.h.b16 %v1571
        %v2896 = vunpack.c.l.b16 %v1572
        %v2897 = vunpack.c.h.b16 %v1572
        %v2898 = vunpack.c.l.b16 %v1573
        %v2899 = vunpack.c.h.b16 %v1573
        %v2900 = vunpack.c.l.b16 %v1574
        %v2901 = vunpack.c.h.b16 %v1574
        %v2902 = vunpack.c.l.b16 %v1575
        %v2903 = vunpack.c.h.b16 %v1575
        %v2904 = vunpack.c.l.b16 %v1576
        %v2905 = vunpack.c.h.b16 %v1576
        %v2906 = vunpack.c.l.b16 %v1577
        %v2907 = vunpack.c.h.b16 %v1577
        %v2908 = vunpack.c.l.b16 %v1578
        %v2909 = vunpack.c.h.b16 %v1578
        %v2910 = vunpack.c.l.b16 %v1579
        %v2911 = vunpack.c.h.b16 %v1579
        %v2912 = vunpack.c.l.b16 %v1580
        %v2913 = vunpack.c.h.b16 %v1580
        %v2914 = vunpack.c.l.b16 %v1581
        %v2915 = vunpack.c.h.b16 %v1581
        %v2916 = vunpack.c.l.b16 %v1582
        %v2917 = vunpack.c.h.b16 %v1582
        %v2918 = vunpack.c.l.b16 %v1583
        %v2919 = vunpack.c.h.b16 %v1583
        %v2920 = vunpack.c.l.b16 %v1584
        %v2921 = vunpack.c.h.b16 %v1584
        %v2922 = vunpack.c.l.b16 %v1585
        %v2923 = vunpack.c.h.b16 %v1585
        %v2924 = vunpack.c.l.b16 %v1586
        %v2925 = vunpack.c.h.b16 %v1586
        %v2926 = vunpack.c.l.b16 %v1587
        %v2927 = vunpack.c.h.b16 %v1587
        %v2928 = vunpack.c.l.b16 %v1588
        %v2929 = vunpack.c.h.b16 %v1588
        %v2930 = vunpack.c.l.b16 %v1589
        %v2931 = vunpack.c.h.b16 %v1589
        %v2932 = vunpack.c.l.b16 %v1590
        %v2933 = vunpack.c.h.b16 %v1590
        %v2934 = vunpack.c.l.b16 %v1591
        %v2935 = vunpack.c.h.b16 %v1591
        %v2936 = vunpack.c.l.b16 %v1592
        %v2937 = vunpack.c.h.b16 %v1592
        %v2938 = vunpack.c.l.b16 %v1593
        %v2939 = vunpack.c.h.b16 %v1593
        %v2940 = vunpack.c.l.b16 %v1594
        %v2941 = vunpack.c.h.b16 %v1594
        %v2942 = vunpack.c.l.b16 %v1595
        %v2943 = vunpack.c.h.b16 %v1595
        %v2944 = vunpack.c.l.b16 %v1596
        %v2945 = vunpack.c.h.b16 %v1596
        %v2946 = vunpack.c.l.b16 %v1597
        %v2947 = vunpack.c.h.b16 %v1597
        %v2948 = vunpack.c.l.b16 %v1598
        %v2949 = vunpack.c.h.b16 %v1598
        %v2950 = vunpack.c.l.b16 %v1599
        %v2951 = vunpack.c.h.b16 %v1599
        %v2952 = vunpack.c.l.b16 %v1600
        %v2953 = vunpack.c.h.b16 %v1600
        %v2954 = vunpack.c.l.b16 %v1601
        %v2955 = vunpack.c.h.b16 %v1601
        %v2956 = vunpack.c.l.b16 %v1602
        %v2957 = vunpack.c.h.b16 %v1602
        %v2958 = vunpack.c.l.b16 %v1603
        %v2959 = vunpack.c.h.b16 %v1603
        %v2960 = vunpack.c.l.b16 %v1604
        %v2961 = vunpack.c.h.b16 %v1604
        %v2962 = vunpack.c.l.b16 %v1605
        %v2963 = vunpack.c.h.b16 %v1605
        %v2964 = vunpack.c.l.b16 %v1606
        %v2965 = vunpack.c.h.b16 %v1606
        %v2966 = vunpack.c.l.b16 %v1607
        %v2967 = vunpack.c.h.b16 %v1607
        %v2968 = vunpack.c.l.b16 %v1608
        %v2969 = vunpack.c.h.b16 %v1608
        %v2970 = vunpack.c.l.b16 %v1609
        %v2971 = vunpack.c.h.b16 %v1609
        %v2972 = vunpack.c.l.b16 %v1610
        %v2973 = vunpack.c.h.b16 %v1610
        %v2974 = vunpack.c.l.b16 %v1611
        %v2975 = vunpack.c.h.b16 %v1611
        %v2976 = vunpack.c.l.b16 %v1612
        %v2977 = vunpack.c.h.b16 %v1612
        %v2978 = vunpack.c.l.b16 %v1613
        %v2979 = vunpack.c.h.b16 %v1613
        %v2980 = vunpack.c.l.b16 %v1614
        %v2981 = vunpack.c.h.b16 %v1614
        %v2982 = vunpack.c.l.b16 %v1615
        %v2983 = vunpack.c.h.b16 %v1615
        %v2984 = vunpack.c.l.b16 %v1616
        %v2985 = vunpack.c.h.b16 %v1616
        %v2986 = vunpack.c.l.b16 %v1617
        %v2987 = vunpack.c.h.b16 %v1617
        %v2988 = vunpack.c.l.b16 %v1618
        %v2989 = vunpack.c.h.b16 %v1618
        %v2990 = vunpack.c.l.b16 %v1619
        %v2991 = vunpack.c.h.b16 %v1619
        %v2992 = vunpack.c.l.b16 %v1620
        %v2993 = vunpack.c.h.b16 %v1620
        %v2994 = vunpack.c.l.b16 %v1621
        %v2995 = vunpack.c.h.b16 %v1621
        %v2996 = vunpack.c.l.b16 %v1622
        %v2997 = vunpack.c.h.b16 %v1622
        %v2998 = vunpack.c.l.b16 %v1623
        %v2999 = vunpack.c.h.b16 %v1623
        %v3000 = vunpack.c.l.b16 %v1624
        %v3001 = vunpack.c.h.b16 %v1624
        %v3002 = vunpack.c.l.b16 %v1625
        %v3003 = vunpack.c.h.b16 %v1625
        %v3004 = vunpack.c.l.b16 %v1626
        %v3005 = vunpack.c.h.b16 %v1626
        %v3006 = vunpack.c.l.b16 %v1627
        %v3007 = vunpack.c.h.b16 %v1627
        %v3008 = vunpack.c.l.b16 %v1628
        %v3009 = vunpack.c.h.b16 %v1628
        %v3010 = vunpack.c.l.b16 %v1629
        %v3011 = vunpack.c.h.b16 %v1629
        %v3012 = vunpack.c.l.b16 %v1630
        %v3013 = vunpack.c.h.b16 %v1630
        %v3014 = vunpack.c.l.b16 %v1631
        %v3015 = vunpack.c.h.b16 %v1631
        %v3016 = vunpack.c.l.b16 %v1632
        %v3017 = vunpack.c.h.b16 %v1632
        %v3018 = vunpack.c.l.b16 %v1633
        %v3019 = vunpack.c.h.b16 %v1633
        %v3020 = vunpack.c.l.b16 %v1634
        %v3021 = vunpack.c.h.b16 %v1634
        %v3022 = vunpack.c.l.b16 %v1635
        %v3023 = vunpack.c.h.b16 %v1635
        %v3024 = vunpack.c.l.b16 %v1636
        %v3025 = vunpack.c.h.b16 %v1636
        %v3026 = vunpack.c.l.b16 %v1637
        %v3027 = vunpack.c.h.b16 %v1637
        %v3028 = vunpack.c.l.b16 %v1638
        %v3029 = vunpack.c.h.b16 %v1638
        %v3030 = vunpack.c.l.b16 %v1639
        %v3031 = vunpack.c.h.b16 %v1639
        %v3032 = vunpack.c.l.b16 %v1640
        %v3033 = vunpack.c.h.b16 %v1640
        %v3034 = vunpack.c.l.b16 %v1641
        %v3035 = vunpack.c.h.b16 %v1641
        %v3036 = vunpack.c.l.b16 %v1642
        %v3037 = vunpack.c.h.b16 %v1642
        %v3038 = vunpack.c.l.b16 %v1643
        %v3039 = vunpack.c.h.b16 %v1643
        %v3040 = vunpack.c.l.b16 %v1644
        %v3041 = vunpack.c.h.b16 %v1644
        %v3042 = vunpack.c.l.b16 %v1645
        %v3043 = vunpack.c.h.b16 %v1645
        %v3044 = vunpack.c.l.b16 %v1646
        %v3045 = vunpack.c.h.b16 %v1646
        %v3046 = vunpack.c.l.b16 %v1647
        %v3047 = vunpack.c.h.b16 %v1647
        %v3048 = vunpack.c.l.b16 %v1648
        %v3049 = vunpack.c.h.b16 %v1648
        %v3050 = vunpack.c.l.b16 %v1649
        %v3051 = vunpack.c.h.b16 %v1649
        %v3052 = vunpack.c.l.b16 %v1650
        %v3053 = vunpack.c.h.b16 %v1650
        %v3054 = vunpack.c.l.b16 %v1651
        %v3055 = vunpack.c.h.b16 %v1651
        %v3056 = vunpack.c.l.b16 %v1652
        %v3057 = vunpack.c.h.b16 %v1652
        %v3058 = vunpack.c.l.b16 %v1653
        %v3059 = vunpack.c.h.b16 %v1653
        %v3060 = vunpack.c.l.b16 %v1654
        %v3061 = vunpack.c.h.b16 %v1654
        %v3062 = vunpack.c.l.b16 %v1655
        %v3063 = vunpack.c.h.b16 %v1655
        %v3064 = vunpack.c.l.b16 %v1656
        %v3065 = vunpack.c.h.b16 %v1656
        %v3066 = vunpack.c.l.b16 %v1657
        %v3067 = vunpack.c.h.b16 %v1657
        %v3068 = vunpack.c.l.b16 %v1658
        %v3069 = vunpack.c.h.b16 %v1658
        %v3070 = vunpack.c.l.b16 %v1659
        %v3071 = vunpack.c.h.b16 %v1659
        %v3072 = vunpack.c.l.b16 %v1660
        %v3073 = vunpack.c.h.b16 %v1660
        %v3074 = vunpack.c.l.b16 %v1661
        %v3075 = vunpack.c.h.b16 %v1661
        %v3076 = vunpack.c.l.b16 %v1662
        %v3077 = vunpack.c.h.b16 %v1662
        %v3078 = vunpack.c.l.b16 %v1663
        %v3079 = vunpack.c.h.b16 %v1663
        %v3080 = vunpack.c.l.b16 %v1664
        %v3081 = vunpack.c.h.b16 %v1664
        %v3082 = vunpack.c.l.b16 %v1665
        %v3083 = vunpack.c.h.b16 %v1665
        %v3084 = vunpack.c.l.b16 %v1666
        %v3085 = vunpack.c.h.b16 %v1666
        %v3086 = vunpack.c.l.b16 %v1667
        %v3087 = vunpack.c.h.b16 %v1667
        %v3088 = vunpack.c.l.b16 %v1668
        %v3089 = vunpack.c.h.b16 %v1668
        %v3090 = vunpack.c.l.b16 %v1669
        %v3091 = vunpack.c.h.b16 %v1669
        %v3092 = vunpack.c.l.b16 %v1670
        %v3093 = vunpack.c.h.b16 %v1670
        %v3094 = vunpack.c.l.b16 %v1671
        %v3095 = vunpack.c.h.b16 %v1671
        %v3096 = vunpack.c.l.b16 %v1672
        %v3097 = vunpack.c.h.b16 %v1672
        %v3098 = vunpack.c.l.b16 %v1673
        %v3099 = vunpack.c.h.b16 %v1673
        %v3100 = vunpack.c.l.b16 %v1674
        %v3101 = vunpack.c.h.b16 %v1674
        %v3102 = vunpack.c.l.b16 %v1675
        %v3103 = vunpack.c.h.b16 %v1675
        %v3104 = vunpack.c.l.b16 %v1676
        %v3105 = vunpack.c.h.b16 %v1676
        %v3106 = vunpack.c.l.b16 %v1677
        %v3107 = vunpack.c.h.b16 %v1677
        %v3108 = vunpack.c.l.b16 %v1678
        %v3109 = vunpack.c.h.b16 %v1678
        %v3110 = vunpack.c.l.b16 %v1679
        %v3111 = vunpack.c.h.b16 %v1679
        %v3112 = vunpack.c.l.b16 %v1680
        %v3113 = vunpack.c.h.b16 %v1680
        %v3114 = vunpack.c.l.b16 %v1681
        %v3115 = vunpack.c.h.b16 %v1681
        %v3116 = vunpack.c.l.b16 %v1682
        %v3117 = vunpack.c.h.b16 %v1682
        %v3118 = vunpack.c.l.b16 %v1683
        %v3119 = vunpack.c.h.b16 %v1683
        %v3120 = vunpack.c.l.b16 %v1684
        %v3121 = vunpack.c.h.b16 %v1684
        %v3122 = vunpack.c.l.b16 %v1685
        %v3123 = vunpack.c.h.b16 %v1685
        %v3124 = vunpack.c.l.b16 %v1686
        %v3125 = vunpack.c.h.b16 %v1686
        %v3126 = vunpack.c.l.b16 %v1687
        %v3127 = vunpack.c.h.b16 %v1687
        %v3128 = vunpack.c.l.b16 %v1688
        %v3129 = vunpack.c.h.b16 %v1688
        %v3130 = vunpack.c.l.b16 %v1689
        %v3131 = vunpack.c.h.b16 %v1689
        %v3132 = vunpack.c.l.b16 %v1690
        %v3133 = vunpack.c.h.b16 %v1690
        %v3134 = vunpack.c.l.b16 %v1691
        %v3135 = vunpack.c.h.b16 %v1691
        %v3136 = vunpack.c.l.b16 %v1692
        %v3137 = vunpack.c.h.b16 %v1692
        %v3138 = vunpack.c.l.b16 %v1693
        %v3139 = vunpack.c.h.b16 %v1693
        %v3140 = vunpack.c.l.b16 %v1694
        %v3141 = vunpack.c.h.b16 %v1694
        %v3142 = vunpack.c.l.b16 %v1695
        %v3143 = vunpack.c.h.b16 %v1695
        %v3144 = vunpack.c.l.b16 %v1696
        %v3145 = vunpack.c.h.b16 %v1696
        %v3146 = vunpack.c.l.b16 %v1697
        %v3147 = vunpack.c.h.b16 %v1697
        %v3148 = vunpack.c.l.b16 %v1698
        %v3149 = vunpack.c.h.b16 %v1698
        %v3150 = vunpack.c.l.b16 %v1699
        %v3151 = vunpack.c.h.b16 %v1699
        %v3152 = vunpack.c.l.b16 %v1700
        %v3153 = vunpack.c.h.b16 %v1700
        %v3154 = vunpack.c.l.b16 %v1701
        %v3155 = vunpack.c.h.b16 %v1701
        %v3156 = vunpack.c.l.b16 %v1702
        %v3157 = vunpack.c.h.b16 %v1702
        %v3158 = vunpack.c.l.b16 %v1703
        %v3159 = vunpack.c.h.b16 %v1703
        %v3160 = vunpack.c.l.b16 %v1704
        %v3161 = vunpack.c.h.b16 %v1704
        %v3162 = vunpack.c.l.b16 %v1705
        %v3163 = vunpack.c.h.b16 %v1705
        %v3164 = vunpack.c.l.b16 %v1706
        %v3165 = vunpack.c.h.b16 %v1706
        %v3166 = vunpack.c.l.b16 %v1707
        %v3167 = vunpack.c.h.b16 %v1707
        %v3168 = vunpack.c.l.b16 %v1708
        %v3169 = vunpack.c.h.b16 %v1708
        %v3170 = vunpack.c.l.b16 %v1709
        %v3171 = vunpack.c.h.b16 %v1709
        %v3172 = vunpack.c.l.b16 %v1710
        %v3173 = vunpack.c.h.b16 %v1710
        %v3174 = vunpack.c.l.b16 %v1711
        %v3175 = vunpack.c.h.b16 %v1711
        %v3176 = vunpack.c.l.b16 %v1712
        %v3177 = vunpack.c.h.b16 %v1712
        %v3178 = vunpack.c.l.b16 %v1713
        %v3179 = vunpack.c.h.b16 %v1713
        %v3180 = vunpack.c.l.b16 %v1714
        %v3181 = vunpack.c.h.b16 %v1714
        %v3182 = vunpack.c.l.b16 %v1715
        %v3183 = vunpack.c.h.b16 %v1715
        %v3184 = vunpack.c.l.b16 %v1716
        %v3185 = vunpack.c.h.b16 %v1716
        %v3186 = vunpack.c.l.b16 %v1717
        %v3187 = vunpack.c.h.b16 %v1717
        %v3188 = vunpack.c.l.b16 %v1718
        %v3189 = vunpack.c.h.b16 %v1718
        %v3190 = vunpack.c.l.b16 %v1719
        %v3191 = vunpack.c.h.b16 %v1719
        %v3192 = vunpack.c.l.b16 %v1720
        %v3193 = vunpack.c.h.b16 %v1720
        %v3194 = vunpack.c.l.b16 %v1721
        %v3195 = vunpack.c.h.b16 %v1721
        %v3196 = vunpack.c.l.b16 %v1722
        %v3197 = vunpack.c.h.b16 %v1722
        %v3198 = vunpack.c.l.b16 %v1723
        %v3199 = vunpack.c.h.b16 %v1723
        %v3200 = vunpack.c.l.b16 %v1724
        %v3201 = vunpack.c.h.b16 %v1724
        %v3202 = vunpack.c.l.b16 %v1725
        %v3203 = vunpack.c.h.b16 %v1725
        %v3204 = vunpack.c.l.b16 %v1726
        %v3205 = vunpack.c.h.b16 %v1726
        %v3206 = vunpack.c.l.b16 %v1727
        %v3207 = vunpack.c.h.b16 %v1727
        %v3208 = vunpack.c.l.b16 %v1728
        %v3209 = vunpack.c.h.b16 %v1728
        %v3210 = vunpack.c.l.b16 %v1729
        %v3211 = vunpack.c.h.b16 %v1729
        %v3212 = vunpack.c.l.b16 %v1730
        %v3213 = vunpack.c.h.b16 %v1730
        %v3214 = vunpack.c.l.b16 %v1731
        %v3215 = vunpack.c.h.b16 %v1731
        %v3216 = vunpack.c.l.b16 %v1732
        %v3217 = vunpack.c.h.b16 %v1732
        %v3218 = vunpack.c.l.b16 %v1733
        %v3219 = vunpack.c.h.b16 %v1733
        %v3220 = vunpack.c.l.b16 %v1734
        %v3221 = vunpack.c.h.b16 %v1734
        %v3222 = vunpack.c.l.b16 %v1735
        %v3223 = vunpack.c.h.b16 %v1735
        %v3224 = vunpack.c.l.b16 %v1736
        %v3225 = vunpack.c.h.b16 %v1736
        %v3226 = vunpack.c.l.b16 %v1737
        %v3227 = vunpack.c.h.b16 %v1737
        %v3228 = vunpack.c.l.b16 %v1738
        %v3229 = vunpack.c.h.b16 %v1738
        %v3230 = vunpack.c.l.b16 %v1739
        %v3231 = vunpack.c.h.b16 %v1739
        %v3232 = vunpack.c.l.b16 %v1740
        %v3233 = vunpack.c.h.b16 %v1740
        %v3234 = vunpack.c.l.b16 %v1741
        %v3235 = vunpack.c.h.b16 %v1741
        %v3236 = vunpack.c.l.b16 %v1742
        %v3237 = vunpack.c.h.b16 %v1742
        %v3238 = vunpack.c.l.b16 %v1743
        %v3239 = vunpack.c.h.b16 %v1743
        %v3240 = vunpack.c.l.b16 %v1744
        %v3241 = vunpack.c.h.b16 %v1744
        %v3242 = vunpack.c.l.b16 %v1745
        %v3243 = vunpack.c.h.b16 %v1745
        %v3244 = vunpack.c.l.b16 %v1746
        %v3245 = vunpack.c.h.b16 %v1746
        %v3246 = vunpack.c.l.b16 %v1747
        %v3247 = vunpack.c.h.b16 %v1747
        %v3248 = vunpack.c.l.b16 %v1748
        %v3249 = vunpack.c.h.b16 %v1748
        %v3250 = vunpack.c.l.b16 %v1749
        %v3251 = vunpack.c.h.b16 %v1749
        %v3252 = vunpack.c.l.b16 %v1750
        %v3253 = vunpack.c.h.b16 %v1750
        %v3254 = vunpack.c.l.b16 %v1751
        %v3255 = vunpack.c.h.b16 %v1751
        %v3256 = vunpack.c.l.b16 %v1752
        %v3257 = vunpack.c.h.b16 %v1752
        %v3258 = vunpack.c.l.b16 %v1753
        %v3259 = vunpack.c.h.b16 %v1753
        %v3260 = vunpack.c.l.b16 %v1754
        %v3261 = vunpack.c.h.b16 %v1754
        %v3262 = vunpack.c.l.b16 %v1755
        %v3263 = vunpack.c.h.b16 %v1755
        %v3264 = vunpack.c.l.b16 %v1756
        %v3265 = vunpack.c.h.b16 %v1756
        %v3266 = vunpack.c.l.b16 %v1757
        %v3267 = vunpack.c.h.b16 %v1757
        %v3268 = vunpack.c.l.b16 %v1758
        %v3269 = vunpack.c.h.b16 %v1758
        %v3270 = vunpack.c.l.b16 %v1759
        %v3271 = vunpack.c.h.b16 %v1759
        %v3272 = vunpack.c.l.b16 %v1760
        %v3273 = vunpack.c.h.b16 %v1760
        %v3274 = vunpack.c.l.b16 %v1761
        %v3275 = vunpack.c.h.b16 %v1761
        %v3276 = vunpack.c.l.b16 %v1762
        %v3277 = vunpack.c.h.b16 %v1762
        %v3278 = vunpack.c.l.b16 %v1763
        %v3279 = vunpack.c.h.b16 %v1763
        %v3280 = vunpack.c.l.b16 %v1764
        %v3281 = vunpack.c.h.b16 %v1764
        %v3282 = vunpack.c.l.b16 %v1765
        %v3283 = vunpack.c.h.b16 %v1765
        %v3284 = vunpack.c.l.b16 %v1766
        %v3285 = vunpack.c.h.b16 %v1766
        %v3286 = vunpack.c.l.b16 %v1767
        %v3287 = vunpack.c.h.b16 %v1767
        %v3288 = vunpack.c.l.b16 %v1768
        %v3289 = vunpack.c.h.b16 %v1768
        %v3290 = vunpack.c.l.b16 %v1769
        %v3291 = vunpack.c.h.b16 %v1769
        %v3292 = vunpack.c.l.b16 %v1770
        %v3293 = vunpack.c.h.b16 %v1770
        %v3294 = vunpack.c.l.b16 %v1771
        %v3295 = vunpack.c.h.b16 %v1771
        %v3296 = vunpack.c.l.b16 %v1772
        %v3297 = vunpack.c.h.b16 %v1772
        %v3298 = vunpack.c.l.b16 %v1773
        %v3299 = vunpack.c.h.b16 %v1773
        %v3300 = vunpack.c.l.b16 %v1774
        %v3301 = vunpack.c.h.b16 %v1774
        %v3302 = vunpack.c.l.b16 %v1775
        %v3303 = vunpack.c.h.b16 %v1775
        %v3304 = vunpack.c.l.b16 %v1776
        %v3305 = vunpack.c.h.b16 %v1776
        %v3306 = vunpack.c.l.b16 %v1777
        %v3307 = vunpack.c.h.b16 %v1777
        %v3308 = vunpack.c.l.b16 %v1778
        %v3309 = vunpack.c.h.b16 %v1778
        %v3310 = vunpack.c.l.b16 %v1779
        %v3311 = vunpack.c.h.b16 %v1779
        %v3312 = vunpack.c.l.b16 %v1780
        %v3313 = vunpack.c.h.b16 %v1780
        %v3314 = vunpack.c.l.b16 %v1781
        %v3315 = vunpack.c.h.b16 %v1781
        %v3316 = vunpack.c.l.b16 %v1782
        %v3317 = vunpack.c.h.b16 %v1782
        %v3318 = vunpack.c.l.b16 %v1783
        %v3319 = vunpack.c.h.b16 %v1783
        %v3320 = vunpack.c.l.b16 %v1784
        %v3321 = vunpack.c.h.b16 %v1784
        %v3322 = vunpack.c.l.b16 %v1785
        %v3323 = vunpack.c.h.b16 %v1785
        %v3324 = vunpack.c.l.b16 %v1786
        %v3325 = vunpack.c.h.b16 %v1786
        %v3326 = vunpack.c.l.b16 %v1787
        %v3327 = vunpack.c.h.b16 %v1787
        %v3328 = vunpack.c.l.b16 %v1788
        %v3329 = vunpack.c.h.b16 %v1788
        %v3330 = vunpack.c.l.b16 %v1789
        %v3331 = vunpack.c.h.b16 %v1789
        %v3332 = vunpack.c.l.b16 %v1790
        %v3333 = vunpack.c.h.b16 %v1790
        %v3334 = vunpack.c.l.b16 %v1791
        %v3335 = vunpack.c.h.b16 %v1791
        %v3336 = vunpack.c.l.b16 %v1792
        %v3337 = vunpack.c.h.b16 %v1792
        %v3338 = vunpack.c.l.b16 %v1793
        %v3339 = vunpack.c.h.b16 %v1793
        %v3340 = vunpack.c.l.b16 %v1794
        %v3341 = vunpack.c.h.b16 %v1794
        %v3342 = vunpack.c.l.b16 %v1795
        %v3343 = vunpack.c.h.b16 %v1795
        %v3344 = vunpack.c.l.b16 %v1796
        %v3345 = vunpack.c.h.b16 %v1796
        %v3346 = vunpack.c.l.b16 %v1797
        %v3347 = vunpack.c.h.b16 %v1797
        %v3348 = vunpack.c.l.b16 %v1798
        %v3349 = vunpack.c.h.b16 %v1798
        %v3350 = vunpack.c.l.b16 %v1799
        %v3351 = vunpack.c.h.b16 %v1799
        %v3352 = vunpack.c.l.b16 %v1800
        %v3353 = vunpack.c.h.b16 %v1800
        %v3354 = vunpack.c.l.b16 %v1801
        %v3355 = vunpack.c.h.b16 %v1801
        %v3356 = vunpack.c.l.b16 %v1802
        %v3357 = vunpack.c.h.b16 %v1802
        %v3358 = vunpack.c.l.b16 %v1803
        %v3359 = vunpack.c.h.b16 %v1803
        %v3360 = vunpack.c.l.b16 %v1804
        %v3361 = vunpack.c.h.b16 %v1804
        %v3362 = vunpack.c.l.b16 %v1805
        %v3363 = vunpack.c.h.b16 %v1805
        %v3364 = vunpack.c.l.b16 %v1806
        %v3365 = vunpack.c.h.b16 %v1806
        %v3366 = vunpack.c.l.b16 %v1807
        %v3367 = vunpack.c.h.b16 %v1807
        %v3368 = vunpack.c.l.b16 %v1808
        %v3369 = vunpack.c.h.b16 %v1808
        %v3370 = vunpack.c.l.b16 %v1809
        %v3371 = vunpack.c.h.b16 %v1809
        %v3372 = vunpack.c.l.b16 %v1810
        %v3373 = vunpack.c.h.b16 %v1810
        %v3374 = vunpack.c.l.b16 %v1811
        %v3375 = vunpack.c.h.b16 %v1811
        %v3376 = vunpack.c.l.b16 %v1812
        %v3377 = vunpack.c.h.b16 %v1812
        %v3378 = vunpack.c.l.b16 %v1813
        %v3379 = vunpack.c.h.b16 %v1813
        %v3380 = vunpack.c.l.b16 %v1814
        %v3381 = vunpack.c.h.b16 %v1814
        %v3382 = vunpack.c.l.b16 %v1815
        %v3383 = vunpack.c.h.b16 %v1815
        %v3384 = vunpack.c.l.b16 %v1816
        %v3385 = vunpack.c.h.b16 %v1816
        %v3386 = vunpack.c.l.b16 %v1817
        %v3387 = vunpack.c.h.b16 %v1817
        %v3388 = vunpack.c.l.b16 %v1818
        %v3389 = vunpack.c.h.b16 %v1818
        %v3390 = vunpack.c.l.b16 %v1819
        %v3391 = vunpack.c.h.b16 %v1819
        %v3392 = vunpack.c.l.b16 %v1820
        %v3393 = vunpack.c.h.b16 %v1820
        %v3394 = vunpack.c.l.b16 %v1821
        %v3395 = vunpack.c.h.b16 %v1821
        %v3396 = vunpack.c.l.b16 %v1822
        %v3397 = vunpack.c.h.b16 %v1822
        %v3398 = vunpack.c.l.b16 %v1823
        %v3399 = vunpack.c.h.b16 %v1823
        %v3400 = vunpack.c.l.b16 %v1824
        %v3401 = vunpack.c.h.b16 %v1824
        %v3402 = vunpack.c.l.b16 %v1825
        %v3403 = vunpack.c.h.b16 %v1825
        %v3404 = vunpack.c.l.b16 %v1826
        %v3405 = vunpack.c.h.b16 %v1826
        %v3406 = vunpack.c.l.b16 %v1827
        %v3407 = vunpack.c.h.b16 %v1827
        %v3408 = vunpack.c.l.b16 %v1828
        %v3409 = vunpack.c.h.b16 %v1828
        %v3410 = vunpack.c.l.b16 %v1829
        %v3411 = vunpack.c.h.b16 %v1829
        %v3412 = vunpack.c.l.b16 %v1830
        %v3413 = vunpack.c.h.b16 %v1830
        %v3414 = vunpack.c.l.b16 %v1831
        %v3415 = vunpack.c.h.b16 %v1831
        %v3416 = vunpack.c.l.b16 %v1832
        %v3417 = vunpack.c.h.b16 %v1832
        %v3418 = vunpack.c.l.b16 %v1833
        %v3419 = vunpack.c.h.b16 %v1833
        %v3420 = vunpack.c.l.b16 %v1834
        %v3421 = vunpack.c.h.b16 %v1834
        %v3422 = vunpack.c.l.b16 %v1835
        %v3423 = vunpack.c.h.b16 %v1835
        %v3424 = vunpack.c.l.b16 %v1836
        %v3425 = vunpack.c.h.b16 %v1836
        %v3426 = vunpack.c.l.b16 %v1837
        %v3427 = vunpack.c.h.b16 %v1837
        %v3428 = vunpack.c.l.b16 %v1838
        %v3429 = vunpack.c.h.b16 %v1838
        %v3430 = vunpack.c.l.b16 %v1839
        %v3431 = vunpack.c.h.b16 %v1839
        %v3432 = vunpack.c.l.b16 %v1840
        %v3433 = vunpack.c.h.b16 %v1840
        %v3434 = vunpack.c.l.b16 %v1841
        %v3435 = vunpack.c.h.b16 %v1841
        %v3436 = vunpack.c.l.b16 %v1842
        %v3437 = vunpack.c.h.b16 %v1842
        %v3438 = vunpack.c.l.b16 %v1843
        %v3439 = vunpack.c.h.b16 %v1843
        %v3440 = vunpack.c.l.b16 %v1844
        %v3441 = vunpack.c.h.b16 %v1844
        %v3442 = vunpack.c.l.b16 %v1845
        %v3443 = vunpack.c.h.b16 %v1845
        %v3444 = vunpack.c.l.b16 %v1846
        %v3445 = vunpack.c.h.b16 %v1846
        %v3446 = vunpack.c.l.b16 %v1847
        %v3447 = vunpack.c.h.b16 %v1847
        %v3448 = vunpack.c.l.b16 %v1848
        %v3449 = vunpack.c.h.b16 %v1848
        %v3450 = vunpack.c.l.b16 %v1849
        %v3451 = vunpack.c.h.b16 %v1849
        %v3452 = vunpack.c.l.b16 %v1850
        %v3453 = vunpack.c.h.b16 %v1850
        %v3454 = vunpack.c.l.b16 %v1851
        %v3455 = vunpack.c.h.b16 %v1851
        %v3456 = vunpack.c.l.b16 %v1852
        %v3457 = vunpack.c.h.b16 %v1852
        %v3458 = vunpack.c.l.b16 %v1853
        %v3459 = vunpack.c.h.b16 %v1853
        %v3460 = vpack.c.b16 %v2444, %v2436
        %v3461 = vpack.c.b16 %v2445, %v2437
        %v3462 = vpack.c.b16 %v2446, %v2438
        %v3463 = vpack.c.b16 %v2447, %v2439
        %v3464 = vpack.c.b16 %v2448, %v2440
        %v3465 = vpack.c.b16 %v2449, %v2441
        %v3466 = vpack.c.b16 %v2450, %v2442
        %v3467 = vpack.c.b16 %v2451, %v2443
        %v3468 = vpack.c.b16 %v2460, %v2452
        %v3469 = vpack.c.b16 %v2461, %v2453
        %v3470 = vpack.c.b16 %v2462, %v2454
        %v3471 = vpack.c.b16 %v2463, %v2455
        %v3472 = vpack.c.b16 %v2464, %v2456
        %v3473 = vpack.c.b16 %v2465, %v2457
        %v3474 = vpack.c.b16 %v2466, %v2458
        %v3475 = vpack.c.b16 %v2467, %v2459
        %v3476 = vpack.c.b16 %v2476, %v2468
        %v3477 = vpack.c.b16 %v2477, %v2469
        %v3478 = vpack.c.b16 %v2478, %v2470
        %v3479 = vpack.c.b16 %v2479, %v2471
        %v3480 = vpack.c.b16 %v2480, %v2472
        %v3481 = vpack.c.b16 %v2481, %v2473
        %v3482 = vpack.c.b16 %v2482, %v2474
        %v3483 = vpack.c.b16 %v2483, %v2475
        %v3484 = vpack.c.b16 %v2492, %v2484
        %v3485 = vpack.c.b16 %v2493, %v2485
        %v3486 = vpack.c.b16 %v2494, %v2486
        %v3487 = vpack.c.b16 %v2495, %v2487
        %v3488 = vpack.c.b16 %v2496, %v2488
        %v3489 = vpack.c.b16 %v2497, %v2489
        %v3490 = vpack.c.b16 %v2498, %v2490
        %v3491 = vpack.c.b16 %v2499, %v2491
        %v3492 = vpack.c.b16 %v2508, %v2500
        %v3493 = vpack.c.b16 %v2509, %v2501
        %v3494 = vpack.c.b16 %v2510, %v2502
        %v3495 = vpack.c.b16 %v2511, %v2503
        %v3496 = vpack.c.b16 %v2512, %v2504
        %v3497 = vpack.c.b16 %v2513, %v2505
        %v3498 = vpack.c.b16 %v2514, %v2506
        %v3499 = vpack.c.b16 %v2515, %v2507
        %v3500 = vpack.c.b16 %v2524, %v2516
        %v3501 = vpack.c.b16 %v2525, %v2517
        %v3502 = vpack.c.b16 %v2526, %v2518
        %v3503 = vpack.c.b16 %v2527, %v2519
        %v3504 = vpack.c.b16 %v2528, %v2520
        %v3505 = vpack.c.b16 %v2529, %v2521
        %v3506 = vpack.c.b16 %v2530, %v2522
        %v3507 = vpack.c.b16 %v2531, %v2523
        %v3508 = vpack.c.b16 %v2540, %v2532
        %v3509 = vpack.c.b16 %v2541, %v2533
        %v3510 = vpack.c.b16 %v2542, %v2534
        %v3511 = vpack.c.b16 %v2543, %v2535
        %v3512 = vpack.c.b16 %v2544, %v2536
        %v3513 = vpack.c.b16 %v2545, %v2537
        %v3514 = vpack.c.b16 %v2546, %v2538
        %v3515 = vpack.c.b16 %v2547, %v2539
        %v3516 = vpack.c.b16 %v2556, %v2548
        %v3517 = vpack.c.b16 %v2557, %v2549
        %v3518 = vpack.c.b16 %v2558, %v2550
        %v3519 = vpack.c.b16 %v2559, %v2551
        %v3520 = vpack.c.b16 %v2560, %v2552
        %v3521 = vpack.c.b16 %v2561, %v2553
        %v3522 = vpack.c.b16 %v2562, %v2554
        %v3523 = vpack.c.b16 %v2563, %v2555
        %v3524 = vpack.c.b16 %v2572, %v2564
        %v3525 = vpack.c.b16 %v2573, %v2565
        %v3526 = vpack.c.b16 %v2574, %v2566
        %v3527 = vpack.c.b16 %v2575, %v2567
        %v3528 = vpack.c.b16 %v2576, %v2568
        %v3529 = vpack.c.b16 %v2577, %v2569
        %v3530 = vpack.c.b16 %v2578, %v2570
        %v3531 = vpack.c.b16 %v2579, %v2571
        %v3532 = vpack.c.b16 %v2588, %v2580
        %v3533 = vpack.c.b16 %v2589, %v2581
        %v3534 = vpack.c.b16 %v2590, %v2582
        %v3535 = vpack.c.b16 %v2591, %v2583
        %v3536 = vpack.c.b16 %v2592, %v2584
        %v3537 = vpack.c.b16 %v2593, %v2585
        %v3538 = vpack.c.b16 %v2594, %v2586
        %v3539 = vpack.c.b16 %v2595, %v2587
        %v3540 = vpack.c.b16 %v2604, %v2596
        %v3541 = vpack.c.b16 %v2605, %v2597
        %v3542 = vpack.c.b16 %v2606, %v2598
        %v3543 = vpack.c.b16 %v2607, %v2599
        %v3544 = vpack.c.b16 %v2608, %v2600
        %v3545 = vpack.c.b16 %v2609, %v2601
        %v3546 = vpack.c.b16 %v2610, %v2602
        %v3547 = vpack.c.b16 %v2611, %v2603
        %v3548 = vpack.c.b16 %v2620, %v2612
        %v3549 = vpack.c.b16 %v2621, %v2613
        %v3550 = vpack.c.b16 %v2622, %v2614
        %v3551 = vpack.c.b16 %v2623, %v2615
        %v3552 = vpack.c.b16 %v2624, %v2616
        %v3553 = vpack.c.b16 %v2625, %v2617
        %v3554 = vpack.c.b16 %v2626, %v2618
        %v3555 = vpack.c.b16 %v2627, %v2619
        %v3556 = vpack.c.b16 %v2636, %v2628
        %v3557 = vpack.c.b16 %v2637, %v2629
        %v3558 = vpack.c.b16 %v2638, %v2630
        %v3559 = vpack.c.b16 %v2639, %v2631
        %v3560 = vpack.c.b16 %v2640, %v2632
        %v3561 = vpack.c.b16 %v2641, %v2633
        %v3562 = vpack.c.b16 %v2642, %v2634
        %v3563 = vpack.c.b16 %v2643, %v2635
        %v3564 = vpack.c.b16 %v2652, %v2644
        %v3565 = vpack.c.b16 %v2653, %v2645
        %v3566 = vpack.c.b16 %v2654, %v2646
        %v3567 = vpack.c.b16 %v2655, %v2647
        %v3568 = vpack.c.b16 %v2656, %v2648
        %v3569 = vpack.c.b16 %v2657, %v2649
        %v3570 = vpack.c.b16 %v2658, %v2650
        %v3571 = vpack.c.b16 %v2659, %v2651
        %v3572 = vpack.c.b16 %v2668, %v2660
        %v3573 = vpack.c.b16 %v2669, %v2661
        %v3574 = vpack.c.b16 %v2670, %v2662
        %v3575 = vpack.c.b16 %v2671, %v2663
        %v3576 = vpack.c.b16 %v2672, %v2664
        %v3577 = vpack.c.b16 %v2673, %v2665
        %v3578 = vpack.c.b16 %v2674, %v2666
        %v3579 = vpack.c.b16 %v2675, %v2667
        %v3580 = vpack.c.b16 %v2684, %v2676
        %v3581 = vpack.c.b16 %v2685, %v2677
        %v3582 = vpack.c.b16 %v2686, %v2678
        %v3583 = vpack.c.b16 %v2687, %v2679
        %v3584 = vpack.c.b16 %v2688, %v2680
        %v3585 = vpack.c.b16 %v2689, %v2681
        %v3586 = vpack.c.b16 %v2690, %v2682
        %v3587 = vpack.c.b16 %v2691, %v2683
        %v3588 = vpack.c.b16 %v2700, %v2692
        %v3589 = vpack.c.b16 %v2701, %v2693
        %v3590 = vpack.c.b16 %v2702, %v2694
        %v3591 = vpack.c.b16 %v2703, %v2695
        %v3592 = vpack.c.b16 %v2704, %v2696
        %v3593 = vpack.c.b16 %v2705, %v2697
        %v3594 = vpack.c.b16 %v2706, %v2698
        %v3595 = vpack.c.b16 %v2707, %v2699
        %v3596 = vpack.c.b16 %v2716, %v2708
        %v3597 = vpack.c.b16 %v2717, %v2709
        %v3598 = vpack.c.b16 %v2718, %v2710
        %v3599 = vpack.c.b16 %v2719, %v2711
        %v3600 = vpack.c.b16 %v2720, %v2712
        %v3601 = vpack.c.b16 %v2721, %v2713
        %v3602 = vpack.c.b16 %v2722, %v2714
        %v3603 = vpack.c.b16 %v2723, %v2715
        %v3604 = vpack.c.b16 %v2732, %v2724
        %v3605 = vpack.c.b16 %v2733, %v2725
        %v3606 = vpack.c.b16 %v2734, %v2726
        %v3607 = vpack.c.b16 %v2735, %v2727
        %v3608 = vpack.c.b16 %v2736, %v2728
        %v3609 = vpack.c.b16 %v2737, %v2729
        %v3610 = vpack.c.b16 %v2738, %v2730
        %v3611 = vpack.c.b16 %v2739, %v2731
        %v3612 = vpack.c.b16 %v2748, %v2740
        %v3613 = vpack.c.b16 %v2749, %v2741
        %v3614 = vpack.c.b16 %v2750, %v2742
        %v3615 = vpack.c.b16 %v2751, %v2743
        %v3616 = vpack.c.b16 %v2752, %v2744
        %v3617 = vpack.c.b16 %v2753, %v2745
        %v3618 = vpack.c.b16 %v2754, %v2746
        %v3619 = vpack.c.b16 %v2755, %v2747
        %v3620 = vpack.c.b16 %v2764, %v2756
        %v3621 = vpack.c.b16 %v2765, %v2757
        %v3622 = vpack.c.b16 %v2766, %v2758
        %v3623 = vpack.c.b16 %v2767, %v2759
        %v3624 = vpack.c.b16 %v2768, %v2760
        %v3625 = vpack.c.b16 %v2769, %v2761
        %v3626 = vpack.c.b16 %v2770, %v2762
        %v3627 = vpack.c.b16 %v2771, %v2763
        %v3628 = vpack.c.b16 %v2780, %v2772
        %v3629 = vpack.c.b16 %v2781, %v2773
        %v3630 = vpack.c.b16 %v2782, %v2774
        %v3631 = vpack.c.b16 %v2783, %v2775
        %v3632 = vpack.c.b16 %v2784, %v2776
        %v3633 = vpack.c.b16 %v2785, %v2777
        %v3634 = vpack.c.b16 %v2786, %v2778
        %v3635 = vpack.c.b16 %v2787, %v2779
        %v3636 = vpack.c.b16 %v2796, %v2788
        %v3637 = vpack.c.b16 %v2797, %v2789
        %v3638 = vpack.c.b16 %v2798, %v2790
        %v3639 = vpack.c.b16 %v2799, %v2791
        %v3640 = vpack.c.b16 %v2800, %v2792
        %v3641 = vpack.c.b16 %v2801, %v2793
        %v3642 = vpack.c.b16 %v2802, %v2794
        %v3643 = vpack.c.b16 %v2803, %v2795
        %v3644 = vpack.c.b16 %v2812, %v2804
        %v3645 = vpack.c.b16 %v2813, %v2805
        %v3646 = vpack.c.b16 %v2814, %v2806
        %v3647 = vpack.c.b16 %v2815, %v2807
        %v3648 = vpack.c.b16 %v2816, %v2808
        %v3649 = vpack.c.b16 %v2817, %v2809
        %v3650 = vpack.c.b16 %v2818, %v2810
        %v3651 = vpack.c.b16 %v2819, %v2811
        %v3652 = vpack.c.b16 %v2828, %v2820
        %v3653 = vpack.c.b16 %v2829, %v2821
        %v3654 = vpack.c.b16 %v2830, %v2822
        %v3655 = vpack.c.b16 %v2831, %v2823
        %v3656 = vpack.c.b16 %v2832, %v2824
        %v3657 = vpack.c.b16 %v2833, %v2825
        %v3658 = vpack.c.b16 %v2834, %v2826
        %v3659 = vpack.c.b16 %v2835, %v2827
        %v3660 = vpack.c.b16 %v2844, %v2836
        %v3661 = vpack.c.b16 %v2845, %v2837
        %v3662 = vpack.c.b16 %v2846, %v2838
        %v3663 = vpack.c.b16 %v2847, %v2839
        %v3664 = vpack.c.b16 %v2848, %v2840
        %v3665 = vpack.c.b16 %v2849, %v2841
        %v3666 = vpack.c.b16 %v2850, %v2842
        %v3667 = vpack.c.b16 %v2851, %v2843
        %v3668 = vpack.c.b16 %v2860, %v2852
        %v3669 = vpack.c.b16 %v2861, %v2853
        %v3670 = vpack.c.b16 %v2862, %v2854
        %v3671 = vpack.c.b16 %v2863, %v2855
        %v3672 = vpack.c.b16 %v2864, %v2856
        %v3673 = vpack.c.b16 %v2865, %v2857
        %v3674 = vpack.c.b16 %v2866, %v2858
        %v3675 = vpack.c.b16 %v2867, %v2859
        %v3676 = vpack.c.b16 %v2876, %v2868
        %v3677 = vpack.c.b16 %v2877, %v2869
        %v3678 = vpack.c.b16 %v2878, %v2870
        %v3679 = vpack.c.b16 %v2879, %v2871
        %v3680 = vpack.c.b16 %v2880, %v2872
        %v3681 = vpack.c.b16 %v2881, %v2873
        %v3682 = vpack.c.b16 %v2882, %v2874
        %v3683 = vpack.c.b16 %v2883, %v2875
        %v3684 = vpack.c.b16 %v2892, %v2884
        %v3685 = vpack.c.b16 %v2893, %v2885
        %v3686 = vpack.c.b16 %v2894, %v2886
        %v3687 = vpack.c.b16 %v2895, %v2887
        %v3688 = vpack.c.b16 %v2896, %v2888
        %v3689 = vpack.c.b16 %v2897, %v2889
        %v3690 = vpack.c.b16 %v2898, %v2890
        %v3691 = vpack.c.b16 %v2899, %v2891
        %v3692 = vpack.c.b16 %v2908, %v2900
        %v3693 = vpack.c.b16 %v2909, %v2901
        %v3694 = vpack.c.b16 %v2910, %v2902
        %v3695 = vpack.c.b16 %v2911, %v2903
        %v3696 = vpack.c.b16 %v2912, %v2904
        %v3697 = vpack.c.b16 %v2913, %v2905
        %v3698 = vpack.c.b16 %v2914, %v2906
        %v3699 = vpack.c.b16 %v2915, %v2907
        %v3700 = vpack.c.b16 %v2924, %v2916
        %v3701 = vpack.c.b16 %v2925, %v2917
        %v3702 = vpack.c.b16 %v2926, %v2918
        %v3703 = vpack.c.b16 %v2927, %v2919
        %v3704 = vpack.c.b16 %v2928, %v2920
        %v3705 = vpack.c.b16 %v2929, %v2921
        %v3706 = vpack.c.b16 %v2930, %v2922
        %v3707 = vpack.c.b16 %v2931, %v2923
        %v3708 = vpack.c.b16 %v2940, %v2932
        %v3709 = vpack.c.b16 %v2941, %v2933
        %v3710 = vpack.c.b16 %v2942, %v2934
        %v3711 = vpack.c.b16 %v2943, %v2935
        %v3712 = vpack.c.b16 %v2944, %v2936
        %v3713 = vpack.c.b16 %v2945, %v2937
        %v3714 = vpack.c.b16 %v2946, %v2938
        %v3715 = vpack.c.b16 %v2947, %v2939
        %v3716 = vpack.c.b16 %v2956, %v2948
        %v3717 = vpack.c.b16 %v2957, %v2949
        %v3718 = vpack.c.b16 %v2958, %v2950
        %v3719 = vpack.c.b16 %v2959, %v2951
        %v3720 = vpack.c.b16 %v2960, %v2952
        %v3721 = vpack.c.b16 %v2961, %v2953
        %v3722 = vpack.c.b16 %v2962, %v2954
        %v3723 = vpack.c.b16 %v2963, %v2955
        %v3724 = vpack.c.b16 %v2972, %v2964
        %v3725 = vpack.c.b16 %v2973, %v2965
        %v3726 = vpack.c.b16 %v2974, %v2966
        %v3727 = vpack.c.b16 %v2975, %v2967
        %v3728 = vpack.c.b16 %v2976, %v2968
        %v3729 = vpack.c.b16 %v2977, %v2969
        %v3730 = vpack.c.b16 %v2978, %v2970
        %v3731 = vpack.c.b16 %v2979, %v2971
        %v3732 = vpack.c.b16 %v2988, %v2980
        %v3733 = vpack.c.b16 %v2989, %v2981
        %v3734 = vpack.c.b16 %v2990, %v2982
        %v3735 = vpack.c.b16 %v2991, %v2983
        %v3736 = vpack.c.b16 %v2992, %v2984
        %v3737 = vpack.c.b16 %v2993, %v2985
        %v3738 = vpack.c.b16 %v2994, %v2986
        %v3739 = vpack.c.b16 %v2995, %v2987
        %v3740 = vpack.c.b16 %v3004, %v2996
        %v3741 = vpack.c.b16 %v3005, %v2997
        %v3742 = vpack.c.b16 %v3006, %v2998
        %v3743 = vpack.c.b16 %v3007, %v2999
        %v3744 = vpack.c.b16 %v3008, %v3000
        %v3745 = vpack.c.b16 %v3009, %v3001
        %v3746 = vpack.c.b16 %v3010, %v3002
        %v3747 = vpack.c.b16 %v3011, %v3003
        %v3748 = vpack.c.b16 %v3020, %v3012
        %v3749 = vpack.c.b16 %v3021, %v3013
        %v3750 = vpack.c.b16 %v3022, %v3014
        %v3751 = vpack.c.b16 %v3023, %v3015
        %v3752 = vpack.c.b16 %v3024, %v3016
        %v3753 = vpack.c.b16 %v3025, %v3017
        %v3754 = vpack.c.b16 %v3026, %v3018
        %v3755 = vpack.c.b16 %v3027, %v3019
        %v3756 = vpack.c.b16 %v3036, %v3028
        %v3757 = vpack.c.b16 %v3037, %v3029
        %v3758 = vpack.c.b16 %v3038, %v3030
        %v3759 = vpack.c.b16 %v3039, %v3031
        %v3760 = vpack.c.b16 %v3040, %v3032
        %v3761 = vpack.c.b16 %v3041, %v3033
        %v3762 = vpack.c.b16 %v3042, %v3034
        %v3763 = vpack.c.b16 %v3043, %v3035
        %v3764 = vpack.c.b16 %v3052, %v3044
        %v3765 = vpack.c.b16 %v3053, %v3045
        %v3766 = vpack.c.b16 %v3054, %v3046
        %v3767 = vpack.c.b16 %v3055, %v3047
        %v3768 = vpack.c.b16 %v3056, %v3048
        %v3769 = vpack.c.b16 %v3057, %v3049
        %v3770 = vpack.c.b16 %v3058, %v3050
        %v3771 = vpack.c.b16 %v3059, %v3051
        %v3772 = vpack.c.b16 %v3068, %v3060
        %v3773 = vpack.c.b16 %v3069, %v3061
        %v3774 = vpack.c.b16 %v3070, %v3062
        %v3775 = vpack.c.b16 %v3071, %v3063
        %v3776 = vpack.c.b16 %v3072, %v3064
        %v3777 = vpack.c.b16 %v3073, %v3065
        %v3778 = vpack.c.b16 %v3074, %v3066
        %v3779 = vpack.c.b16 %v3075, %v3067
        %v3780 = vpack.c.b16 %v3084, %v3076
        %v3781 = vpack.c.b16 %v3085, %v3077
        %v3782 = vpack.c.b16 %v3086, %v3078
        %v3783 = vpack.c.b16 %v3087, %v3079
        %v3784 = vpack.c.b16 %v3088, %v3080
        %v3785 = vpack.c.b16 %v3089, %v3081
        %v3786 = vpack.c.b16 %v3090, %v3082
        %v3787 = vpack.c.b16 %v3091, %v3083
        %v3788 = vpack.c.b16 %v3100, %v3092
        %v3789 = vpack.c.b16 %v3101, %v3093
        %v3790 = vpack.c.b16 %v3102, %v3094
        %v3791 = vpack.c.b16 %v3103, %v3095
        %v3792 = vpack.c.b16 %v3104, %v3096
        %v3793 = vpack.c.b16 %v3105, %v3097
        %v3794 = vpack.c.b16 %v3106, %v3098
        %v3795 = vpack.c.b16 %v3107, %v3099
        %v3796 = vpack.c.b16 %v3116, %v3108
        %v3797 = vpack.c.b16 %v3117, %v3109
        %v3798 = vpack.c.b16 %v3118, %v3110
        %v3799 = vpack.c.b16 %v3119, %v3111
        %v3800 = vpack.c.b16 %v3120, %v3112
        %v3801 = vpack.c.b16 %v3121, %v3113
        %v3802 = vpack.c.b16 %v3122, %v3114
        %v3803 = vpack.c.b16 %v3123, %v3115
        %v3804 = vpack.c.b16 %v3132, %v3124
        %v3805 = vpack.c.b16 %v3133, %v3125
        %v3806 = vpack.c.b16 %v3134, %v3126
        %v3807 = vpack.c.b16 %v3135, %v3127
        %v3808 = vpack.c.b16 %v3136, %v3128
        %v3809 = vpack.c.b16 %v3137, %v3129
        %v3810 = vpack.c.b16 %v3138, %v3130
        %v3811 = vpack.c.b16 %v3139, %v3131
        %v3812 = vpack.c.b16 %v3148, %v3140
        %v3813 = vpack.c.b16 %v3149, %v3141
        %v3814 = vpack.c.b16 %v3150, %v3142
        %v3815 = vpack.c.b16 %v3151, %v3143
        %v3816 = vpack.c.b16 %v3152, %v3144
        %v3817 = vpack.c.b16 %v3153, %v3145
        %v3818 = vpack.c.b16 %v3154, %v3146
        %v3819 = vpack.c.b16 %v3155, %v3147
        %v3820 = vpack.c.b16 %v3164, %v3156
        %v3821 = vpack.c.b16 %v3165, %v3157
        %v3822 = vpack.c.b16 %v3166, %v3158
        %v3823 = vpack.c.b16 %v3167, %v3159
        %v3824 = vpack.c.b16 %v3168, %v3160
        %v3825 = vpack.c.b16 %v3169, %v3161
        %v3826 = vpack.c.b16 %v3170, %v3162
        %v3827 = vpack.c.b16 %v3171, %v3163
        %v3828 = vpack.c.b16 %v3180, %v3172
        %v3829 = vpack.c.b16 %v3181, %v3173
        %v3830 = vpack.c.b16 %v3182, %v3174
        %v3831 = vpack.c.b16 %v3183, %v3175
        %v3832 = vpack.c.b16 %v3184, %v3176
        %v3833 = vpack.c.b16 %v3185, %v3177
        %v3834 = vpack.c.b16 %v3186, %v3178
        %v3835 = vpack.c.b16 %v3187, %v3179
        %v3836 = vpack.c.b16 %v3196, %v3188
        %v3837 = vpack.c.b16 %v3197, %v3189
        %v3838 = vpack.c.b16 %v3198, %v3190
        %v3839 = vpack.c.b16 %v3199, %v3191
        %v3840 = vpack.c.b16 %v3200, %v3192
        %v3841 = vpack.c.b16 %v3201, %v3193
        %v3842 = vpack.c.b16 %v3202, %v3194
        %v3843 = vpack.c.b16 %v3203, %v3195
        %v3844 = vpack.c.b16 %v3212, %v3204
        %v3845 = vpack.c.b16 %v3213, %v3205
        %v3846 = vpack.c.b16 %v3214, %v3206
        %v3847 = vpack.c.b16 %v3215, %v3207
        %v3848 = vpack.c.b16 %v3216, %v3208
        %v3849 = vpack.c.b16 %v3217, %v3209
        %v3850 = vpack.c.b16 %v3218, %v3210
        %v3851 = vpack.c.b16 %v3219, %v3211
        %v3852 = vpack.c.b16 %v3228, %v3220
        %v3853 = vpack.c.b16 %v3229, %v3221
        %v3854 = vpack.c.b16 %v3230, %v3222
        %v3855 = vpack.c.b16 %v3231, %v3223
        %v3856 = vpack.c.b16 %v3232, %v3224
        %v3857 = vpack.c.b16 %v3233, %v3225
        %v3858 = vpack.c.b16 %v3234, %v3226
        %v3859 = vpack.c.b16 %v3235, %v3227
        %v3860 = vpack.c.b16 %v3244, %v3236
        %v3861 = vpack.c.b16 %v3245, %v3237
        %v3862 = vpack.c.b16 %v3246, %v3238
        %v3863 = vpack.c.b16 %v3247, %v3239
        %v3864 = vpack.c.b16 %v3248, %v3240
        %v3865 = vpack.c.b16 %v3249, %v3241
        %v3866 = vpack.c.b16 %v3250, %v3242
        %v3867 = vpack.c.b16 %v3251, %v3243
        %v3868 = vpack.c.b16 %v3260, %v3252
        %v3869 = vpack.c.b16 %v3261, %v3253
        %v3870 = vpack.c.b16 %v3262, %v3254
        %v3871 = vpack.c.b16 %v3263, %v3255
        %v3872 = vpack.c.b16 %v3264, %v3256
        %v3873 = vpack.c.b16 %v3265, %v3257
        %v3874 = vpack.c.b16 %v3266, %v3258
        %v3875 = vpack.c.b16 %v3267, %v3259
        %v3876 = vpack.c.b16 %v3276, %v3268
        %v3877 = vpack.c.b16 %v3277, %v3269
        %v3878 = vpack.c.b16 %v3278, %v3270
        %v3879 = vpack.c.b16 %v3279, %v3271
        %v3880 = vpack.c.b16 %v3280, %v3272
        %v3881 = vpack.c.b16 %v3281, %v3273
        %v3882 = vpack.c.b16 %v3282, %v3274
        %v3883 = vpack.c.b16 %v3283, %v3275
        %v3884 = vpack.c.b16 %v3292, %v3284
        %v3885 = vpack.c.b16 %v3293, %v3285
        %v3886 = vpack.c.b16 %v3294, %v3286
        %v3887 = vpack.c.b16 %v3295, %v3287
        %v3888 = vpack.c.b16 %v3296, %v3288
        %v3889 = vpack.c.b16 %v3297, %v3289
        %v3890 = vpack.c.b16 %v3298, %v3290
        %v3891 = vpack.c.b16 %v3299, %v3291
        %v3892 = vpack.c.b16 %v3308, %v3300
        %v3893 = vpack.c.b16 %v3309, %v3301
        %v3894 = vpack.c.b16 %v3310, %v3302
        %v3895 = vpack.c.b16 %v3311, %v3303
        %v3896 = vpack.c.b16 %v3312, %v3304
        %v3897 = vpack.c.b16 %v3313, %v3305
        %v3898 = vpack.c.b16 %v3314, %v3306
        %v3899 = vpack.c.b16 %v3315, %v3307
        %v3900 = vpack.c.b16 %v3324, %v3316
        %v3901 = vpack.c.b16 %v3325, %v3317
        %v3902 = vpack.c.b16 %v3326, %v3318
        %v3903 = vpack.c.b16 %v3327, %v3319
        %v3904 = vpack.c.b16 %v3328, %v3320
        %v3905 = vpack.c.b16 %v3329, %v3321
        %v3906 = vpack.c.b16 %v3330, %v3322
        %v3907 = vpack.c.b16 %v3331, %v3323
        %v3908 = vpack.c.b16 %v3340, %v3332
        %v3909 = vpack.c.b16 %v3341, %v3333
        %v3910 = vpack.c.b16 %v3342, %v3334
        %v3911 = vpack.c.b16 %v3343, %v3335
        %v3912 = vpack.c.b16 %v3344, %v3336
        %v3913 = vpack.c.b16 %v3345, %v3337
        %v3914 = vpack.c.b16 %v3346, %v3338
        %v3915 = vpack.c.b16 %v3347, %v3339
        %v3916 = vpack.c.b16 %v3356, %v3348
        %v3917 = vpack.c.b16 %v3357, %v3349
        %v3918 = vpack.c.b16 %v3358, %v3350
        %v3919 = vpack.c.b16 %v3359, %v3351
        %v3920 = vpack.c.b16 %v3360, %v3352
        %v3921 = vpack.c.b16 %v3361, %v3353
        %v3922 = vpack.c.b16 %v3362, %v3354
        %v3923 = vpack.c.b16 %v3363, %v3355
        %v3924 = vpack.c.b16 %v3372, %v3364
        %v3925 = vpack.c.b16 %v3373, %v3365
        %v3926 = vpack.c.b16 %v3374, %v3366
        %v3927 = vpack.c.b16 %v3375, %v3367
        %v3928 = vpack.c.b16 %v3376, %v3368
        %v3929 = vpack.c.b16 %v3377, %v3369
        %v3930 = vpack.c.b16 %v3378, %v3370
        %v3931 = vpack.c.b16 %v3379, %v3371
        %v3932 = vpack.c.b16 %v3388, %v3380
        %v3933 = vpack.c.b16 %v3389, %v3381
        %v3934 = vpack.c.b16 %v3390, %v3382
        %v3935 = vpack.c.b16 %v3391, %v3383
        %v3936 = vpack.c.b16 %v3392, %v3384
        %v3937 = vpack.c.b16 %v3393, %v3385
        %v3938 = vpack.c.b16 %v3394, %v3386
        %v3939 = vpack.c.b16 %v3395, %v3387
        %v3940 = vpack.c.b16 %v3404, %v3396
        %v3941 = vpack.c.b16 %v3405, %v3397
        %v3942 = vpack.c.b16 %v3406, %v3398
        %v3943 = vpack.c.b16 %v3407, %v3399
        %v3944 = vpack.c.b16 %v3408, %v3400
        %v3945 = vpack.c.b16 %v3409, %v3401
        %v3946 = vpack.c.b16 %v3410, %v3402
        %v3947 = vpack.c.b16 %v3411, %v3403
        %v3948 = vpack.c.b16 %v3420, %v3412
        %v3949 = vpack.c.b16 %v3421, %v3413
        %v3950 = vpack.c.b16 %v3422, %v3414
        %v3951 = vpack.c.b16 %v3423, %v3415
        %v3952 = vpack.c.b16 %v3424, %v3416
        %v3953 = vpack.c.b16 %v3425, %v3417
        %v3954 = vpack.c.b16 %v3426, %v3418
        %v3955 = vpack.c.b16 %v3427, %v3419
        %v3956 = vpack.c.b16 %v3436, %v3428
        %v3957 = vpack.c.b16 %v3437, %v3429
        %v3958 = vpack.c.b16 %v3438, %v3430
        %v3959 = vpack.c.b16 %v3439, %v3431
        %v3960 = vpack.c.b16 %v3440, %v3432
        %v3961 = vpack.c.b16 %v3441, %v3433
        %v3962 = vpack.c.b16 %v3442, %v3434
        %v3963 = vpack.c.b16 %v3443, %v3435
        %v3964 = vpack.c.b16 %v3452, %v3444
        %v3965 = vpack.c.b16 %v3453, %v3445
        %v3966 = vpack.c.b16 %v3454, %v3446
        %v3967 = vpack.c.b16 %v3455, %v3447
        %v3968 = vpack.c.b16 %v3456, %v3448
        %v3969 = vpack.c.b16 %v3457, %v3449
        %v3970 = vpack.c.b16 %v3458, %v3450
        %v3971 = vpack.c.b16 %v3459, %v3451
        %4484 = vmatprep.subr.bf16.mxu0 %v3517
        %4485 = vmatpush1.bf16.msra.mxu0 %v3516
        %4486 = vmatprep.subr.bf16.mxu0 %v3509
        %4487 = vmatpush1.bf16.msra.mxu0 %v3508
        %4488 = vmatprep.subr.bf16.mxu0 %v3501
        %4489 = vmatpush1.bf16.msra.mxu0 %v3500
        %4490 = vmatprep.subr.bf16.mxu0 %v3493
        %4491 = vmatpush1.bf16.msra.mxu0 %v3492
        %4492 = vmatprep.subr.bf16.mxu0 %v3485
        %4493 = vmatpush1.bf16.msra.mxu0 %v3484
        %4494 = vmatprep.subr.bf16.mxu0 %v3477
        %4495 = vmatpush1.bf16.msra.mxu0 %v3476
        %4496 = vmatprep.subr.bf16.mxu0 %v3469
        %4497 = vmatpush1.bf16.msra.mxu0 %v3468
        %4498 = vmatprep.subr.bf16.mxu0 %v3461
        %4499 = vmatpush1.bf16.msra.mxu0 %v3460
        %4500 = vmatprep.subr.bf16.mxu0 %v3581
        %4501 = vmatpush2.bf16.msra.mxu0 %v3580
        %4502 = vmatprep.subr.bf16.mxu0 %v3573
        %4503 = vmatpush2.bf16.msra.mxu0 %v3572
        %4504 = vmatprep.subr.bf16.mxu0 %v3565
        %4505 = vmatpush2.bf16.msra.mxu0 %v3564
        %4506 = vmatprep.subr.bf16.mxu0 %v3557
        %4507 = vmatpush2.bf16.msra.mxu0 %v3556
        %4508 = vmatprep.subr.bf16.mxu0 %v3549
        %4509 = vmatpush2.bf16.msra.mxu0 %v3548
        %4510 = vmatprep.subr.bf16.mxu0 %v3541
        %4511 = vmatpush2.bf16.msra.mxu0 %v3540
        %4512 = vmatprep.subr.bf16.mxu0 %v3533
        %4513 = vmatpush2.bf16.msra.mxu0 %v3532
        %4514 = vmatprep.subr.bf16.mxu0 %v3525
        %4515 = vmatpush2.bf16.msra.mxu0 %v3524
        %4516 = vmatprep.mubr.bf16.mxu0 %v1909
        %4517 = vmatmul.mubr.bf16.gmra.mxu0 %v1908
        %v4518 = vpop.f32.mrf.mxu0
        %v4519 = vadd.f32 %v1859, %v4518
        %v4520 = vpop.f32.mrf.mxu0
        %v4521 = vadd.f32 %v1863, %v4520
        %v4522 = vpop.f32.mrf.mxu0
        %v4523 = vpop.f32.mrf.mxu0
        %4524 = vdwg.mxu0
        %4525 = vmatprep.subr.bf16.mxu0 %v3645
        %4526 = vmatpush1.bf16.msra.mxu0 %v3644
        %4527 = vmatprep.subr.bf16.mxu0 %v3637
        %4528 = vmatpush1.bf16.msra.mxu0 %v3636
        %4529 = vmatprep.subr.bf16.mxu0 %v3629
        %4530 = vmatpush1.bf16.msra.mxu0 %v3628
        %4531 = vmatprep.subr.bf16.mxu0 %v3621
        %4532 = vmatpush1.bf16.msra.mxu0 %v3620
        %4533 = vmatprep.subr.bf16.mxu0 %v3613
        %4534 = vmatpush1.bf16.msra.mxu0 %v3612
        %4535 = vmatprep.subr.bf16.mxu0 %v3605
        %4536 = vmatpush1.bf16.msra.mxu0 %v3604
        %4537 = vmatprep.subr.bf16.mxu0 %v3597
        %4538 = vmatpush1.bf16.msra.mxu0 %v3596
        %4539 = vmatprep.subr.bf16.mxu0 %v3589
        %4540 = vmatpush1.bf16.msra.mxu0 %v3588
        %4541 = vmatprep.subr.bf16.mxu0 %v3709
        %4542 = vmatpush2.bf16.msra.mxu0 %v3708
        %4543 = vmatprep.subr.bf16.mxu0 %v3701
        %4544 = vmatpush2.bf16.msra.mxu0 %v3700
        %4545 = vmatprep.subr.bf16.mxu0 %v3693
        %4546 = vmatpush2.bf16.msra.mxu0 %v3692
        %4547 = vmatprep.subr.bf16.mxu0 %v3685
        %4548 = vmatpush2.bf16.msra.mxu0 %v3684
        %4549 = vmatprep.subr.bf16.mxu0 %v3677
        %4550 = vmatpush2.bf16.msra.mxu0 %v3676
        %4551 = vmatprep.subr.bf16.mxu0 %v3669
        %4552 = vmatpush2.bf16.msra.mxu0 %v3668
        %4553 = vmatprep.subr.bf16.mxu0 %v3661
        %4554 = vmatpush2.bf16.msra.mxu0 %v3660
        %4555 = vmatprep.subr.bf16.mxu0 %v3653
        %4556 = vmatpush2.bf16.msra.mxu0 %v3652
        %4557 = vmatprep.mubr.bf16.mxu0 %v1911
        %4558 = vmatmul.mubr.bf16.gmra.mxu0 %v1910
        %v4559 = vpop.f32.mrf.mxu0
        %v4560 = vadd.f32 %v4519, %v4559
        %v4561 = vpop.f32.mrf.mxu0
        %v4562 = vadd.f32 %v4521, %v4561
        %v4563 = vpop.f32.mrf.mxu0
        %v4564 = vpop.f32.mrf.mxu0
        %4565 = vdwg.mxu0
        %4566 = vmatprep.subr.bf16.mxu0 %v3773
        %4567 = vmatpush1.bf16.msra.mxu0 %v3772
        %4568 = vmatprep.subr.bf16.mxu0 %v3765
        %4569 = vmatpush1.bf16.msra.mxu0 %v3764
        %4570 = vmatprep.subr.bf16.mxu0 %v3757
        %4571 = vmatpush1.bf16.msra.mxu0 %v3756
        %4572 = vmatprep.subr.bf16.mxu0 %v3749
        %4573 = vmatpush1.bf16.msra.mxu0 %v3748
        %4574 = vmatprep.subr.bf16.mxu0 %v3741
        %4575 = vmatpush1.bf16.msra.mxu0 %v3740
        %4576 = vmatprep.subr.bf16.mxu0 %v3733
        %4577 = vmatpush1.bf16.msra.mxu0 %v3732
        %4578 = vmatprep.subr.bf16.mxu0 %v3725
        %4579 = vmatpush1.bf16.msra.mxu0 %v3724
        %4580 = vmatprep.subr.bf16.mxu0 %v3717
        %4581 = vmatpush1.bf16.msra.mxu0 %v3716
        %4582 = vmatprep.subr.bf16.mxu0 %v3837
        %4583 = vmatpush2.bf16.msra.mxu0 %v3836
        %4584 = vmatprep.subr.bf16.mxu0 %v3829
        %4585 = vmatpush2.bf16.msra.mxu0 %v3828
        %4586 = vmatprep.subr.bf16.mxu0 %v3821
        %4587 = vmatpush2.bf16.msra.mxu0 %v3820
        %4588 = vmatprep.subr.bf16.mxu0 %v3813
        %4589 = vmatpush2.bf16.msra.mxu0 %v3812
        %4590 = vmatprep.subr.bf16.mxu0 %v3805
        %4591 = vmatpush2.bf16.msra.mxu0 %v3804
        %4592 = vmatprep.subr.bf16.mxu0 %v3797
        %4593 = vmatpush2.bf16.msra.mxu0 %v3796
        %4594 = vmatprep.subr.bf16.mxu0 %v3789
        %4595 = vmatpush2.bf16.msra.mxu0 %v3788
        %4596 = vmatprep.subr.bf16.mxu0 %v3781
        %4597 = vmatpush2.bf16.msra.mxu0 %v3780
        %4598 = vmatprep.mubr.bf16.mxu0 %v1913
        %4599 = vmatmul.mubr.bf16.gmra.mxu0 %v1912
        %v4600 = vpop.f32.mrf.mxu0
        %v4601 = vadd.f32 %v4560, %v4600
        %v4602 = vpop.f32.mrf.mxu0
        %v4603 = vadd.f32 %v4562, %v4602
        %v4604 = vpop.f32.mrf.mxu0
        %v4605 = vpop.f32.mrf.mxu0
        %4606 = vdwg.mxu0
        %4607 = vmatprep.subr.bf16.mxu0 %v3901
        %4608 = vmatpush1.bf16.msra.mxu0 %v3900
        %4609 = vmatprep.subr.bf16.mxu0 %v3893
        %4610 = vmatpush1.bf16.msra.mxu0 %v3892
        %4611 = vmatprep.subr.bf16.mxu0 %v3885
        %4612 = vmatpush1.bf16.msra.mxu0 %v3884
        %4613 = vmatprep.subr.bf16.mxu0 %v3877
        %4614 = vmatpush1.bf16.msra.mxu0 %v3876
        %4615 = vmatprep.subr.bf16.mxu0 %v3869
        %4616 = vmatpush1.bf16.msra.mxu0 %v3868
        %4617 = vmatprep.subr.bf16.mxu0 %v3861
        %4618 = vmatpush1.bf16.msra.mxu0 %v3860
        %4619 = vmatprep.subr.bf16.mxu0 %v3853
        %4620 = vmatpush1.bf16.msra.mxu0 %v3852
        %4621 = vmatprep.subr.bf16.mxu0 %v3845
        %4622 = vmatpush1.bf16.msra.mxu0 %v3844
        %4623 = vmatprep.subr.bf16.mxu0 %v3965
        %4624 = vmatpush2.bf16.msra.mxu0 %v3964
        %4625 = vmatprep.subr.bf16.mxu0 %v3957
        %4626 = vmatpush2.bf16.msra.mxu0 %v3956
        %4627 = vmatprep.subr.bf16.mxu0 %v3949
        %4628 = vmatpush2.bf16.msra.mxu0 %v3948
        %4629 = vmatprep.subr.bf16.mxu0 %v3941
        %4630 = vmatpush2.bf16.msra.mxu0 %v3940
        %4631 = vmatprep.subr.bf16.mxu0 %v3933
        %4632 = vmatpush2.bf16.msra.mxu0 %v3932
        %4633 = vmatprep.subr.bf16.mxu0 %v3925
        %4634 = vmatpush2.bf16.msra.mxu0 %v3924
        %4635 = vmatprep.subr.bf16.mxu0 %v3917
        %4636 = vmatpush2.bf16.msra.mxu0 %v3916
        %4637 = vmatprep.subr.bf16.mxu0 %v3909
        %4638 = vmatpush2.bf16.msra.mxu0 %v3908
        %4639 = vmatprep.mubr.bf16.mxu0 %v1915
        %4640 = vmatmul.mubr.bf16.gmra.mxu0 %v1914
        %v4641 = vpop.f32.mrf.mxu0
        %v4642 = vadd.f32 %v4601, %v4641
        %v4643 = vpop.f32.mrf.mxu0
        %v4644 = vadd.f32 %v4603, %v4643
        %v4645 = vpop.f32.mrf.mxu0
        %v4646 = vpop.f32.mrf.mxu0
        %4647 = vdwg.mxu0
        %4648 = vmatprep.subr.bf16.mxu0 %v3519
        %4649 = vmatpush1.bf16.msra.mxu0 %v3518
        %4650 = vmatprep.subr.bf16.mxu0 %v3511
        %4651 = vmatpush1.bf16.msra.mxu0 %v3510
        %4652 = vmatprep.subr.bf16.mxu0 %v3503
        %4653 = vmatpush1.bf16.msra.mxu0 %v3502
        %4654 = vmatprep.subr.bf16.mxu0 %v3495
        %4655 = vmatpush1.bf16.msra.mxu0 %v3494
        %4656 = vmatprep.subr.bf16.mxu0 %v3487
        %4657 = vmatpush1.bf16.msra.mxu0 %v3486
        %4658 = vmatprep.subr.bf16.mxu0 %v3479
        %4659 = vmatpush1.bf16.msra.mxu0 %v3478
        %4660 = vmatprep.subr.bf16.mxu0 %v3471
        %4661 = vmatpush1.bf16.msra.mxu0 %v3470
        %4662 = vmatprep.subr.bf16.mxu0 %v3463
        %4663 = vmatpush1.bf16.msra.mxu0 %v3462
        %4664 = vmatprep.subr.bf16.mxu0 %v3583
        %4665 = vmatpush2.bf16.msra.mxu0 %v3582
        %4666 = vmatprep.subr.bf16.mxu0 %v3575
        %4667 = vmatpush2.bf16.msra.mxu0 %v3574
        %4668 = vmatprep.subr.bf16.mxu0 %v3567
        %4669 = vmatpush2.bf16.msra.mxu0 %v3566
        %4670 = vmatprep.subr.bf16.mxu0 %v3559
        %4671 = vmatpush2.bf16.msra.mxu0 %v3558
        %4672 = vmatprep.subr.bf16.mxu0 %v3551
        %4673 = vmatpush2.bf16.msra.mxu0 %v3550
        %4674 = vmatprep.subr.bf16.mxu0 %v3543
        %4675 = vmatpush2.bf16.msra.mxu0 %v3542
        %4676 = vmatprep.subr.bf16.mxu0 %v3535
        %4677 = vmatpush2.bf16.msra.mxu0 %v3534
        %4678 = vmatprep.subr.bf16.mxu0 %v3527
        %4679 = vmatpush2.bf16.msra.mxu0 %v3526
        %4680 = vmatprep.mubr.bf16.mxu0 %v1909
        %4681 = vmatmul.mubr.bf16.gmra.mxu0 %v1908
        %v4682 = vpop.f32.mrf.mxu0
        %v4683 = vadd.f32 %v1867, %v4682
        %v4684 = vpop.f32.mrf.mxu0
        %v4685 = vadd.f32 %v1871, %v4684
        %v4686 = vpop.f32.mrf.mxu0
        %v4687 = vpop.f32.mrf.mxu0
        %4688 = vdwg.mxu0
        %4689 = vmatprep.subr.bf16.mxu0 %v3647
        %4690 = vmatpush1.bf16.msra.mxu0 %v3646
        %4691 = vmatprep.subr.bf16.mxu0 %v3639
        %4692 = vmatpush1.bf16.msra.mxu0 %v3638
        %4693 = vmatprep.subr.bf16.mxu0 %v3631
        %4694 = vmatpush1.bf16.msra.mxu0 %v3630
        %4695 = vmatprep.subr.bf16.mxu0 %v3623
        %4696 = vmatpush1.bf16.msra.mxu0 %v3622
        %4697 = vmatprep.subr.bf16.mxu0 %v3615
        %4698 = vmatpush1.bf16.msra.mxu0 %v3614
        %4699 = vmatprep.subr.bf16.mxu0 %v3607
        %4700 = vmatpush1.bf16.msra.mxu0 %v3606
        %4701 = vmatprep.subr.bf16.mxu0 %v3599
        %4702 = vmatpush1.bf16.msra.mxu0 %v3598
        %4703 = vmatprep.subr.bf16.mxu0 %v3591
        %4704 = vmatpush1.bf16.msra.mxu0 %v3590
        %4705 = vmatprep.subr.bf16.mxu0 %v3711
        %4706 = vmatpush2.bf16.msra.mxu0 %v3710
        %4707 = vmatprep.subr.bf16.mxu0 %v3703
        %4708 = vmatpush2.bf16.msra.mxu0 %v3702
        %4709 = vmatprep.subr.bf16.mxu0 %v3695
        %4710 = vmatpush2.bf16.msra.mxu0 %v3694
        %4711 = vmatprep.subr.bf16.mxu0 %v3687
        %4712 = vmatpush2.bf16.msra.mxu0 %v3686
        %4713 = vmatprep.subr.bf16.mxu0 %v3679
        %4714 = vmatpush2.bf16.msra.mxu0 %v3678
        %4715 = vmatprep.subr.bf16.mxu0 %v3671
        %4716 = vmatpush2.bf16.msra.mxu0 %v3670
        %4717 = vmatprep.subr.bf16.mxu0 %v3663
        %4718 = vmatpush2.bf16.msra.mxu0 %v3662
        %4719 = vmatprep.subr.bf16.mxu0 %v3655
        %4720 = vmatpush2.bf16.msra.mxu0 %v3654
        %4721 = vmatprep.mubr.bf16.mxu0 %v1911
        %4722 = vmatmul.mubr.bf16.gmra.mxu0 %v1910
        %v4723 = vpop.f32.mrf.mxu0
        %v4724 = vadd.f32 %v4683, %v4723
        %v4725 = vpop.f32.mrf.mxu0
        %v4726 = vadd.f32 %v4685, %v4725
        %v4727 = vpop.f32.mrf.mxu0
        %v4728 = vpop.f32.mrf.mxu0
        %4729 = vdwg.mxu0
        %4730 = vmatprep.subr.bf16.mxu0 %v3775
        %4731 = vmatpush1.bf16.msra.mxu0 %v3774
        %4732 = vmatprep.subr.bf16.mxu0 %v3767
        %4733 = vmatpush1.bf16.msra.mxu0 %v3766
        %4734 = vmatprep.subr.bf16.mxu0 %v3759
        %4735 = vmatpush1.bf16.msra.mxu0 %v3758
        %4736 = vmatprep.subr.bf16.mxu0 %v3751
        %4737 = vmatpush1.bf16.msra.mxu0 %v3750
        %4738 = vmatprep.subr.bf16.mxu0 %v3743
        %4739 = vmatpush1.bf16.msra.mxu0 %v3742
        %4740 = vmatprep.subr.bf16.mxu0 %v3735
        %4741 = vmatpush1.bf16.msra.mxu0 %v3734
        %4742 = vmatprep.subr.bf16.mxu0 %v3727
        %4743 = vmatpush1.bf16.msra.mxu0 %v3726
        %4744 = vmatprep.subr.bf16.mxu0 %v3719
        %4745 = vmatpush1.bf16.msra.mxu0 %v3718
        %4746 = vmatprep.subr.bf16.mxu0 %v3839
        %4747 = vmatpush2.bf16.msra.mxu0 %v3838
        %4748 = vmatprep.subr.bf16.mxu0 %v3831
        %4749 = vmatpush2.bf16.msra.mxu0 %v3830
        %4750 = vmatprep.subr.bf16.mxu0 %v3823
        %4751 = vmatpush2.bf16.msra.mxu0 %v3822
        %4752 = vmatprep.subr.bf16.mxu0 %v3815
        %4753 = vmatpush2.bf16.msra.mxu0 %v3814
        %4754 = vmatprep.subr.bf16.mxu0 %v3807
        %4755 = vmatpush2.bf16.msra.mxu0 %v3806
        %4756 = vmatprep.subr.bf16.mxu0 %v3799
        %4757 = vmatpush2.bf16.msra.mxu0 %v3798
        %4758 = vmatprep.subr.bf16.mxu0 %v3791
        %4759 = vmatpush2.bf16.msra.mxu0 %v3790
        %4760 = vmatprep.subr.bf16.mxu0 %v3783
        %4761 = vmatpush2.bf16.msra.mxu0 %v3782
        %4762 = vmatprep.mubr.bf16.mxu0 %v1913
        %4763 = vmatmul.mubr.bf16.gmra.mxu0 %v1912
        %v4764 = vpop.f32.mrf.mxu0
        %v4765 = vadd.f32 %v4724, %v4764
        %v4766 = vpop.f32.mrf.mxu0
        %v4767 = vadd.f32 %v4726, %v4766
        %v4768 = vpop.f32.mrf.mxu0
        %v4769 = vpop.f32.mrf.mxu0
        %4770 = vdwg.mxu0
        %4771 = vmatprep.subr.bf16.mxu0 %v3903
        %4772 = vmatpush1.bf16.msra.mxu0 %v3902
        %4773 = vmatprep.subr.bf16.mxu0 %v3895
        %4774 = vmatpush1.bf16.msra.mxu0 %v3894
        %4775 = vmatprep.subr.bf16.mxu0 %v3887
        %4776 = vmatpush1.bf16.msra.mxu0 %v3886
        %4777 = vmatprep.subr.bf16.mxu0 %v3879
        %4778 = vmatpush1.bf16.msra.mxu0 %v3878
        %4779 = vmatprep.subr.bf16.mxu0 %v3871
        %4780 = vmatpush1.bf16.msra.mxu0 %v3870
        %4781 = vmatprep.subr.bf16.mxu0 %v3863
        %4782 = vmatpush1.bf16.msra.mxu0 %v3862
        %4783 = vmatprep.subr.bf16.mxu0 %v3855
        %4784 = vmatpush1.bf16.msra.mxu0 %v3854
        %4785 = vmatprep.subr.bf16.mxu0 %v3847
        %4786 = vmatpush1.bf16.msra.mxu0 %v3846
        %4787 = vmatprep.subr.bf16.mxu0 %v3967
        %4788 = vmatpush2.bf16.msra.mxu0 %v3966
        %4789 = vmatprep.subr.bf16.mxu0 %v3959
        %4790 = vmatpush2.bf16.msra.mxu0 %v3958
        %4791 = vmatprep.subr.bf16.mxu0 %v3951
        %4792 = vmatpush2.bf16.msra.mxu0 %v3950
        %4793 = vmatprep.subr.bf16.mxu0 %v3943
        %4794 = vmatpush2.bf16.msra.mxu0 %v3942
        %4795 = vmatprep.subr.bf16.mxu0 %v3935
        %4796 = vmatpush2.bf16.msra.mxu0 %v3934
        %4797 = vmatprep.subr.bf16.mxu0 %v3927
        %4798 = vmatpush2.bf16.msra.mxu0 %v3926
        %4799 = vmatprep.subr.bf16.mxu0 %v3919
        %4800 = vmatpush2.bf16.msra.mxu0 %v3918
        %4801 = vmatprep.subr.bf16.mxu0 %v3911
        %4802 = vmatpush2.bf16.msra.mxu0 %v3910
        %4803 = vmatprep.mubr.bf16.mxu0 %v1915
        %4804 = vmatmul.mubr.bf16.gmra.mxu0 %v1914
        %v4805 = vpop.f32.mrf.mxu0
        %v4806 = vadd.f32 %v4765, %v4805
        %v4807 = vpop.f32.mrf.mxu0
        %v4808 = vadd.f32 %v4767, %v4807
        %v4809 = vpop.f32.mrf.mxu0
        %v4810 = vpop.f32.mrf.mxu0
        %4811 = vdwg.mxu0
        %4812 = vmatprep.subr.bf16.mxu0 %v3521
        %4813 = vmatpush1.bf16.msra.mxu0 %v3520
        %4814 = vmatprep.subr.bf16.mxu0 %v3513
        %4815 = vmatpush1.bf16.msra.mxu0 %v3512
        %4816 = vmatprep.subr.bf16.mxu0 %v3505
        %4817 = vmatpush1.bf16.msra.mxu0 %v3504
        %4818 = vmatprep.subr.bf16.mxu0 %v3497
        %4819 = vmatpush1.bf16.msra.mxu0 %v3496
        %4820 = vmatprep.subr.bf16.mxu0 %v3489
        %4821 = vmatpush1.bf16.msra.mxu0 %v3488
        %4822 = vmatprep.subr.bf16.mxu0 %v3481
        %4823 = vmatpush1.bf16.msra.mxu0 %v3480
        %4824 = vmatprep.subr.bf16.mxu0 %v3473
        %4825 = vmatpush1.bf16.msra.mxu0 %v3472
        %4826 = vmatprep.subr.bf16.mxu0 %v3465
        %4827 = vmatpush1.bf16.msra.mxu0 %v3464
        %4828 = vmatprep.subr.bf16.mxu0 %v3585
        %4829 = vmatpush2.bf16.msra.mxu0 %v3584
        %4830 = vmatprep.subr.bf16.mxu0 %v3577
        %4831 = vmatpush2.bf16.msra.mxu0 %v3576
        %4832 = vmatprep.subr.bf16.mxu0 %v3569
        %4833 = vmatpush2.bf16.msra.mxu0 %v3568
        %4834 = vmatprep.subr.bf16.mxu0 %v3561
        %4835 = vmatpush2.bf16.msra.mxu0 %v3560
        %4836 = vmatprep.subr.bf16.mxu0 %v3553
        %4837 = vmatpush2.bf16.msra.mxu0 %v3552
        %4838 = vmatprep.subr.bf16.mxu0 %v3545
        %4839 = vmatpush2.bf16.msra.mxu0 %v3544
        %4840 = vmatprep.subr.bf16.mxu0 %v3537
        %4841 = vmatpush2.bf16.msra.mxu0 %v3536
        %4842 = vmatprep.subr.bf16.mxu0 %v3529
        %4843 = vmatpush2.bf16.msra.mxu0 %v3528
        %4844 = vmatprep.mubr.bf16.mxu0 %v1909
        %4845 = vmatmul.mubr.bf16.gmra.mxu0 %v1908
        %v4846 = vpop.f32.mrf.mxu0
        %v4847 = vadd.f32 %v1875, %v4846
        %v4848 = vpop.f32.mrf.mxu0
        %v4849 = vadd.f32 %v1879, %v4848
        %v4850 = vpop.f32.mrf.mxu0
        %v4851 = vpop.f32.mrf.mxu0
        %4852 = vdwg.mxu0
        %4853 = vmatprep.subr.bf16.mxu0 %v3649
        %4854 = vmatpush1.bf16.msra.mxu0 %v3648
        %4855 = vmatprep.subr.bf16.mxu0 %v3641
        %4856 = vmatpush1.bf16.msra.mxu0 %v3640
        %4857 = vmatprep.subr.bf16.mxu0 %v3633
        %4858 = vmatpush1.bf16.msra.mxu0 %v3632
        %4859 = vmatprep.subr.bf16.mxu0 %v3625
        %4860 = vmatpush1.bf16.msra.mxu0 %v3624
        %4861 = vmatprep.subr.bf16.mxu0 %v3617
        %4862 = vmatpush1.bf16.msra.mxu0 %v3616
        %4863 = vmatprep.subr.bf16.mxu0 %v3609
        %4864 = vmatpush1.bf16.msra.mxu0 %v3608
        %4865 = vmatprep.subr.bf16.mxu0 %v3601
        %4866 = vmatpush1.bf16.msra.mxu0 %v3600
        %4867 = vmatprep.subr.bf16.mxu0 %v3593
        %4868 = vmatpush1.bf16.msra.mxu0 %v3592
        %4869 = vmatprep.subr.bf16.mxu0 %v3713
        %4870 = vmatpush2.bf16.msra.mxu0 %v3712
        %4871 = vmatprep.subr.bf16.mxu0 %v3705
        %4872 = vmatpush2.bf16.msra.mxu0 %v3704
        %4873 = vmatprep.subr.bf16.mxu0 %v3697
        %4874 = vmatpush2.bf16.msra.mxu0 %v3696
        %4875 = vmatprep.subr.bf16.mxu0 %v3689
        %4876 = vmatpush2.bf16.msra.mxu0 %v3688
        %4877 = vmatprep.subr.bf16.mxu0 %v3681
        %4878 = vmatpush2.bf16.msra.mxu0 %v3680
        %4879 = vmatprep.subr.bf16.mxu0 %v3673
        %4880 = vmatpush2.bf16.msra.mxu0 %v3672
        %4881 = vmatprep.subr.bf16.mxu0 %v3665
        %4882 = vmatpush2.bf16.msra.mxu0 %v3664
        %4883 = vmatprep.subr.bf16.mxu0 %v3657
        %4884 = vmatpush2.bf16.msra.mxu0 %v3656
        %4885 = vmatprep.mubr.bf16.mxu0 %v1911
        %4886 = vmatmul.mubr.bf16.gmra.mxu0 %v1910
        %v4887 = vpop.f32.mrf.mxu0
        %v4888 = vadd.f32 %v4847, %v4887
        %v4889 = vpop.f32.mrf.mxu0
        %v4890 = vadd.f32 %v4849, %v4889
        %v4891 = vpop.f32.mrf.mxu0
        %v4892 = vpop.f32.mrf.mxu0
        %4893 = vdwg.mxu0
        %4894 = vmatprep.subr.bf16.mxu0 %v3777
        %4895 = vmatpush1.bf16.msra.mxu0 %v3776
        %4896 = vmatprep.subr.bf16.mxu0 %v3769
        %4897 = vmatpush1.bf16.msra.mxu0 %v3768
        %4898 = vmatprep.subr.bf16.mxu0 %v3761
        %4899 = vmatpush1.bf16.msra.mxu0 %v3760
        %4900 = vmatprep.subr.bf16.mxu0 %v3753
        %4901 = vmatpush1.bf16.msra.mxu0 %v3752
        %4902 = vmatprep.subr.bf16.mxu0 %v3745
        %4903 = vmatpush1.bf16.msra.mxu0 %v3744
        %4904 = vmatprep.subr.bf16.mxu0 %v3737
        %4905 = vmatpush1.bf16.msra.mxu0 %v3736
        %4906 = vmatprep.subr.bf16.mxu0 %v3729
        %4907 = vmatpush1.bf16.msra.mxu0 %v3728
        %4908 = vmatprep.subr.bf16.mxu0 %v3721
        %4909 = vmatpush1.bf16.msra.mxu0 %v3720
        %4910 = vmatprep.subr.bf16.mxu0 %v3841
        %4911 = vmatpush2.bf16.msra.mxu0 %v3840
        %4912 = vmatprep.subr.bf16.mxu0 %v3833
        %4913 = vmatpush2.bf16.msra.mxu0 %v3832
        %4914 = vmatprep.subr.bf16.mxu0 %v3825
        %4915 = vmatpush2.bf16.msra.mxu0 %v3824
        %4916 = vmatprep.subr.bf16.mxu0 %v3817
        %4917 = vmatpush2.bf16.msra.mxu0 %v3816
        %4918 = vmatprep.subr.bf16.mxu0 %v3809
        %4919 = vmatpush2.bf16.msra.mxu0 %v3808
        %4920 = vmatprep.subr.bf16.mxu0 %v3801
        %4921 = vmatpush2.bf16.msra.mxu0 %v3800
        %4922 = vmatprep.subr.bf16.mxu0 %v3793
        %4923 = vmatpush2.bf16.msra.mxu0 %v3792
        %4924 = vmatprep.subr.bf16.mxu0 %v3785
        %4925 = vmatpush2.bf16.msra.mxu0 %v3784
        %4926 = vmatprep.mubr.bf16.mxu0 %v1913
        %4927 = vmatmul.mubr.bf16.gmra.mxu0 %v1912
        %v4928 = vpop.f32.mrf.mxu0
        %v4929 = vadd.f32 %v4888, %v4928
        %v4930 = vpop.f32.mrf.mxu0
        %v4931 = vadd.f32 %v4890, %v4930
        %v4932 = vpop.f32.mrf.mxu0
        %v4933 = vpop.f32.mrf.mxu0
        %4934 = vdwg.mxu0
        %4935 = vmatprep.subr.bf16.mxu0 %v3905
        %4936 = vmatpush1.bf16.msra.mxu0 %v3904
        %4937 = vmatprep.subr.bf16.mxu0 %v3897
        %4938 = vmatpush1.bf16.msra.mxu0 %v3896
        %4939 = vmatprep.subr.bf16.mxu0 %v3889
        %4940 = vmatpush1.bf16.msra.mxu0 %v3888
        %4941 = vmatprep.subr.bf16.mxu0 %v3881
        %4942 = vmatpush1.bf16.msra.mxu0 %v3880
        %4943 = vmatprep.subr.bf16.mxu0 %v3873
        %4944 = vmatpush1.bf16.msra.mxu0 %v3872
        %4945 = vmatprep.subr.bf16.mxu0 %v3865
        %4946 = vmatpush1.bf16.msra.mxu0 %v3864
        %4947 = vmatprep.subr.bf16.mxu0 %v3857
        %4948 = vmatpush1.bf16.msra.mxu0 %v3856
        %4949 = vmatprep.subr.bf16.mxu0 %v3849
        %4950 = vmatpush1.bf16.msra.mxu0 %v3848
        %4951 = vmatprep.subr.bf16.mxu0 %v3969
        %4952 = vmatpush2.bf16.msra.mxu0 %v3968
        %4953 = vmatprep.subr.bf16.mxu0 %v3961
        %4954 = vmatpush2.bf16.msra.mxu0 %v3960
        %4955 = vmatprep.subr.bf16.mxu0 %v3953
        %4956 = vmatpush2.bf16.msra.mxu0 %v3952
        %4957 = vmatprep.subr.bf16.mxu0 %v3945
        %4958 = vmatpush2.bf16.msra.mxu0 %v3944
        %4959 = vmatprep.subr.bf16.mxu0 %v3937
        %4960 = vmatpush2.bf16.msra.mxu0 %v3936
        %4961 = vmatprep.subr.bf16.mxu0 %v3929
        %4962 = vmatpush2.bf16.msra.mxu0 %v3928
        %4963 = vmatprep.subr.bf16.mxu0 %v3921
        %4964 = vmatpush2.bf16.msra.mxu0 %v3920
        %4965 = vmatprep.subr.bf16.mxu0 %v3913
        %4966 = vmatpush2.bf16.msra.mxu0 %v3912
        %4967 = vmatprep.mubr.bf16.mxu0 %v1915
        %4968 = vmatmul.mubr.bf16.gmra.mxu0 %v1914
        %v4969 = vpop.f32.mrf.mxu0
        %v4970 = vadd.f32 %v4929, %v4969
        %v4971 = vpop.f32.mrf.mxu0
        %v4972 = vadd.f32 %v4931, %v4971
        %v4973 = vpop.f32.mrf.mxu0
        %v4974 = vpop.f32.mrf.mxu0
        %4975 = vdwg.mxu0
        %4976 = vmatprep.subr.bf16.mxu0 %v3523
        %4977 = vmatpush1.bf16.msra.mxu0 %v3522
        %4978 = vmatprep.subr.bf16.mxu0 %v3515
        %4979 = vmatpush1.bf16.msra.mxu0 %v3514
        %4980 = vmatprep.subr.bf16.mxu0 %v3507
        %4981 = vmatpush1.bf16.msra.mxu0 %v3506
        %4982 = vmatprep.subr.bf16.mxu0 %v3499
        %4983 = vmatpush1.bf16.msra.mxu0 %v3498
        %4984 = vmatprep.subr.bf16.mxu0 %v3491
        %4985 = vmatpush1.bf16.msra.mxu0 %v3490
        %4986 = vmatprep.subr.bf16.mxu0 %v3483
        %4987 = vmatpush1.bf16.msra.mxu0 %v3482
        %4988 = vmatprep.subr.bf16.mxu0 %v3475
        %4989 = vmatpush1.bf16.msra.mxu0 %v3474
        %4990 = vmatprep.subr.bf16.mxu0 %v3467
        %4991 = vmatpush1.bf16.msra.mxu0 %v3466
        %4992 = vmatprep.subr.bf16.mxu0 %v3587
        %4993 = vmatpush2.bf16.msra.mxu0 %v3586
        %4994 = vmatprep.subr.bf16.mxu0 %v3579
        %4995 = vmatpush2.bf16.msra.mxu0 %v3578
        %4996 = vmatprep.subr.bf16.mxu0 %v3571
        %4997 = vmatpush2.bf16.msra.mxu0 %v3570
        %4998 = vmatprep.subr.bf16.mxu0 %v3563
        %4999 = vmatpush2.bf16.msra.mxu0 %v3562
        %5000 = vmatprep.subr.bf16.mxu0 %v3555
        %5001 = vmatpush2.bf16.msra.mxu0 %v3554
        %5002 = vmatprep.subr.bf16.mxu0 %v3547
        %5003 = vmatpush2.bf16.msra.mxu0 %v3546
        %5004 = vmatprep.subr.bf16.mxu0 %v3539
        %5005 = vmatpush2.bf16.msra.mxu0 %v3538
        %5006 = vmatprep.subr.bf16.mxu0 %v3531
        %5007 = vmatpush2.bf16.msra.mxu0 %v3530
        %5008 = vmatprep.mubr.bf16.mxu0 %v1909
        %5009 = vmatmul.mubr.bf16.gmra.mxu0 %v1908
        %v5010 = vpop.f32.mrf.mxu0
        %v5011 = vadd.f32 %v1883, %v5010
        %v5012 = vpop.f32.mrf.mxu0
        %v5013 = vadd.f32 %v1887, %v5012
        %v5014 = vpop.f32.mrf.mxu0
        %v5015 = vpop.f32.mrf.mxu0
        %5016 = vdwg.mxu0
        %5017 = vmatprep.subr.bf16.mxu0 %v3651
        %5018 = vmatpush1.bf16.msra.mxu0 %v3650
        %5019 = vmatprep.subr.bf16.mxu0 %v3643
        %5020 = vmatpush1.bf16.msra.mxu0 %v3642
        %5021 = vmatprep.subr.bf16.mxu0 %v3635
        %5022 = vmatpush1.bf16.msra.mxu0 %v3634
        %5023 = vmatprep.subr.bf16.mxu0 %v3627
        %5024 = vmatpush1.bf16.msra.mxu0 %v3626
        %5025 = vmatprep.subr.bf16.mxu0 %v3619
        %5026 = vmatpush1.bf16.msra.mxu0 %v3618
        %5027 = vmatprep.subr.bf16.mxu0 %v3611
        %5028 = vmatpush1.bf16.msra.mxu0 %v3610
        %5029 = vmatprep.subr.bf16.mxu0 %v3603
        %5030 = vmatpush1.bf16.msra.mxu0 %v3602
        %5031 = vmatprep.subr.bf16.mxu0 %v3595
        %5032 = vmatpush1.bf16.msra.mxu0 %v3594
        %5033 = vmatprep.subr.bf16.mxu0 %v3715
        %5034 = vmatpush2.bf16.msra.mxu0 %v3714
        %5035 = vmatprep.subr.bf16.mxu0 %v3707
        %5036 = vmatpush2.bf16.msra.mxu0 %v3706
        %5037 = vmatprep.subr.bf16.mxu0 %v3699
        %5038 = vmatpush2.bf16.msra.mxu0 %v3698
        %5039 = vmatprep.subr.bf16.mxu0 %v3691
        %5040 = vmatpush2.bf16.msra.mxu0 %v3690
        %5041 = vmatprep.subr.bf16.mxu0 %v3683
        %5042 = vmatpush2.bf16.msra.mxu0 %v3682
        %5043 = vmatprep.subr.bf16.mxu0 %v3675
        %5044 = vmatpush2.bf16.msra.mxu0 %v3674
        %5045 = vmatprep.subr.bf16.mxu0 %v3667
        %5046 = vmatpush2.bf16.msra.mxu0 %v3666
        %5047 = vmatprep.subr.bf16.mxu0 %v3659
        %5048 = vmatpush2.bf16.msra.mxu0 %v3658
        %5049 = vmatprep.mubr.bf16.mxu0 %v1911
        %5050 = vmatmul.mubr.bf16.gmra.mxu0 %v1910
        %v5051 = vpop.f32.mrf.mxu0
        %v5052 = vadd.f32 %v5011, %v5051
        %v5053 = vpop.f32.mrf.mxu0
        %v5054 = vadd.f32 %v5013, %v5053
        %v5055 = vpop.f32.mrf.mxu0
        %v5056 = vpop.f32.mrf.mxu0
        %5057 = vdwg.mxu0
        %5058 = vmatprep.subr.bf16.mxu0 %v3779
        %5059 = vmatpush1.bf16.msra.mxu0 %v3778
        %5060 = vmatprep.subr.bf16.mxu0 %v3771
        %5061 = vmatpush1.bf16.msra.mxu0 %v3770
        %5062 = vmatprep.subr.bf16.mxu0 %v3763
        %5063 = vmatpush1.bf16.msra.mxu0 %v3762
        %5064 = vmatprep.subr.bf16.mxu0 %v3755
        %5065 = vmatpush1.bf16.msra.mxu0 %v3754
        %5066 = vmatprep.subr.bf16.mxu0 %v3747
        %5067 = vmatpush1.bf16.msra.mxu0 %v3746
        %5068 = vmatprep.subr.bf16.mxu0 %v3739
        %5069 = vmatpush1.bf16.msra.mxu0 %v3738
        %5070 = vmatprep.subr.bf16.mxu0 %v3731
        %5071 = vmatpush1.bf16.msra.mxu0 %v3730
        %5072 = vmatprep.subr.bf16.mxu0 %v3723
        %5073 = vmatpush1.bf16.msra.mxu0 %v3722
        %5074 = vmatprep.subr.bf16.mxu0 %v3843
        %5075 = vmatpush2.bf16.msra.mxu0 %v3842
        %5076 = vmatprep.subr.bf16.mxu0 %v3835
        %5077 = vmatpush2.bf16.msra.mxu0 %v3834
        %5078 = vmatprep.subr.bf16.mxu0 %v3827
        %5079 = vmatpush2.bf16.msra.mxu0 %v3826
        %5080 = vmatprep.subr.bf16.mxu0 %v3819
        %5081 = vmatpush2.bf16.msra.mxu0 %v3818
        %5082 = vmatprep.subr.bf16.mxu0 %v3811
        %5083 = vmatpush2.bf16.msra.mxu0 %v3810
        %5084 = vmatprep.subr.bf16.mxu0 %v3803
        %5085 = vmatpush2.bf16.msra.mxu0 %v3802
        %5086 = vmatprep.subr.bf16.mxu0 %v3795
        %5087 = vmatpush2.bf16.msra.mxu0 %v3794
        %5088 = vmatprep.subr.bf16.mxu0 %v3787
        %5089 = vmatpush2.bf16.msra.mxu0 %v3786
        %5090 = vmatprep.mubr.bf16.mxu0 %v1913
        %5091 = vmatmul.mubr.bf16.gmra.mxu0 %v1912
        %v5092 = vpop.f32.mrf.mxu0
        %v5093 = vadd.f32 %v5052, %v5092
        %v5094 = vpop.f32.mrf.mxu0
        %v5095 = vadd.f32 %v5054, %v5094
        %v5096 = vpop.f32.mrf.mxu0
        %v5097 = vpop.f32.mrf.mxu0
        %5098 = vdwg.mxu0
        %5099 = vmatprep.subr.bf16.mxu0 %v3907
        %5100 = vmatpush1.bf16.msra.mxu0 %v3906
        %5101 = vmatprep.subr.bf16.mxu0 %v3899
        %5102 = vmatpush1.bf16.msra.mxu0 %v3898
        %5103 = vmatprep.subr.bf16.mxu0 %v3891
        %5104 = vmatpush1.bf16.msra.mxu0 %v3890
        %5105 = vmatprep.subr.bf16.mxu0 %v3883
        %5106 = vmatpush1.bf16.msra.mxu0 %v3882
        %5107 = vmatprep.subr.bf16.mxu0 %v3875
        %5108 = vmatpush1.bf16.msra.mxu0 %v3874
        %5109 = vmatprep.subr.bf16.mxu0 %v3867
        %5110 = vmatpush1.bf16.msra.mxu0 %v3866
        %5111 = vmatprep.subr.bf16.mxu0 %v3859
        %5112 = vmatpush1.bf16.msra.mxu0 %v3858
        %5113 = vmatprep.subr.bf16.mxu0 %v3851
        %5114 = vmatpush1.bf16.msra.mxu0 %v3850
        %5115 = vmatprep.subr.bf16.mxu0 %v3971
        %5116 = vmatpush2.bf16.msra.mxu0 %v3970
        %5117 = vmatprep.subr.bf16.mxu0 %v3963
        %5118 = vmatpush2.bf16.msra.mxu0 %v3962
        %5119 = vmatprep.subr.bf16.mxu0 %v3955
        %5120 = vmatpush2.bf16.msra.mxu0 %v3954
        %5121 = vmatprep.subr.bf16.mxu0 %v3947
        %5122 = vmatpush2.bf16.msra.mxu0 %v3946
        %5123 = vmatprep.subr.bf16.mxu0 %v3939
        %5124 = vmatpush2.bf16.msra.mxu0 %v3938
        %5125 = vmatprep.subr.bf16.mxu0 %v3931
        %5126 = vmatpush2.bf16.msra.mxu0 %v3930
        %5127 = vmatprep.subr.bf16.mxu0 %v3923
        %5128 = vmatpush2.bf16.msra.mxu0 %v3922
        %5129 = vmatprep.subr.bf16.mxu0 %v3915
        %5130 = vmatpush2.bf16.msra.mxu0 %v3914
        %5131 = vmatprep.mubr.bf16.mxu0 %v1915
        %5132 = vmatmul.mubr.bf16.gmra.mxu0 %v1914
        %v5133 = vpop.f32.mrf.mxu0
        %v5134 = vadd.f32 %v5093, %v5133
        %v5135 = vpop.f32.mrf.mxu0
        %v5136 = vadd.f32 %v5095, %v5135
        %v5137 = vpop.f32.mrf.mxu0
        %v5138 = vpop.f32.mrf.mxu0
        %5139 = vdwg.mxu0
        %5140 = vst [vmem:[%s306] sm:$0xff] %v4642
        %5141 = vst [vmem:[%s306 + $0x8] sm:$0xff] %v4644
        %5142 = vst [vmem:[%s306 + $0x10] sm:$0xff] %v4806
        %5143 = vst [vmem:[%s306 + $0x18] sm:$0xff] %v4808
        %5144 = vst [vmem:[%s306 + $0x20] sm:$0xff] %v4970
        %5145 = vst [vmem:[%s306 + $0x28] sm:$0xff] %v4972
        %5146 = vst [vmem:[%s306 + $0x30] sm:$0xff] %v5134
        %5147 = vst [vmem:[%s306 + $0x38] sm:$0xff] %v5136
        %s5148 = smul.u32 8, %s18
        %p5149 = scmp.lt.s32.totalorder %s5148, 31
        %s5150 = scalar_select %p5149, %s5148, 31
        %s5151 = smul.addr %s5150, 8
        %s5152 = scalar_lea.vmem %s5, %s5151
        // Predicated region
        $region61: #{model_forward.4} parent=39 // pred_check
          %p5153 = pneg %p151
        $region62: #{model_forward.4} parent=39 // pred_check_branch
          %5155 = sbr.rel (%p5153) target = $region64
        $region63: #{model_forward.4} parent=39 // pred_region
          %s5156 = smul.u32 8, %s18
        $region64: #{model_forward.4} parent=39 // pred_fallthru
          _
      $region40: #{model_forward.4} parent=5 // pred_fallthru
        _
      %p5157 = scmp.le.s32.totalorder 2, %s13
      // Predicated region
      $region65: #{model_forward.4} parent=5 // pred_check
        %p5158 = pneg %p5157
      $region66: #{model_forward.4} parent=5 // pred_check_branch
        %5160 = sbr.rel (%p5158) target = $region68
      $region67: #{model_forward.4} parent=5 // pred_region
        %s5161 = ssub.s32 %s13, 2
        // Predicated region
        $region69: #{model_forward.4} parent=67 // pred_check
          %p5162 = pneg %p157
        $region70: #{model_forward.4} parent=67 // pred_check_branch
          %5164 = sbr.rel (%p5162) target = $region72
        $region71: #{model_forward.4} parent=67 // pred_region
          %s5165 = smul.u32 8, %s19
          %p5166 = scmp.lt.s32.totalorder %s5165, 31
          %s5167 = scalar_select %p5166, %s5165, 31
          %s5168 = smul.addr %s5167, 8
          %s5169 = scalar_lea.vmem %s5, %s5168
        $region72: #{model_forward.4} parent=67 // pred_fallthru
          _
      $region68: #{model_forward.4} parent=5 // pred_fallthru
        _
    $region6: #{model_forward.4} parent=1 // loop_footer
      %s17 = sadd.s32 1, %s13
    $region7: #{model_forward.4} parent=1 // loop_footer_branch
      %12 = sbr.rel target = $region3
    $region8: #{model_forward.4} parent=1 // loop_exit
      _
    %5170 = vsyncpa [#allocation4], 1
    %s5171 = scalar_lea.sflag [#allocation4], 1
    %5172 = vsyncpa %s5171, 1
    %5173 = vsyncpa [#allocation6], 1

</llo_original>
